<compile_context>
chip_gen: v7x
topology: tpu7x:2x2x1
jax: 0.10.0
libtpu: 0.0.40
codegen_flags: <defaults>
</compile_context>

<pallas_src>
import functools
import math

import jax
import jax.numpy as jnp
from jax.experimental import pallas as pl
from jax.experimental.pallas import tpu as pltpu

LAYERS = [2, 8, 8, 8, 8, 8, 1]   # same as PINN([2, 8, 8, 8, 8, 8, 1])


def _default_compute_dtype():
    """Packed-bf16 VPU/EUP exists on v6e/v7x -> bf16 hidden activations there.
    v5e and older have no bf16 VPU path -> keep f32 (bf16 would regress)."""
    try:
        kind = jax.devices()[0].device_kind.lower()
    except Exception:
        return jnp.float32
    if ("v6" in kind) or ("v7" in kind) or ("trillium" in kind):
        return jnp.bfloat16
    return jnp.float32


def _pinn_kernel(p_ref, x_ref, t_ref, o_ref, *, compute_dtype, chunk_r):
    """p_ref: (321,) f32 packed [W0|b0|...|W5|b5] in SMEM (scalar reads).
    x_ref, t_ref: (tile_r, 128) f32 VMEM tiles (x coords / t coords).
    o_ref: (tile_r, 128) f32 VMEM tile -- lane/sublane-dense output slab.
    """
    n_layers = len(LAYERS) - 1

    # ---- Prologue: hoist ALL SMEM parameter reads out of the FMA stream. ----
    # Hidden layers use compute_dtype (bf16 on v6e/v7x); output layer stays f32.
    Ws, Bs = [], []
    idx = 0
    for layer in range(n_layers):
        fan_in, fan_out = LAYERS[layer], LAYERS[layer + 1]
        dt = jnp.float32 if layer == n_layers - 1 else compute_dtype
        w = [[p_ref[idx + k * fan_out + j].astype(dt) for j in range(fan_out)]
             for k in range(fan_in)]
        b = [p_ref[idx + fan_in * fan_out + j].astype(dt) for j in range(fan_out)]
        Ws.append(w)
        Bs.append(b)
        idx += fan_in * fan_out + fan_out

    tile_r = x_ref.shape[0]
    assert tile_r % chunk_r == 0
    n_chunks = tile_r // chunk_r

    # Inner loop over sublane chunks keeps the live-vreg count bounded so large
    # tiles (tile_r up to 128) never spill to VMEM.
    @pl.loop(0, n_chunks)
    def _(c):
        r0 = pl.multiple_of(c * chunk_r, chunk_r)
        xs = x_ref[pl.ds(r0, chunk_r), :]
        ts = t_ref[pl.ds(r0, chunk_r), :]
        h = [xs.astype(compute_dtype), ts.astype(compute_dtype)]
        for layer in range(n_layers):
            fan_in, fan_out = LAYERS[layer], LAYERS[layer + 1]
            if layer == n_layers - 1 and h[0].dtype != jnp.float32:
                # Output layer always accumulates in f32 for accuracy.
                h = [v.astype(jnp.float32) for v in h]
            w, b = Ws[layer], Bs[layer]
            new_h = []
            for j in range(fan_out):
                # out[j] = tanh( sum_k h[k]*W[k,j] + b[j] ): VPU scalar-broadcast
                # FMAs; jnp.tanh lowers to the EUP (separate bundle slot -> ~free).
                acc = h[0] * w[0][j]
                for k in range(1, fan_in):
                    acc = acc + h[k] * w[k][j]
                acc = acc + b[j]
                new_h.append(jnp.tanh(acc))   # tanh after EVERY layer (incl. output)
            h = new_h
        o_ref[pl.ds(r0, chunk_r), :] = h[0]   # dense unmasked vst


def _pack_params(params):
    """Flatten [(W0,b0),...,(W5,b5)] into one 1-D f32 buffer (row-major W, then b)."""
    flat = []
    for w, b in params:
        flat.append(jnp.asarray(w, jnp.float32).reshape(-1))  # W[k, j] at k*fan_out + j
        flat.append(jnp.asarray(b, jnp.float32).reshape(-1))
    return jnp.concatenate(flat)


def pinn_forward(x, t, params, *, tile_n=None, compute_dtype=None):
    """x, t: (N,) float32.  params: list of (W, b) with W shape (fan_in, fan_out).
    Returns u: (N,) float32, matching PINN.forward(x, t)."""
    assert x.shape == t.shape and x.ndim == 1
    n = x.shape[0]
    if compute_dtype is None:
        compute_dtype = _default_compute_dtype()

    # Pad the point axis only to the 1024-point layout granularity (tile rows must
    # be a multiple of 8 sublanes x 128 lanes).  No stacked (2,...,...) array and
    # no padding to a full tile multiple -- the ragged tail is a Pallas partial block.
    n_1024 = pl.cdiv(n, 1024) * 1024
    pad = n_1024 - n
    xf = x.astype(jnp.float32)
    tf = t.astype(jnp.float32)
    if pad:
        xf = jnp.pad(xf, (0, pad))
        tf = jnp.pad(tf, (0, pad))
    rows = n_1024 // 128                       # multiple of 8
    X = xf.reshape(rows, 128)
    T = tf.reshape(rows, 128)

    # Tile selection: big tiles amortize the ~0.35us per-grid-step overhead, but
    # keep >=2 grid steps so v7x's second TensorCore gets work on medium N.
    if tile_n is None:
        target = 16384
        half = ((n_1024 // 2) // 1024) * 1024
        tile_n = max(1024, min(target, half if half >= 1024 else n_1024))
    tile_n = min(tile_n, n_1024)
    assert tile_n % 1024 == 0, "tile_n must be a multiple of 1024 (8 sublanes x 128 lanes)"
    tile_r = tile_n // 128
    chunk_r = 16 if tile_r % 16 == 0 else 8    # inner sublane-chunk size
    grid = pl.cdiv(rows, tile_r)

    p_flat = _pack_params(params)              # (321,) f32 -> SMEM

    flops_pp = sum(2 * LAYERS[i] * LAYERS[i + 1] + LAYERS[i + 1]
                   for i in range(len(LAYERS) - 1))        # 601 flops / point
    trans_pp = sum(LAYERS[i + 1] for i in range(len(LAYERS) - 1))  # 41 tanh / point

    def _run(dtype):
        return pl.pallas_call(
            functools.partial(_pinn_kernel, compute_dtype=dtype, chunk_r=chunk_r),
            out_shape=jax.ShapeDtypeStruct((rows, 128), jnp.float32),
            grid_spec=pltpu.PrefetchScalarGridSpec(
                num_scalar_prefetch=0,
                grid=(grid,),
                in_specs=[
                    # Single packed parameter buffer, untiled, scalar-addressable.
                    pl.BlockSpec(memory_space=pltpu.MemorySpace.SMEM),
                    # Two contiguous dense input tiles (no stacked/strided DMA).
                    pl.BlockSpec((tile_r, 128), lambda i: (i, 0)),
                    pl.BlockSpec((tile_r, 128), lambda i: (i, 0)),
                ],
                # Lane/sublane-dense output tile -> unmasked vector stores.
                out_specs=pl.BlockSpec((tile_r, 128), lambda i: (i, 0)),
            ),
            compiler_params=pltpu.CompilerParams(
                dimension_semantics=("parallel",),   # v7x megacore splits the grid
            ),
            cost_estimate=pl.CostEstimate(
                flops=flops_pp * n,
                transcendentals=trans_pp * n,
                bytes_accessed=12 * n,
            ),
        )(p_flat, X, T)

    if compute_dtype == jnp.float32:
        out = _run(jnp.float32)
    else:
        try:
            out = _run(compute_dtype)
        except Exception:
            # Packed-bf16 VALU path failed to lower on this toolchain/generation;
            # fall back to the proven f32 path rather than failing.
            out = _run(jnp.float32)

    return out.reshape(-1)[:n]                 # u[:, 0] equivalent


def init_params(key, layers):
    """Deterministic init mimicking torch.nn.Linear default (U(-k, k), k=1/sqrt(fan_in))."""
    params = []
    for i in range(len(layers) - 1):
        fan_in, fan_out = layers[i], layers[i + 1]
        key, kw, kb = jax.random.split(key, 3)
        bound = 1.0 / math.sqrt(fan_in)
        w = jax.random.uniform(kw, (fan_in, fan_out), jnp.float32, -bound, bound)
        b = jax.random.uniform(kb, (fan_out,), jnp.float32, -bound, bound)
        params.append((w, b))
    return params


def pinn_reference(x, t, params):
    """Pure-JAX reference for correctness check."""
    h = jnp.concatenate([x.reshape(-1, 1), t.reshape(-1, 1)], axis=1)
    for (w, b) in params:
        h = jnp.tanh(h @ w + b)
    return h[:, 0]


# TODO(synk): training (Adam/LBFGS), autograd-based PDE/boundary losses and plotting from the
# PyTorch script are host-side training-loop logic, not part of the forward kernel.

if __name__ == "__main__":
    key = jax.random.PRNGKey(0)
    kp, kx, kt = jax.random.split(key, 3)

    params = init_params(kp, LAYERS)

    # Not a multiple of 128 / tile size on purpose: exercises the small pad and
    # the >=2-step parallel grid (auto tile = 2048 here -> both v7x TCs get work).
    N = 4000
    x = jax.random.uniform(kx, (N,), jnp.float32)   # spatial coords in [0, 1)
    t = jax.random.uniform(kt, (N,), jnp.float32)   # time coords in [0, 1)

    u_ref = pinn_reference(x, t, params)

    # 1) f32 path: tight check on every TPU generation.
    u_f32 = jax.block_until_ready(pinn_forward(x, t, params, compute_dtype=jnp.float32))
    assert u_f32.shape == (N,)
    assert jnp.allclose(u_f32, u_ref, atol=1e-5, rtol=1e-5), "f32 kernel mismatch vs. reference"

    # 2) generation-default path: bf16 hidden activations on v6e/v7x (f32 output
    #    layer), f32 elsewhere.  Relaxed tolerance when bf16 is in play.
    auto_dtype = _default_compute_dtype()
    u_auto = jax.block_until_ready(pinn_forward(x, t, params))
    assert u_auto.shape == (N,)
    if auto_dtype == jnp.float32:
        assert jnp.allclose(u_auto, u_ref, atol=1e-5, rtol=1e-5), "auto kernel mismatch"
    else:
        assert jnp.allclose(u_auto, u_ref, atol=3e-2, rtol=0.0), "bf16 kernel mismatch"

    print("KERNEL_OK")
</pallas_src>

<mosaic_0001>
module attributes {stable_mosaic.version = 11 : i64} {
  func.func @_pinn_kernel(%arg0: i32, %arg1: memref<321xf32, #tpu.memory_space<smem>>, %arg2: memref<16x128xf32, #tpu.memory_space<vmem>>, %arg3: memref<16x128xf32, #tpu.memory_space<vmem>>, %arg4: memref<16x128xf32, #tpu.memory_space<vmem>>) attributes {dimension_semantics = [#tpu.dimension_semantics<parallel>], iteration_bounds = array<i64: 2>, scalar_prefetch = 0 : i64, scratch_operands = 0 : i64, tpu.core_type = #tpu.core_type<tc>, window_params = [{transform_indices = @transform_0, window_bounds = array<i64: 321>}, {transform_indices = @transform_1, window_bounds = array<i64: 16, 128>}, {transform_indices = @transform_2, window_bounds = array<i64: 16, 128>}, {transform_indices = @transform_3, window_bounds = array<i64: 16, 128>}]} {
    %c0 = arith.constant 0 : index
    %0 = memref.load %arg1[%c0] : memref<321xf32, #tpu.memory_space<smem>>
    %c1 = arith.constant 1 : index
    %1 = memref.load %arg1[%c1] : memref<321xf32, #tpu.memory_space<smem>>
    %c2 = arith.constant 2 : index
    %2 = memref.load %arg1[%c2] : memref<321xf32, #tpu.memory_space<smem>>
    %c3 = arith.constant 3 : index
    %3 = memref.load %arg1[%c3] : memref<321xf32, #tpu.memory_space<smem>>
    %c4 = arith.constant 4 : index
    %4 = memref.load %arg1[%c4] : memref<321xf32, #tpu.memory_space<smem>>
    %c5 = arith.constant 5 : index
    %5 = memref.load %arg1[%c5] : memref<321xf32, #tpu.memory_space<smem>>
    %c6 = arith.constant 6 : index
    %6 = memref.load %arg1[%c6] : memref<321xf32, #tpu.memory_space<smem>>
    %c7 = arith.constant 7 : index
    %7 = memref.load %arg1[%c7] : memref<321xf32, #tpu.memory_space<smem>>
    %c8 = arith.constant 8 : index
    %8 = memref.load %arg1[%c8] : memref<321xf32, #tpu.memory_space<smem>>
    %c9 = arith.constant 9 : index
    %9 = memref.load %arg1[%c9] : memref<321xf32, #tpu.memory_space<smem>>
    %c10 = arith.constant 10 : index
    %10 = memref.load %arg1[%c10] : memref<321xf32, #tpu.memory_space<smem>>
    %c11 = arith.constant 11 : index
    %11 = memref.load %arg1[%c11] : memref<321xf32, #tpu.memory_space<smem>>
    %c12 = arith.constant 12 : index
    %12 = memref.load %arg1[%c12] : memref<321xf32, #tpu.memory_space<smem>>
    %c13 = arith.constant 13 : index
    %13 = memref.load %arg1[%c13] : memref<321xf32, #tpu.memory_space<smem>>
    %c14 = arith.constant 14 : index
    %14 = memref.load %arg1[%c14] : memref<321xf32, #tpu.memory_space<smem>>
    %c15 = arith.constant 15 : index
    %15 = memref.load %arg1[%c15] : memref<321xf32, #tpu.memory_space<smem>>
    %c16 = arith.constant 16 : index
    %16 = memref.load %arg1[%c16] : memref<321xf32, #tpu.memory_space<smem>>
    %c17 = arith.constant 17 : index
    %17 = memref.load %arg1[%c17] : memref<321xf32, #tpu.memory_space<smem>>
    %c18 = arith.constant 18 : index
    %18 = memref.load %arg1[%c18] : memref<321xf32, #tpu.memory_space<smem>>
    %c19 = arith.constant 19 : index
    %19 = memref.load %arg1[%c19] : memref<321xf32, #tpu.memory_space<smem>>
    %c20 = arith.constant 20 : index
    %20 = memref.load %arg1[%c20] : memref<321xf32, #tpu.memory_space<smem>>
    %c21 = arith.constant 21 : index
    %21 = memref.load %arg1[%c21] : memref<321xf32, #tpu.memory_space<smem>>
    %c22 = arith.constant 22 : index
    %22 = memref.load %arg1[%c22] : memref<321xf32, #tpu.memory_space<smem>>
    %c23 = arith.constant 23 : index
    %23 = memref.load %arg1[%c23] : memref<321xf32, #tpu.memory_space<smem>>
    %c24 = arith.constant 24 : index
    %24 = memref.load %arg1[%c24] : memref<321xf32, #tpu.memory_space<smem>>
    %c25 = arith.constant 25 : index
    %25 = memref.load %arg1[%c25] : memref<321xf32, #tpu.memory_space<smem>>
    %c26 = arith.constant 26 : index
    %26 = memref.load %arg1[%c26] : memref<321xf32, #tpu.memory_space<smem>>
    %c27 = arith.constant 27 : index
    %27 = memref.load %arg1[%c27] : memref<321xf32, #tpu.memory_space<smem>>
    %c28 = arith.constant 28 : index
    %28 = memref.load %arg1[%c28] : memref<321xf32, #tpu.memory_space<smem>>
    %c29 = arith.constant 29 : index
    %29 = memref.load %arg1[%c29] : memref<321xf32, #tpu.memory_space<smem>>
    %c30 = arith.constant 30 : index
    %30 = memref.load %arg1[%c30] : memref<321xf32, #tpu.memory_space<smem>>
    %c31 = arith.constant 31 : index
    %31 = memref.load %arg1[%c31] : memref<321xf32, #tpu.memory_space<smem>>
    %c32 = arith.constant 32 : index
    %32 = memref.load %arg1[%c32] : memref<321xf32, #tpu.memory_space<smem>>
    %c33 = arith.constant 33 : index
    %33 = memref.load %arg1[%c33] : memref<321xf32, #tpu.memory_space<smem>>
    %c34 = arith.constant 34 : index
    %34 = memref.load %arg1[%c34] : memref<321xf32, #tpu.memory_space<smem>>
    %c35 = arith.constant 35 : index
    %35 = memref.load %arg1[%c35] : memref<321xf32, #tpu.memory_space<smem>>
    %c36 = arith.constant 36 : index
    %36 = memref.load %arg1[%c36] : memref<321xf32, #tpu.memory_space<smem>>
    %c37 = arith.constant 37 : index
    %37 = memref.load %arg1[%c37] : memref<321xf32, #tpu.memory_space<smem>>
    %c38 = arith.constant 38 : index
    %38 = memref.load %arg1[%c38] : memref<321xf32, #tpu.memory_space<smem>>
    %c39 = arith.constant 39 : index
    %39 = memref.load %arg1[%c39] : memref<321xf32, #tpu.memory_space<smem>>
    %c40 = arith.constant 40 : index
    %40 = memref.load %arg1[%c40] : memref<321xf32, #tpu.memory_space<smem>>
    %c41 = arith.constant 41 : index
    %41 = memref.load %arg1[%c41] : memref<321xf32, #tpu.memory_space<smem>>
    %c42 = arith.constant 42 : index
    %42 = memref.load %arg1[%c42] : memref<321xf32, #tpu.memory_space<smem>>
    %c43 = arith.constant 43 : index
    %43 = memref.load %arg1[%c43] : memref<321xf32, #tpu.memory_space<smem>>
    %c44 = arith.constant 44 : index
    %44 = memref.load %arg1[%c44] : memref<321xf32, #tpu.memory_space<smem>>
    %c45 = arith.constant 45 : index
    %45 = memref.load %arg1[%c45] : memref<321xf32, #tpu.memory_space<smem>>
    %c46 = arith.constant 46 : index
    %46 = memref.load %arg1[%c46] : memref<321xf32, #tpu.memory_space<smem>>
    %c47 = arith.constant 47 : index
    %47 = memref.load %arg1[%c47] : memref<321xf32, #tpu.memory_space<smem>>
    %c48 = arith.constant 48 : index
    %48 = memref.load %arg1[%c48] : memref<321xf32, #tpu.memory_space<smem>>
    %c49 = arith.constant 49 : index
    %49 = memref.load %arg1[%c49] : memref<321xf32, #tpu.memory_space<smem>>
    %c50 = arith.constant 50 : index
    %50 = memref.load %arg1[%c50] : memref<321xf32, #tpu.memory_space<smem>>
    %c51 = arith.constant 51 : index
    %51 = memref.load %arg1[%c51] : memref<321xf32, #tpu.memory_space<smem>>
    %c52 = arith.constant 52 : index
    %52 = memref.load %arg1[%c52] : memref<321xf32, #tpu.memory_space<smem>>
    %c53 = arith.constant 53 : index
    %53 = memref.load %arg1[%c53] : memref<321xf32, #tpu.memory_space<smem>>
    %c54 = arith.constant 54 : index
    %54 = memref.load %arg1[%c54] : memref<321xf32, #tpu.memory_space<smem>>
    %c55 = arith.constant 55 : index
    %55 = memref.load %arg1[%c55] : memref<321xf32, #tpu.memory_space<smem>>
    %c56 = arith.constant 56 : index
    %56 = memref.load %arg1[%c56] : memref<321xf32, #tpu.memory_space<smem>>
    %c57 = arith.constant 57 : index
    %57 = memref.load %arg1[%c57] : memref<321xf32, #tpu.memory_space<smem>>
    %c58 = arith.constant 58 : index
    %58 = memref.load %arg1[%c58] : memref<321xf32, #tpu.memory_space<smem>>
    %c59 = arith.constant 59 : index
    %59 = memref.load %arg1[%c59] : memref<321xf32, #tpu.memory_space<smem>>
    %c60 = arith.constant 60 : index
    %60 = memref.load %arg1[%c60] : memref<321xf32, #tpu.memory_space<smem>>
    %c61 = arith.constant 61 : index
    %61 = memref.load %arg1[%c61] : memref<321xf32, #tpu.memory_space<smem>>
    %c62 = arith.constant 62 : index
    %62 = memref.load %arg1[%c62] : memref<321xf32, #tpu.memory_space<smem>>
    %c63 = arith.constant 63 : index
    %63 = memref.load %arg1[%c63] : memref<321xf32, #tpu.memory_space<smem>>
    %c64 = arith.constant 64 : index
    %64 = memref.load %arg1[%c64] : memref<321xf32, #tpu.memory_space<smem>>
    %c65 = arith.constant 65 : index
    %65 = memref.load %arg1[%c65] : memref<321xf32, #tpu.memory_space<smem>>
    %c66 = arith.constant 66 : index
    %66 = memref.load %arg1[%c66] : memref<321xf32, #tpu.memory_space<smem>>
    %c67 = arith.constant 67 : index
    %67 = memref.load %arg1[%c67] : memref<321xf32, #tpu.memory_space<smem>>
    %c68 = arith.constant 68 : index
    %68 = memref.load %arg1[%c68] : memref<321xf32, #tpu.memory_space<smem>>
    %c69 = arith.constant 69 : index
    %69 = memref.load %arg1[%c69] : memref<321xf32, #tpu.memory_space<smem>>
    %c70 = arith.constant 70 : index
    %70 = memref.load %arg1[%c70] : memref<321xf32, #tpu.memory_space<smem>>
    %c71 = arith.constant 71 : index
    %71 = memref.load %arg1[%c71] : memref<321xf32, #tpu.memory_space<smem>>
    %c72 = arith.constant 72 : index
    %72 = memref.load %arg1[%c72] : memref<321xf32, #tpu.memory_space<smem>>
    %c73 = arith.constant 73 : index
    %73 = memref.load %arg1[%c73] : memref<321xf32, #tpu.memory_space<smem>>
    %c74 = arith.constant 74 : index
    %74 = memref.load %arg1[%c74] : memref<321xf32, #tpu.memory_space<smem>>
    %c75 = arith.constant 75 : index
    %75 = memref.load %arg1[%c75] : memref<321xf32, #tpu.memory_space<smem>>
    %c76 = arith.constant 76 : index
    %76 = memref.load %arg1[%c76] : memref<321xf32, #tpu.memory_space<smem>>
    %c77 = arith.constant 77 : index
    %77 = memref.load %arg1[%c77] : memref<321xf32, #tpu.memory_space<smem>>
    %c78 = arith.constant 78 : index
    %78 = memref.load %arg1[%c78] : memref<321xf32, #tpu.memory_space<smem>>
    %c79 = arith.constant 79 : index
    %79 = memref.load %arg1[%c79] : memref<321xf32, #tpu.memory_space<smem>>
    %c80 = arith.constant 80 : index
    %80 = memref.load %arg1[%c80] : memref<321xf32, #tpu.memory_space<smem>>
    %c81 = arith.constant 81 : index
    %81 = memref.load %arg1[%c81] : memref<321xf32, #tpu.memory_space<smem>>
    %c82 = arith.constant 82 : index
    %82 = memref.load %arg1[%c82] : memref<321xf32, #tpu.memory_space<smem>>
    %c83 = arith.constant 83 : index
    %83 = memref.load %arg1[%c83] : memref<321xf32, #tpu.memory_space<smem>>
    %c84 = arith.constant 84 : index
    %84 = memref.load %arg1[%c84] : memref<321xf32, #tpu.memory_space<smem>>
    %c85 = arith.constant 85 : index
    %85 = memref.load %arg1[%c85] : memref<321xf32, #tpu.memory_space<smem>>
    %c86 = arith.constant 86 : index
    %86 = memref.load %arg1[%c86] : memref<321xf32, #tpu.memory_space<smem>>
    %c87 = arith.constant 87 : index
    %87 = memref.load %arg1[%c87] : memref<321xf32, #tpu.memory_space<smem>>
    %c88 = arith.constant 88 : index
    %88 = memref.load %arg1[%c88] : memref<321xf32, #tpu.memory_space<smem>>
    %c89 = arith.constant 89 : index
    %89 = memref.load %arg1[%c89] : memref<321xf32, #tpu.memory_space<smem>>
    %c90 = arith.constant 90 : index
    %90 = memref.load %arg1[%c90] : memref<321xf32, #tpu.memory_space<smem>>
    %c91 = arith.constant 91 : index
    %91 = memref.load %arg1[%c91] : memref<321xf32, #tpu.memory_space<smem>>
    %c92 = arith.constant 92 : index
    %92 = memref.load %arg1[%c92] : memref<321xf32, #tpu.memory_space<smem>>
    %c93 = arith.constant 93 : index
    %93 = memref.load %arg1[%c93] : memref<321xf32, #tpu.memory_space<smem>>
    %c94 = arith.constant 94 : index
    %94 = memref.load %arg1[%c94] : memref<321xf32, #tpu.memory_space<smem>>
    %c95 = arith.constant 95 : index
    %95 = memref.load %arg1[%c95] : memref<321xf32, #tpu.memory_space<smem>>
    %c96 = arith.constant 96 : index
    %96 = memref.load %arg1[%c96] : memref<321xf32, #tpu.memory_space<smem>>
    %c97 = arith.constant 97 : index
    %97 = memref.load %arg1[%c97] : memref<321xf32, #tpu.memory_space<smem>>
    %c98 = arith.constant 98 : index
    %98 = memref.load %arg1[%c98] : memref<321xf32, #tpu.memory_space<smem>>
    %c99 = arith.constant 99 : index
    %99 = memref.load %arg1[%c99] : memref<321xf32, #tpu.memory_space<smem>>
    %c100 = arith.constant 100 : index
    %100 = memref.load %arg1[%c100] : memref<321xf32, #tpu.memory_space<smem>>
    %c101 = arith.constant 101 : index
    %101 = memref.load %arg1[%c101] : memref<321xf32, #tpu.memory_space<smem>>
    %c102 = arith.constant 102 : index
    %102 = memref.load %arg1[%c102] : memref<321xf32, #tpu.memory_space<smem>>
    %c103 = arith.constant 103 : index
    %103 = memref.load %arg1[%c103] : memref<321xf32, #tpu.memory_space<smem>>
    %c104 = arith.constant 104 : index
    %104 = memref.load %arg1[%c104] : memref<321xf32, #tpu.memory_space<smem>>
    %c105 = arith.constant 105 : index
    %105 = memref.load %arg1[%c105] : memref<321xf32, #tpu.memory_space<smem>>
    %c106 = arith.constant 106 : index
    %106 = memref.load %arg1[%c106] : memref<321xf32, #tpu.memory_space<smem>>
    %c107 = arith.constant 107 : index
    %107 = memref.load %arg1[%c107] : memref<321xf32, #tpu.memory_space<smem>>
    %c108 = arith.constant 108 : index
    %108 = memref.load %arg1[%c108] : memref<321xf32, #tpu.memory_space<smem>>
    %c109 = arith.constant 109 : index
    %109 = memref.load %arg1[%c109] : memref<321xf32, #tpu.memory_space<smem>>
    %c110 = arith.constant 110 : index
    %110 = memref.load %arg1[%c110] : memref<321xf32, #tpu.memory_space<smem>>
    %c111 = arith.constant 111 : index
    %111 = memref.load %arg1[%c111] : memref<321xf32, #tpu.memory_space<smem>>
    %c112 = arith.constant 112 : index
    %112 = memref.load %arg1[%c112] : memref<321xf32, #tpu.memory_space<smem>>
    %c113 = arith.constant 113 : index
    %113 = memref.load %arg1[%c113] : memref<321xf32, #tpu.memory_space<smem>>
    %c114 = arith.constant 114 : index
    %114 = memref.load %arg1[%c114] : memref<321xf32, #tpu.memory_space<smem>>
    %c115 = arith.constant 115 : index
    %115 = memref.load %arg1[%c115] : memref<321xf32, #tpu.memory_space<smem>>
    %c116 = arith.constant 116 : index
    %116 = memref.load %arg1[%c116] : memref<321xf32, #tpu.memory_space<smem>>
    %c117 = arith.constant 117 : index
    %117 = memref.load %arg1[%c117] : memref<321xf32, #tpu.memory_space<smem>>
    %c118 = arith.constant 118 : index
    %118 = memref.load %arg1[%c118] : memref<321xf32, #tpu.memory_space<smem>>
    %c119 = arith.constant 119 : index
    %119 = memref.load %arg1[%c119] : memref<321xf32, #tpu.memory_space<smem>>
    %c120 = arith.constant 120 : index
    %120 = memref.load %arg1[%c120] : memref<321xf32, #tpu.memory_space<smem>>
    %c121 = arith.constant 121 : index
    %121 = memref.load %arg1[%c121] : memref<321xf32, #tpu.memory_space<smem>>
    %c122 = arith.constant 122 : index
    %122 = memref.load %arg1[%c122] : memref<321xf32, #tpu.memory_space<smem>>
    %c123 = arith.constant 123 : index
    %123 = memref.load %arg1[%c123] : memref<321xf32, #tpu.memory_space<smem>>
    %c124 = arith.constant 124 : index
    %124 = memref.load %arg1[%c124] : memref<321xf32, #tpu.memory_space<smem>>
    %c125 = arith.constant 125 : index
    %125 = memref.load %arg1[%c125] : memref<321xf32, #tpu.memory_space<smem>>
    %c126 = arith.constant 126 : index
    %126 = memref.load %arg1[%c126] : memref<321xf32, #tpu.memory_space<smem>>
    %c127 = arith.constant 127 : index
    %127 = memref.load %arg1[%c127] : memref<321xf32, #tpu.memory_space<smem>>
    %c128 = arith.constant 128 : index
    %128 = memref.load %arg1[%c128] : memref<321xf32, #tpu.memory_space<smem>>
    %c129 = arith.constant 129 : index
    %129 = memref.load %arg1[%c129] : memref<321xf32, #tpu.memory_space<smem>>
    %c130 = arith.constant 130 : index
    %130 = memref.load %arg1[%c130] : memref<321xf32, #tpu.memory_space<smem>>
    %c131 = arith.constant 131 : index
    %131 = memref.load %arg1[%c131] : memref<321xf32, #tpu.memory_space<smem>>
    %c132 = arith.constant 132 : index
    %132 = memref.load %arg1[%c132] : memref<321xf32, #tpu.memory_space<smem>>
    %c133 = arith.constant 133 : index
    %133 = memref.load %arg1[%c133] : memref<321xf32, #tpu.memory_space<smem>>
    %c134 = arith.constant 134 : index
    %134 = memref.load %arg1[%c134] : memref<321xf32, #tpu.memory_space<smem>>
    %c135 = arith.constant 135 : index
    %135 = memref.load %arg1[%c135] : memref<321xf32, #tpu.memory_space<smem>>
    %c136 = arith.constant 136 : index
    %136 = memref.load %arg1[%c136] : memref<321xf32, #tpu.memory_space<smem>>
    %c137 = arith.constant 137 : index
    %137 = memref.load %arg1[%c137] : memref<321xf32, #tpu.memory_space<smem>>
    %c138 = arith.constant 138 : index
    %138 = memref.load %arg1[%c138] : memref<321xf32, #tpu.memory_space<smem>>
    %c139 = arith.constant 139 : index
    %139 = memref.load %arg1[%c139] : memref<321xf32, #tpu.memory_space<smem>>
    %c140 = arith.constant 140 : index
    %140 = memref.load %arg1[%c140] : memref<321xf32, #tpu.memory_space<smem>>
    %c141 = arith.constant 141 : index
    %141 = memref.load %arg1[%c141] : memref<321xf32, #tpu.memory_space<smem>>
    %c142 = arith.constant 142 : index
    %142 = memref.load %arg1[%c142] : memref<321xf32, #tpu.memory_space<smem>>
    %c143 = arith.constant 143 : index
    %143 = memref.load %arg1[%c143] : memref<321xf32, #tpu.memory_space<smem>>
    %c144 = arith.constant 144 : index
    %144 = memref.load %arg1[%c144] : memref<321xf32, #tpu.memory_space<smem>>
    %c145 = arith.constant 145 : index
    %145 = memref.load %arg1[%c145] : memref<321xf32, #tpu.memory_space<smem>>
    %c146 = arith.constant 146 : index
    %146 = memref.load %arg1[%c146] : memref<321xf32, #tpu.memory_space<smem>>
    %c147 = arith.constant 147 : index
    %147 = memref.load %arg1[%c147] : memref<321xf32, #tpu.memory_space<smem>>
    %c148 = arith.constant 148 : index
    %148 = memref.load %arg1[%c148] : memref<321xf32, #tpu.memory_space<smem>>
    %c149 = arith.constant 149 : index
    %149 = memref.load %arg1[%c149] : memref<321xf32, #tpu.memory_space<smem>>
    %c150 = arith.constant 150 : index
    %150 = memref.load %arg1[%c150] : memref<321xf32, #tpu.memory_space<smem>>
    %c151 = arith.constant 151 : index
    %151 = memref.load %arg1[%c151] : memref<321xf32, #tpu.memory_space<smem>>
    %c152 = arith.constant 152 : index
    %152 = memref.load %arg1[%c152] : memref<321xf32, #tpu.memory_space<smem>>
    %c153 = arith.constant 153 : index
    %153 = memref.load %arg1[%c153] : memref<321xf32, #tpu.memory_space<smem>>
    %c154 = arith.constant 154 : index
    %154 = memref.load %arg1[%c154] : memref<321xf32, #tpu.memory_space<smem>>
    %c155 = arith.constant 155 : index
    %155 = memref.load %arg1[%c155] : memref<321xf32, #tpu.memory_space<smem>>
    %c156 = arith.constant 156 : index
    %156 = memref.load %arg1[%c156] : memref<321xf32, #tpu.memory_space<smem>>
    %c157 = arith.constant 157 : index
    %157 = memref.load %arg1[%c157] : memref<321xf32, #tpu.memory_space<smem>>
    %c158 = arith.constant 158 : index
    %158 = memref.load %arg1[%c158] : memref<321xf32, #tpu.memory_space<smem>>
    %c159 = arith.constant 159 : index
    %159 = memref.load %arg1[%c159] : memref<321xf32, #tpu.memory_space<smem>>
    %c160 = arith.constant 160 : index
    %160 = memref.load %arg1[%c160] : memref<321xf32, #tpu.memory_space<smem>>
    %c161 = arith.constant 161 : index
    %161 = memref.load %arg1[%c161] : memref<321xf32, #tpu.memory_space<smem>>
    %c162 = arith.constant 162 : index
    %162 = memref.load %arg1[%c162] : memref<321xf32, #tpu.memory_space<smem>>
    %c163 = arith.constant 163 : index
    %163 = memref.load %arg1[%c163] : memref<321xf32, #tpu.memory_space<smem>>
    %c164 = arith.constant 164 : index
    %164 = memref.load %arg1[%c164] : memref<321xf32, #tpu.memory_space<smem>>
    %c165 = arith.constant 165 : index
    %165 = memref.load %arg1[%c165] : memref<321xf32, #tpu.memory_space<smem>>
    %c166 = arith.constant 166 : index
    %166 = memref.load %arg1[%c166] : memref<321xf32, #tpu.memory_space<smem>>
    %c167 = arith.constant 167 : index
    %167 = memref.load %arg1[%c167] : memref<321xf32, #tpu.memory_space<smem>>
    %c168 = arith.constant 168 : index
    %168 = memref.load %arg1[%c168] : memref<321xf32, #tpu.memory_space<smem>>
    %c169 = arith.constant 169 : index
    %169 = memref.load %arg1[%c169] : memref<321xf32, #tpu.memory_space<smem>>
    %c170 = arith.constant 170 : index
    %170 = memref.load %arg1[%c170] : memref<321xf32, #tpu.memory_space<smem>>
    %c171 = arith.constant 171 : index
    %171 = memref.load %arg1[%c171] : memref<321xf32, #tpu.memory_space<smem>>
    %c172 = arith.constant 172 : index
    %172 = memref.load %arg1[%c172] : memref<321xf32, #tpu.memory_space<smem>>
    %c173 = arith.constant 173 : index
    %173 = memref.load %arg1[%c173] : memref<321xf32, #tpu.memory_space<smem>>
    %c174 = arith.constant 174 : index
    %174 = memref.load %arg1[%c174] : memref<321xf32, #tpu.memory_space<smem>>
    %c175 = arith.constant 175 : index
    %175 = memref.load %arg1[%c175] : memref<321xf32, #tpu.memory_space<smem>>
    %c176 = arith.constant 176 : index
    %176 = memref.load %arg1[%c176] : memref<321xf32, #tpu.memory_space<smem>>
    %c177 = arith.constant 177 : index
    %177 = memref.load %arg1[%c177] : memref<321xf32, #tpu.memory_space<smem>>
    %c178 = arith.constant 178 : index
    %178 = memref.load %arg1[%c178] : memref<321xf32, #tpu.memory_space<smem>>
    %c179 = arith.constant 179 : index
    %179 = memref.load %arg1[%c179] : memref<321xf32, #tpu.memory_space<smem>>
    %c180 = arith.constant 180 : index
    %180 = memref.load %arg1[%c180] : memref<321xf32, #tpu.memory_space<smem>>
    %c181 = arith.constant 181 : index
    %181 = memref.load %arg1[%c181] : memref<321xf32, #tpu.memory_space<smem>>
    %c182 = arith.constant 182 : index
    %182 = memref.load %arg1[%c182] : memref<321xf32, #tpu.memory_space<smem>>
    %c183 = arith.constant 183 : index
    %183 = memref.load %arg1[%c183] : memref<321xf32, #tpu.memory_space<smem>>
    %c184 = arith.constant 184 : index
    %184 = memref.load %arg1[%c184] : memref<321xf32, #tpu.memory_space<smem>>
    %c185 = arith.constant 185 : index
    %185 = memref.load %arg1[%c185] : memref<321xf32, #tpu.memory_space<smem>>
    %c186 = arith.constant 186 : index
    %186 = memref.load %arg1[%c186] : memref<321xf32, #tpu.memory_space<smem>>
    %c187 = arith.constant 187 : index
    %187 = memref.load %arg1[%c187] : memref<321xf32, #tpu.memory_space<smem>>
    %c188 = arith.constant 188 : index
    %188 = memref.load %arg1[%c188] : memref<321xf32, #tpu.memory_space<smem>>
    %c189 = arith.constant 189 : index
    %189 = memref.load %arg1[%c189] : memref<321xf32, #tpu.memory_space<smem>>
    %c190 = arith.constant 190 : index
    %190 = memref.load %arg1[%c190] : memref<321xf32, #tpu.memory_space<smem>>
    %c191 = arith.constant 191 : index
    %191 = memref.load %arg1[%c191] : memref<321xf32, #tpu.memory_space<smem>>
    %c192 = arith.constant 192 : index
    %192 = memref.load %arg1[%c192] : memref<321xf32, #tpu.memory_space<smem>>
    %c193 = arith.constant 193 : index
    %193 = memref.load %arg1[%c193] : memref<321xf32, #tpu.memory_space<smem>>
    %c194 = arith.constant 194 : index
    %194 = memref.load %arg1[%c194] : memref<321xf32, #tpu.memory_space<smem>>
    %c195 = arith.constant 195 : index
    %195 = memref.load %arg1[%c195] : memref<321xf32, #tpu.memory_space<smem>>
    %c196 = arith.constant 196 : index
    %196 = memref.load %arg1[%c196] : memref<321xf32, #tpu.memory_space<smem>>
    %c197 = arith.constant 197 : index
    %197 = memref.load %arg1[%c197] : memref<321xf32, #tpu.memory_space<smem>>
    %c198 = arith.constant 198 : index
    %198 = memref.load %arg1[%c198] : memref<321xf32, #tpu.memory_space<smem>>
    %c199 = arith.constant 199 : index
    %199 = memref.load %arg1[%c199] : memref<321xf32, #tpu.memory_space<smem>>
    %c200 = arith.constant 200 : index
    %200 = memref.load %arg1[%c200] : memref<321xf32, #tpu.memory_space<smem>>
    %c201 = arith.constant 201 : index
    %201 = memref.load %arg1[%c201] : memref<321xf32, #tpu.memory_space<smem>>
    %c202 = arith.constant 202 : index
    %202 = memref.load %arg1[%c202] : memref<321xf32, #tpu.memory_space<smem>>
    %c203 = arith.constant 203 : index
    %203 = memref.load %arg1[%c203] : memref<321xf32, #tpu.memory_space<smem>>
    %c204 = arith.constant 204 : index
    %204 = memref.load %arg1[%c204] : memref<321xf32, #tpu.memory_space<smem>>
    %c205 = arith.constant 205 : index
    %205 = memref.load %arg1[%c205] : memref<321xf32, #tpu.memory_space<smem>>
    %c206 = arith.constant 206 : index
    %206 = memref.load %arg1[%c206] : memref<321xf32, #tpu.memory_space<smem>>
    %c207 = arith.constant 207 : index
    %207 = memref.load %arg1[%c207] : memref<321xf32, #tpu.memory_space<smem>>
    %c208 = arith.constant 208 : index
    %208 = memref.load %arg1[%c208] : memref<321xf32, #tpu.memory_space<smem>>
    %c209 = arith.constant 209 : index
    %209 = memref.load %arg1[%c209] : memref<321xf32, #tpu.memory_space<smem>>
    %c210 = arith.constant 210 : index
    %210 = memref.load %arg1[%c210] : memref<321xf32, #tpu.memory_space<smem>>
    %c211 = arith.constant 211 : index
    %211 = memref.load %arg1[%c211] : memref<321xf32, #tpu.memory_space<smem>>
    %c212 = arith.constant 212 : index
    %212 = memref.load %arg1[%c212] : memref<321xf32, #tpu.memory_space<smem>>
    %c213 = arith.constant 213 : index
    %213 = memref.load %arg1[%c213] : memref<321xf32, #tpu.memory_space<smem>>
    %c214 = arith.constant 214 : index
    %214 = memref.load %arg1[%c214] : memref<321xf32, #tpu.memory_space<smem>>
    %c215 = arith.constant 215 : index
    %215 = memref.load %arg1[%c215] : memref<321xf32, #tpu.memory_space<smem>>
    %c216 = arith.constant 216 : index
    %216 = memref.load %arg1[%c216] : memref<321xf32, #tpu.memory_space<smem>>
    %c217 = arith.constant 217 : index
    %217 = memref.load %arg1[%c217] : memref<321xf32, #tpu.memory_space<smem>>
    %c218 = arith.constant 218 : index
    %218 = memref.load %arg1[%c218] : memref<321xf32, #tpu.memory_space<smem>>
    %c219 = arith.constant 219 : index
    %219 = memref.load %arg1[%c219] : memref<321xf32, #tpu.memory_space<smem>>
    %c220 = arith.constant 220 : index
    %220 = memref.load %arg1[%c220] : memref<321xf32, #tpu.memory_space<smem>>
    %c221 = arith.constant 221 : index
    %221 = memref.load %arg1[%c221] : memref<321xf32, #tpu.memory_space<smem>>
    %c222 = arith.constant 222 : index
    %222 = memref.load %arg1[%c222] : memref<321xf32, #tpu.memory_space<smem>>
    %c223 = arith.constant 223 : index
    %223 = memref.load %arg1[%c223] : memref<321xf32, #tpu.memory_space<smem>>
    %c224 = arith.constant 224 : index
    %224 = memref.load %arg1[%c224] : memref<321xf32, #tpu.memory_space<smem>>
    %c225 = arith.constant 225 : index
    %225 = memref.load %arg1[%c225] : memref<321xf32, #tpu.memory_space<smem>>
    %c226 = arith.constant 226 : index
    %226 = memref.load %arg1[%c226] : memref<321xf32, #tpu.memory_space<smem>>
    %c227 = arith.constant 227 : index
    %227 = memref.load %arg1[%c227] : memref<321xf32, #tpu.memory_space<smem>>
    %c228 = arith.constant 228 : index
    %228 = memref.load %arg1[%c228] : memref<321xf32, #tpu.memory_space<smem>>
    %c229 = arith.constant 229 : index
    %229 = memref.load %arg1[%c229] : memref<321xf32, #tpu.memory_space<smem>>
    %c230 = arith.constant 230 : index
    %230 = memref.load %arg1[%c230] : memref<321xf32, #tpu.memory_space<smem>>
    %c231 = arith.constant 231 : index
    %231 = memref.load %arg1[%c231] : memref<321xf32, #tpu.memory_space<smem>>
    %c232 = arith.constant 232 : index
    %232 = memref.load %arg1[%c232] : memref<321xf32, #tpu.memory_space<smem>>
    %c233 = arith.constant 233 : index
    %233 = memref.load %arg1[%c233] : memref<321xf32, #tpu.memory_space<smem>>
    %c234 = arith.constant 234 : index
    %234 = memref.load %arg1[%c234] : memref<321xf32, #tpu.memory_space<smem>>
    %c235 = arith.constant 235 : index
    %235 = memref.load %arg1[%c235] : memref<321xf32, #tpu.memory_space<smem>>
    %c236 = arith.constant 236 : index
    %236 = memref.load %arg1[%c236] : memref<321xf32, #tpu.memory_space<smem>>
    %c237 = arith.constant 237 : index
    %237 = memref.load %arg1[%c237] : memref<321xf32, #tpu.memory_space<smem>>
    %c238 = arith.constant 238 : index
    %238 = memref.load %arg1[%c238] : memref<321xf32, #tpu.memory_space<smem>>
    %c239 = arith.constant 239 : index
    %239 = memref.load %arg1[%c239] : memref<321xf32, #tpu.memory_space<smem>>
    %c240 = arith.constant 240 : index
    %240 = memref.load %arg1[%c240] : memref<321xf32, #tpu.memory_space<smem>>
    %c241 = arith.constant 241 : index
    %241 = memref.load %arg1[%c241] : memref<321xf32, #tpu.memory_space<smem>>
    %c242 = arith.constant 242 : index
    %242 = memref.load %arg1[%c242] : memref<321xf32, #tpu.memory_space<smem>>
    %c243 = arith.constant 243 : index
    %243 = memref.load %arg1[%c243] : memref<321xf32, #tpu.memory_space<smem>>
    %c244 = arith.constant 244 : index
    %244 = memref.load %arg1[%c244] : memref<321xf32, #tpu.memory_space<smem>>
    %c245 = arith.constant 245 : index
    %245 = memref.load %arg1[%c245] : memref<321xf32, #tpu.memory_space<smem>>
    %c246 = arith.constant 246 : index
    %246 = memref.load %arg1[%c246] : memref<321xf32, #tpu.memory_space<smem>>
    %c247 = arith.constant 247 : index
    %247 = memref.load %arg1[%c247] : memref<321xf32, #tpu.memory_space<smem>>
    %c248 = arith.constant 248 : index
    %248 = memref.load %arg1[%c248] : memref<321xf32, #tpu.memory_space<smem>>
    %c249 = arith.constant 249 : index
    %249 = memref.load %arg1[%c249] : memref<321xf32, #tpu.memory_space<smem>>
    %c250 = arith.constant 250 : index
    %250 = memref.load %arg1[%c250] : memref<321xf32, #tpu.memory_space<smem>>
    %c251 = arith.constant 251 : index
    %251 = memref.load %arg1[%c251] : memref<321xf32, #tpu.memory_space<smem>>
    %c252 = arith.constant 252 : index
    %252 = memref.load %arg1[%c252] : memref<321xf32, #tpu.memory_space<smem>>
    %c253 = arith.constant 253 : index
    %253 = memref.load %arg1[%c253] : memref<321xf32, #tpu.memory_space<smem>>
    %c254 = arith.constant 254 : index
    %254 = memref.load %arg1[%c254] : memref<321xf32, #tpu.memory_space<smem>>
    %c255 = arith.constant 255 : index
    %255 = memref.load %arg1[%c255] : memref<321xf32, #tpu.memory_space<smem>>
    %c256 = arith.constant 256 : index
    %256 = memref.load %arg1[%c256] : memref<321xf32, #tpu.memory_space<smem>>
    %c257 = arith.constant 257 : index
    %257 = memref.load %arg1[%c257] : memref<321xf32, #tpu.memory_space<smem>>
    %c258 = arith.constant 258 : index
    %258 = memref.load %arg1[%c258] : memref<321xf32, #tpu.memory_space<smem>>
    %c259 = arith.constant 259 : index
    %259 = memref.load %arg1[%c259] : memref<321xf32, #tpu.memory_space<smem>>
    %c260 = arith.constant 260 : index
    %260 = memref.load %arg1[%c260] : memref<321xf32, #tpu.memory_space<smem>>
    %c261 = arith.constant 261 : index
    %261 = memref.load %arg1[%c261] : memref<321xf32, #tpu.memory_space<smem>>
    %c262 = arith.constant 262 : index
    %262 = memref.load %arg1[%c262] : memref<321xf32, #tpu.memory_space<smem>>
    %c263 = arith.constant 263 : index
    %263 = memref.load %arg1[%c263] : memref<321xf32, #tpu.memory_space<smem>>
    %c264 = arith.constant 264 : index
    %264 = memref.load %arg1[%c264] : memref<321xf32, #tpu.memory_space<smem>>
    %c265 = arith.constant 265 : index
    %265 = memref.load %arg1[%c265] : memref<321xf32, #tpu.memory_space<smem>>
    %c266 = arith.constant 266 : index
    %266 = memref.load %arg1[%c266] : memref<321xf32, #tpu.memory_space<smem>>
    %c267 = arith.constant 267 : index
    %267 = memref.load %arg1[%c267] : memref<321xf32, #tpu.memory_space<smem>>
    %c268 = arith.constant 268 : index
    %268 = memref.load %arg1[%c268] : memref<321xf32, #tpu.memory_space<smem>>
    %c269 = arith.constant 269 : index
    %269 = memref.load %arg1[%c269] : memref<321xf32, #tpu.memory_space<smem>>
    %c270 = arith.constant 270 : index
    %270 = memref.load %arg1[%c270] : memref<321xf32, #tpu.memory_space<smem>>
    %c271 = arith.constant 271 : index
    %271 = memref.load %arg1[%c271] : memref<321xf32, #tpu.memory_space<smem>>
    %c272 = arith.constant 272 : index
    %272 = memref.load %arg1[%c272] : memref<321xf32, #tpu.memory_space<smem>>
    %c273 = arith.constant 273 : index
    %273 = memref.load %arg1[%c273] : memref<321xf32, #tpu.memory_space<smem>>
    %c274 = arith.constant 274 : index
    %274 = memref.load %arg1[%c274] : memref<321xf32, #tpu.memory_space<smem>>
    %c275 = arith.constant 275 : index
    %275 = memref.load %arg1[%c275] : memref<321xf32, #tpu.memory_space<smem>>
    %c276 = arith.constant 276 : index
    %276 = memref.load %arg1[%c276] : memref<321xf32, #tpu.memory_space<smem>>
    %c277 = arith.constant 277 : index
    %277 = memref.load %arg1[%c277] : memref<321xf32, #tpu.memory_space<smem>>
    %c278 = arith.constant 278 : index
    %278 = memref.load %arg1[%c278] : memref<321xf32, #tpu.memory_space<smem>>
    %c279 = arith.constant 279 : index
    %279 = memref.load %arg1[%c279] : memref<321xf32, #tpu.memory_space<smem>>
    %c280 = arith.constant 280 : index
    %280 = memref.load %arg1[%c280] : memref<321xf32, #tpu.memory_space<smem>>
    %c281 = arith.constant 281 : index
    %281 = memref.load %arg1[%c281] : memref<321xf32, #tpu.memory_space<smem>>
    %c282 = arith.constant 282 : index
    %282 = memref.load %arg1[%c282] : memref<321xf32, #tpu.memory_space<smem>>
    %c283 = arith.constant 283 : index
    %283 = memref.load %arg1[%c283] : memref<321xf32, #tpu.memory_space<smem>>
    %c284 = arith.constant 284 : index
    %284 = memref.load %arg1[%c284] : memref<321xf32, #tpu.memory_space<smem>>
    %c285 = arith.constant 285 : index
    %285 = memref.load %arg1[%c285] : memref<321xf32, #tpu.memory_space<smem>>
    %c286 = arith.constant 286 : index
    %286 = memref.load %arg1[%c286] : memref<321xf32, #tpu.memory_space<smem>>
    %c287 = arith.constant 287 : index
    %287 = memref.load %arg1[%c287] : memref<321xf32, #tpu.memory_space<smem>>
    %c288 = arith.constant 288 : index
    %288 = memref.load %arg1[%c288] : memref<321xf32, #tpu.memory_space<smem>>
    %c289 = arith.constant 289 : index
    %289 = memref.load %arg1[%c289] : memref<321xf32, #tpu.memory_space<smem>>
    %c290 = arith.constant 290 : index
    %290 = memref.load %arg1[%c290] : memref<321xf32, #tpu.memory_space<smem>>
    %c291 = arith.constant 291 : index
    %291 = memref.load %arg1[%c291] : memref<321xf32, #tpu.memory_space<smem>>
    %c292 = arith.constant 292 : index
    %292 = memref.load %arg1[%c292] : memref<321xf32, #tpu.memory_space<smem>>
    %c293 = arith.constant 293 : index
    %293 = memref.load %arg1[%c293] : memref<321xf32, #tpu.memory_space<smem>>
    %c294 = arith.constant 294 : index
    %294 = memref.load %arg1[%c294] : memref<321xf32, #tpu.memory_space<smem>>
    %c295 = arith.constant 295 : index
    %295 = memref.load %arg1[%c295] : memref<321xf32, #tpu.memory_space<smem>>
    %c296 = arith.constant 296 : index
    %296 = memref.load %arg1[%c296] : memref<321xf32, #tpu.memory_space<smem>>
    %c297 = arith.constant 297 : index
    %297 = memref.load %arg1[%c297] : memref<321xf32, #tpu.memory_space<smem>>
    %c298 = arith.constant 298 : index
    %298 = memref.load %arg1[%c298] : memref<321xf32, #tpu.memory_space<smem>>
    %c299 = arith.constant 299 : index
    %299 = memref.load %arg1[%c299] : memref<321xf32, #tpu.memory_space<smem>>
    %c300 = arith.constant 300 : index
    %300 = memref.load %arg1[%c300] : memref<321xf32, #tpu.memory_space<smem>>
    %c301 = arith.constant 301 : index
    %301 = memref.load %arg1[%c301] : memref<321xf32, #tpu.memory_space<smem>>
    %c302 = arith.constant 302 : index
    %302 = memref.load %arg1[%c302] : memref<321xf32, #tpu.memory_space<smem>>
    %c303 = arith.constant 303 : index
    %303 = memref.load %arg1[%c303] : memref<321xf32, #tpu.memory_space<smem>>
    %c304 = arith.constant 304 : index
    %304 = memref.load %arg1[%c304] : memref<321xf32, #tpu.memory_space<smem>>
    %c305 = arith.constant 305 : index
    %305 = memref.load %arg1[%c305] : memref<321xf32, #tpu.memory_space<smem>>
    %c306 = arith.constant 306 : index
    %306 = memref.load %arg1[%c306] : memref<321xf32, #tpu.memory_space<smem>>
    %c307 = arith.constant 307 : index
    %307 = memref.load %arg1[%c307] : memref<321xf32, #tpu.memory_space<smem>>
    %c308 = arith.constant 308 : index
    %308 = memref.load %arg1[%c308] : memref<321xf32, #tpu.memory_space<smem>>
    %c309 = arith.constant 309 : index
    %309 = memref.load %arg1[%c309] : memref<321xf32, #tpu.memory_space<smem>>
    %c310 = arith.constant 310 : index
    %310 = memref.load %arg1[%c310] : memref<321xf32, #tpu.memory_space<smem>>
    %c311 = arith.constant 311 : index
    %311 = memref.load %arg1[%c311] : memref<321xf32, #tpu.memory_space<smem>>
    %c312 = arith.constant 312 : index
    %312 = memref.load %arg1[%c312] : memref<321xf32, #tpu.memory_space<smem>>
    %c313 = arith.constant 313 : index
    %313 = memref.load %arg1[%c313] : memref<321xf32, #tpu.memory_space<smem>>
    %c314 = arith.constant 314 : index
    %314 = memref.load %arg1[%c314] : memref<321xf32, #tpu.memory_space<smem>>
    %c315 = arith.constant 315 : index
    %315 = memref.load %arg1[%c315] : memref<321xf32, #tpu.memory_space<smem>>
    %c316 = arith.constant 316 : index
    %316 = memref.load %arg1[%c316] : memref<321xf32, #tpu.memory_space<smem>>
    %c317 = arith.constant 317 : index
    %317 = memref.load %arg1[%c317] : memref<321xf32, #tpu.memory_space<smem>>
    %c318 = arith.constant 318 : index
    %318 = memref.load %arg1[%c318] : memref<321xf32, #tpu.memory_space<smem>>
    %c319 = arith.constant 319 : index
    %319 = memref.load %arg1[%c319] : memref<321xf32, #tpu.memory_space<smem>>
    %c320 = arith.constant 320 : index
    %320 = memref.load %arg1[%c320] : memref<321xf32, #tpu.memory_space<smem>>
    %c0_i32 = arith.constant 0 : i32
    %c1_i32 = arith.constant 1 : i32
    %321 = arith.muli %c0_i32, %c1_i32 : i32
    %c0_i32_0 = arith.constant 0 : i32
    %322 = arith.addi %c0_i32_0, %321 : i32
    %c16_i32 = arith.constant 16 : i32
    %323 = arith.muli %322, %c16_i32 : i32
    %324 = tpu.assume_multiple %323, 16 : i32
    %325 = arith.index_cast %324 : i32 to index
    %c0_1 = arith.constant 0 : index
    %326 = vector.load %arg2[%325, %c0_1] : memref<16x128xf32, #tpu.memory_space<vmem>>, vector<16x128xf32>
    %327 = arith.index_cast %324 : i32 to index
    %c0_2 = arith.constant 0 : index
    %328 = vector.load %arg3[%327, %c0_2] : memref<16x128xf32, #tpu.memory_space<vmem>>, vector<16x128xf32>
    %329 = vector.broadcast %0 : f32 to vector<16x128xf32>
    %330 = arith.mulf %326, %329 : vector<16x128xf32>
    %331 = vector.broadcast %8 : f32 to vector<16x128xf32>
    %332 = arith.mulf %328, %331 : vector<16x128xf32>
    %333 = arith.addf %330, %332 : vector<16x128xf32>
    %334 = vector.broadcast %16 : f32 to vector<16x128xf32>
    %335 = arith.addf %333, %334 : vector<16x128xf32>
    %336 = math.tanh %335 : vector<16x128xf32>
    %337 = vector.broadcast %1 : f32 to vector<16x128xf32>
    %338 = arith.mulf %326, %337 : vector<16x128xf32>
    %339 = vector.broadcast %9 : f32 to vector<16x128xf32>
    %340 = arith.mulf %328, %339 : vector<16x128xf32>
    %341 = arith.addf %338, %340 : vector<16x128xf32>
    %342 = vector.broadcast %17 : f32 to vector<16x128xf32>
    %343 = arith.addf %341, %342 : vector<16x128xf32>
    %344 = math.tanh %343 : vector<16x128xf32>
    %345 = vector.broadcast %2 : f32 to vector<16x128xf32>
    %346 = arith.mulf %326, %345 : vector<16x128xf32>
    %347 = vector.broadcast %10 : f32 to vector<16x128xf32>
    %348 = arith.mulf %328, %347 : vector<16x128xf32>
    %349 = arith.addf %346, %348 : vector<16x128xf32>
    %350 = vector.broadcast %18 : f32 to vector<16x128xf32>
    %351 = arith.addf %349, %350 : vector<16x128xf32>
    %352 = math.tanh %351 : vector<16x128xf32>
    %353 = vector.broadcast %3 : f32 to vector<16x128xf32>
    %354 = arith.mulf %326, %353 : vector<16x128xf32>
    %355 = vector.broadcast %11 : f32 to vector<16x128xf32>
    %356 = arith.mulf %328, %355 : vector<16x128xf32>
    %357 = arith.addf %354, %356 : vector<16x128xf32>
    %358 = vector.broadcast %19 : f32 to vector<16x128xf32>
    %359 = arith.addf %357, %358 : vector<16x128xf32>
    %360 = math.tanh %359 : vector<16x128xf32>
    %361 = vector.broadcast %4 : f32 to vector<16x128xf32>
    %362 = arith.mulf %326, %361 : vector<16x128xf32>
    %363 = vector.broadcast %12 : f32 to vector<16x128xf32>
    %364 = arith.mulf %328, %363 : vector<16x128xf32>
    %365 = arith.addf %362, %364 : vector<16x128xf32>
    %366 = vector.broadcast %20 : f32 to vector<16x128xf32>
    %367 = arith.addf %365, %366 : vector<16x128xf32>
    %368 = math.tanh %367 : vector<16x128xf32>
    %369 = vector.broadcast %5 : f32 to vector<16x128xf32>
    %370 = arith.mulf %326, %369 : vector<16x128xf32>
    %371 = vector.broadcast %13 : f32 to vector<16x128xf32>
    %372 = arith.mulf %328, %371 : vector<16x128xf32>
    %373 = arith.addf %370, %372 : vector<16x128xf32>
    %374 = vector.broadcast %21 : f32 to vector<16x128xf32>
    %375 = arith.addf %373, %374 : vector<16x128xf32>
    %376 = math.tanh %375 : vector<16x128xf32>
    %377 = vector.broadcast %6 : f32 to vector<16x128xf32>
    %378 = arith.mulf %326, %377 : vector<16x128xf32>
    %379 = vector.broadcast %14 : f32 to vector<16x128xf32>
    %380 = arith.mulf %328, %379 : vector<16x128xf32>
    %381 = arith.addf %378, %380 : vector<16x128xf32>
    %382 = vector.broadcast %22 : f32 to vector<16x128xf32>
    %383 = arith.addf %381, %382 : vector<16x128xf32>
    %384 = math.tanh %383 : vector<16x128xf32>
    %385 = vector.broadcast %7 : f32 to vector<16x128xf32>
    %386 = arith.mulf %326, %385 : vector<16x128xf32>
    %387 = vector.broadcast %15 : f32 to vector<16x128xf32>
    %388 = arith.mulf %328, %387 : vector<16x128xf32>
    %389 = arith.addf %386, %388 : vector<16x128xf32>
    %390 = vector.broadcast %23 : f32 to vector<16x128xf32>
    %391 = arith.addf %389, %390 : vector<16x128xf32>
    %392 = math.tanh %391 : vector<16x128xf32>
    %393 = vector.broadcast %24 : f32 to vector<16x128xf32>
    %394 = arith.mulf %336, %393 : vector<16x128xf32>
    %395 = vector.broadcast %32 : f32 to vector<16x128xf32>
    %396 = arith.mulf %344, %395 : vector<16x128xf32>
    %397 = arith.addf %394, %396 : vector<16x128xf32>
    %398 = vector.broadcast %40 : f32 to vector<16x128xf32>
    %399 = arith.mulf %352, %398 : vector<16x128xf32>
    %400 = arith.addf %397, %399 : vector<16x128xf32>
    %401 = vector.broadcast %48 : f32 to vector<16x128xf32>
    %402 = arith.mulf %360, %401 : vector<16x128xf32>
    %403 = arith.addf %400, %402 : vector<16x128xf32>
    %404 = vector.broadcast %56 : f32 to vector<16x128xf32>
    %405 = arith.mulf %368, %404 : vector<16x128xf32>
    %406 = arith.addf %403, %405 : vector<16x128xf32>
    %407 = vector.broadcast %64 : f32 to vector<16x128xf32>
    %408 = arith.mulf %376, %407 : vector<16x128xf32>
    %409 = arith.addf %406, %408 : vector<16x128xf32>
    %410 = vector.broadcast %72 : f32 to vector<16x128xf32>
    %411 = arith.mulf %384, %410 : vector<16x128xf32>
    %412 = arith.addf %409, %411 : vector<16x128xf32>
    %413 = vector.broadcast %80 : f32 to vector<16x128xf32>
    %414 = arith.mulf %392, %413 : vector<16x128xf32>
    %415 = arith.addf %412, %414 : vector<16x128xf32>
    %416 = vector.broadcast %88 : f32 to vector<16x128xf32>
    %417 = arith.addf %415, %416 : vector<16x128xf32>
    %418 = math.tanh %417 : vector<16x128xf32>
    %419 = vector.broadcast %25 : f32 to vector<16x128xf32>
    %420 = arith.mulf %336, %419 : vector<16x128xf32>
    %421 = vector.broadcast %33 : f32 to vector<16x128xf32>
    %422 = arith.mulf %344, %421 : vector<16x128xf32>
    %423 = arith.addf %420, %422 : vector<16x128xf32>
    %424 = vector.broadcast %41 : f32 to vector<16x128xf32>
    %425 = arith.mulf %352, %424 : vector<16x128xf32>
    %426 = arith.addf %423, %425 : vector<16x128xf32>
    %427 = vector.broadcast %49 : f32 to vector<16x128xf32>
    %428 = arith.mulf %360, %427 : vector<16x128xf32>
    %429 = arith.addf %426, %428 : vector<16x128xf32>
    %430 = vector.broadcast %57 : f32 to vector<16x128xf32>
    %431 = arith.mulf %368, %430 : vector<16x128xf32>
    %432 = arith.addf %429, %431 : vector<16x128xf32>
    %433 = vector.broadcast %65 : f32 to vector<16x128xf32>
    %434 = arith.mulf %376, %433 : vector<16x128xf32>
    %435 = arith.addf %432, %434 : vector<16x128xf32>
    %436 = vector.broadcast %73 : f32 to vector<16x128xf32>
    %437 = arith.mulf %384, %436 : vector<16x128xf32>
    %438 = arith.addf %435, %437 : vector<16x128xf32>
    %439 = vector.broadcast %81 : f32 to vector<16x128xf32>
    %440 = arith.mulf %392, %439 : vector<16x128xf32>
    %441 = arith.addf %438, %440 : vector<16x128xf32>
    %442 = vector.broadcast %89 : f32 to vector<16x128xf32>
    %443 = arith.addf %441, %442 : vector<16x128xf32>
    %444 = math.tanh %443 : vector<16x128xf32>
    %445 = vector.broadcast %26 : f32 to vector<16x128xf32>
    %446 = arith.mulf %336, %445 : vector<16x128xf32>
    %447 = vector.broadcast %34 : f32 to vector<16x128xf32>
    %448 = arith.mulf %344, %447 : vector<16x128xf32>
    %449 = arith.addf %446, %448 : vector<16x128xf32>
    %450 = vector.broadcast %42 : f32 to vector<16x128xf32>
    %451 = arith.mulf %352, %450 : vector<16x128xf32>
    %452 = arith.addf %449, %451 : vector<16x128xf32>
    %453 = vector.broadcast %50 : f32 to vector<16x128xf32>
    %454 = arith.mulf %360, %453 : vector<16x128xf32>
    %455 = arith.addf %452, %454 : vector<16x128xf32>
    %456 = vector.broadcast %58 : f32 to vector<16x128xf32>
    %457 = arith.mulf %368, %456 : vector<16x128xf32>
    %458 = arith.addf %455, %457 : vector<16x128xf32>
    %459 = vector.broadcast %66 : f32 to vector<16x128xf32>
    %460 = arith.mulf %376, %459 : vector<16x128xf32>
    %461 = arith.addf %458, %460 : vector<16x128xf32>
    %462 = vector.broadcast %74 : f32 to vector<16x128xf32>
    %463 = arith.mulf %384, %462 : vector<16x128xf32>
    %464 = arith.addf %461, %463 : vector<16x128xf32>
    %465 = vector.broadcast %82 : f32 to vector<16x128xf32>
    %466 = arith.mulf %392, %465 : vector<16x128xf32>
    %467 = arith.addf %464, %466 : vector<16x128xf32>
    %468 = vector.broadcast %90 : f32 to vector<16x128xf32>
    %469 = arith.addf %467, %468 : vector<16x128xf32>
    %470 = math.tanh %469 : vector<16x128xf32>
    %471 = vector.broadcast %27 : f32 to vector<16x128xf32>
    %472 = arith.mulf %336, %471 : vector<16x128xf32>
    %473 = vector.broadcast %35 : f32 to vector<16x128xf32>
    %474 = arith.mulf %344, %473 : vector<16x128xf32>
    %475 = arith.addf %472, %474 : vector<16x128xf32>
    %476 = vector.broadcast %43 : f32 to vector<16x128xf32>
    %477 = arith.mulf %352, %476 : vector<16x128xf32>
    %478 = arith.addf %475, %477 : vector<16x128xf32>
    %479 = vector.broadcast %51 : f32 to vector<16x128xf32>
    %480 = arith.mulf %360, %479 : vector<16x128xf32>
    %481 = arith.addf %478, %480 : vector<16x128xf32>
    %482 = vector.broadcast %59 : f32 to vector<16x128xf32>
    %483 = arith.mulf %368, %482 : vector<16x128xf32>
    %484 = arith.addf %481, %483 : vector<16x128xf32>
    %485 = vector.broadcast %67 : f32 to vector<16x128xf32>
    %486 = arith.mulf %376, %485 : vector<16x128xf32>
    %487 = arith.addf %484, %486 : vector<16x128xf32>
    %488 = vector.broadcast %75 : f32 to vector<16x128xf32>
    %489 = arith.mulf %384, %488 : vector<16x128xf32>
    %490 = arith.addf %487, %489 : vector<16x128xf32>
    %491 = vector.broadcast %83 : f32 to vector<16x128xf32>
    %492 = arith.mulf %392, %491 : vector<16x128xf32>
    %493 = arith.addf %490, %492 : vector<16x128xf32>
    %494 = vector.broadcast %91 : f32 to vector<16x128xf32>
    %495 = arith.addf %493, %494 : vector<16x128xf32>
    %496 = math.tanh %495 : vector<16x128xf32>
    %497 = vector.broadcast %28 : f32 to vector<16x128xf32>
    %498 = arith.mulf %336, %497 : vector<16x128xf32>
    %499 = vector.broadcast %36 : f32 to vector<16x128xf32>
    %500 = arith.mulf %344, %499 : vector<16x128xf32>
    %501 = arith.addf %498, %500 : vector<16x128xf32>
    %502 = vector.broadcast %44 : f32 to vector<16x128xf32>
    %503 = arith.mulf %352, %502 : vector<16x128xf32>
    %504 = arith.addf %501, %503 : vector<16x128xf32>
    %505 = vector.broadcast %52 : f32 to vector<16x128xf32>
    %506 = arith.mulf %360, %505 : vector<16x128xf32>
    %507 = arith.addf %504, %506 : vector<16x128xf32>
    %508 = vector.broadcast %60 : f32 to vector<16x128xf32>
    %509 = arith.mulf %368, %508 : vector<16x128xf32>
    %510 = arith.addf %507, %509 : vector<16x128xf32>
    %511 = vector.broadcast %68 : f32 to vector<16x128xf32>
    %512 = arith.mulf %376, %511 : vector<16x128xf32>
    %513 = arith.addf %510, %512 : vector<16x128xf32>
    %514 = vector.broadcast %76 : f32 to vector<16x128xf32>
    %515 = arith.mulf %384, %514 : vector<16x128xf32>
    %516 = arith.addf %513, %515 : vector<16x128xf32>
    %517 = vector.broadcast %84 : f32 to vector<16x128xf32>
    %518 = arith.mulf %392, %517 : vector<16x128xf32>
    %519 = arith.addf %516, %518 : vector<16x128xf32>
    %520 = vector.broadcast %92 : f32 to vector<16x128xf32>
    %521 = arith.addf %519, %520 : vector<16x128xf32>
    %522 = math.tanh %521 : vector<16x128xf32>
    %523 = vector.broadcast %29 : f32 to vector<16x128xf32>
    %524 = arith.mulf %336, %523 : vector<16x128xf32>
    %525 = vector.broadcast %37 : f32 to vector<16x128xf32>
    %526 = arith.mulf %344, %525 : vector<16x128xf32>
    %527 = arith.addf %524, %526 : vector<16x128xf32>
    %528 = vector.broadcast %45 : f32 to vector<16x128xf32>
    %529 = arith.mulf %352, %528 : vector<16x128xf32>
    %530 = arith.addf %527, %529 : vector<16x128xf32>
    %531 = vector.broadcast %53 : f32 to vector<16x128xf32>
    %532 = arith.mulf %360, %531 : vector<16x128xf32>
    %533 = arith.addf %530, %532 : vector<16x128xf32>
    %534 = vector.broadcast %61 : f32 to vector<16x128xf32>
    %535 = arith.mulf %368, %534 : vector<16x128xf32>
    %536 = arith.addf %533, %535 : vector<16x128xf32>
    %537 = vector.broadcast %69 : f32 to vector<16x128xf32>
    %538 = arith.mulf %376, %537 : vector<16x128xf32>
    %539 = arith.addf %536, %538 : vector<16x128xf32>
    %540 = vector.broadcast %77 : f32 to vector<16x128xf32>
    %541 = arith.mulf %384, %540 : vector<16x128xf32>
    %542 = arith.addf %539, %541 : vector<16x128xf32>
    %543 = vector.broadcast %85 : f32 to vector<16x128xf32>
    %544 = arith.mulf %392, %543 : vector<16x128xf32>
    %545 = arith.addf %542, %544 : vector<16x128xf32>
    %546 = vector.broadcast %93 : f32 to vector<16x128xf32>
    %547 = arith.addf %545, %546 : vector<16x128xf32>
    %548 = math.tanh %547 : vector<16x128xf32>
    %549 = vector.broadcast %30 : f32 to vector<16x128xf32>
    %550 = arith.mulf %336, %549 : vector<16x128xf32>
    %551 = vector.broadcast %38 : f32 to vector<16x128xf32>
    %552 = arith.mulf %344, %551 : vector<16x128xf32>
    %553 = arith.addf %550, %552 : vector<16x128xf32>
    %554 = vector.broadcast %46 : f32 to vector<16x128xf32>
    %555 = arith.mulf %352, %554 : vector<16x128xf32>
    %556 = arith.addf %553, %555 : vector<16x128xf32>
    %557 = vector.broadcast %54 : f32 to vector<16x128xf32>
    %558 = arith.mulf %360, %557 : vector<16x128xf32>
    %559 = arith.addf %556, %558 : vector<16x128xf32>
    %560 = vector.broadcast %62 : f32 to vector<16x128xf32>
    %561 = arith.mulf %368, %560 : vector<16x128xf32>
    %562 = arith.addf %559, %561 : vector<16x128xf32>
    %563 = vector.broadcast %70 : f32 to vector<16x128xf32>
    %564 = arith.mulf %376, %563 : vector<16x128xf32>
    %565 = arith.addf %562, %564 : vector<16x128xf32>
    %566 = vector.broadcast %78 : f32 to vector<16x128xf32>
    %567 = arith.mulf %384, %566 : vector<16x128xf32>
    %568 = arith.addf %565, %567 : vector<16x128xf32>
    %569 = vector.broadcast %86 : f32 to vector<16x128xf32>
    %570 = arith.mulf %392, %569 : vector<16x128xf32>
    %571 = arith.addf %568, %570 : vector<16x128xf32>
    %572 = vector.broadcast %94 : f32 to vector<16x128xf32>
    %573 = arith.addf %571, %572 : vector<16x128xf32>
    %574 = math.tanh %573 : vector<16x128xf32>
    %575 = vector.broadcast %31 : f32 to vector<16x128xf32>
    %576 = arith.mulf %336, %575 : vector<16x128xf32>
    %577 = vector.broadcast %39 : f32 to vector<16x128xf32>
    %578 = arith.mulf %344, %577 : vector<16x128xf32>
    %579 = arith.addf %576, %578 : vector<16x128xf32>
    %580 = vector.broadcast %47 : f32 to vector<16x128xf32>
    %581 = arith.mulf %352, %580 : vector<16x128xf32>
    %582 = arith.addf %579, %581 : vector<16x128xf32>
    %583 = vector.broadcast %55 : f32 to vector<16x128xf32>
    %584 = arith.mulf %360, %583 : vector<16x128xf32>
    %585 = arith.addf %582, %584 : vector<16x128xf32>
    %586 = vector.broadcast %63 : f32 to vector<16x128xf32>
    %587 = arith.mulf %368, %586 : vector<16x128xf32>
    %588 = arith.addf %585, %587 : vector<16x128xf32>
    %589 = vector.broadcast %71 : f32 to vector<16x128xf32>
    %590 = arith.mulf %376, %589 : vector<16x128xf32>
    %591 = arith.addf %588, %590 : vector<16x128xf32>
    %592 = vector.broadcast %79 : f32 to vector<16x128xf32>
    %593 = arith.mulf %384, %592 : vector<16x128xf32>
    %594 = arith.addf %591, %593 : vector<16x128xf32>
    %595 = vector.broadcast %87 : f32 to vector<16x128xf32>
    %596 = arith.mulf %392, %595 : vector<16x128xf32>
    %597 = arith.addf %594, %596 : vector<16x128xf32>
    %598 = vector.broadcast %95 : f32 to vector<16x128xf32>
    %599 = arith.addf %597, %598 : vector<16x128xf32>
    %600 = math.tanh %599 : vector<16x128xf32>
    %601 = vector.broadcast %96 : f32 to vector<16x128xf32>
    %602 = arith.mulf %418, %601 : vector<16x128xf32>
    %603 = vector.broadcast %104 : f32 to vector<16x128xf32>
    %604 = arith.mulf %444, %603 : vector<16x128xf32>
    %605 = arith.addf %602, %604 : vector<16x128xf32>
    %606 = vector.broadcast %112 : f32 to vector<16x128xf32>
    %607 = arith.mulf %470, %606 : vector<16x128xf32>
    %608 = arith.addf %605, %607 : vector<16x128xf32>
    %609 = vector.broadcast %120 : f32 to vector<16x128xf32>
    %610 = arith.mulf %496, %609 : vector<16x128xf32>
    %611 = arith.addf %608, %610 : vector<16x128xf32>
    %612 = vector.broadcast %128 : f32 to vector<16x128xf32>
    %613 = arith.mulf %522, %612 : vector<16x128xf32>
    %614 = arith.addf %611, %613 : vector<16x128xf32>
    %615 = vector.broadcast %136 : f32 to vector<16x128xf32>
    %616 = arith.mulf %548, %615 : vector<16x128xf32>
    %617 = arith.addf %614, %616 : vector<16x128xf32>
    %618 = vector.broadcast %144 : f32 to vector<16x128xf32>
    %619 = arith.mulf %574, %618 : vector<16x128xf32>
    %620 = arith.addf %617, %619 : vector<16x128xf32>
    %621 = vector.broadcast %152 : f32 to vector<16x128xf32>
    %622 = arith.mulf %600, %621 : vector<16x128xf32>
    %623 = arith.addf %620, %622 : vector<16x128xf32>
    %624 = vector.broadcast %160 : f32 to vector<16x128xf32>
    %625 = arith.addf %623, %624 : vector<16x128xf32>
    %626 = math.tanh %625 : vector<16x128xf32>
    %627 = vector.broadcast %97 : f32 to vector<16x128xf32>
    %628 = arith.mulf %418, %627 : vector<16x128xf32>
    %629 = vector.broadcast %105 : f32 to vector<16x128xf32>
    %630 = arith.mulf %444, %629 : vector<16x128xf32>
    %631 = arith.addf %628, %630 : vector<16x128xf32>
    %632 = vector.broadcast %113 : f32 to vector<16x128xf32>
    %633 = arith.mulf %470, %632 : vector<16x128xf32>
    %634 = arith.addf %631, %633 : vector<16x128xf32>
    %635 = vector.broadcast %121 : f32 to vector<16x128xf32>
    %636 = arith.mulf %496, %635 : vector<16x128xf32>
    %637 = arith.addf %634, %636 : vector<16x128xf32>
    %638 = vector.broadcast %129 : f32 to vector<16x128xf32>
    %639 = arith.mulf %522, %638 : vector<16x128xf32>
    %640 = arith.addf %637, %639 : vector<16x128xf32>
    %641 = vector.broadcast %137 : f32 to vector<16x128xf32>
    %642 = arith.mulf %548, %641 : vector<16x128xf32>
    %643 = arith.addf %640, %642 : vector<16x128xf32>
    %644 = vector.broadcast %145 : f32 to vector<16x128xf32>
    %645 = arith.mulf %574, %644 : vector<16x128xf32>
    %646 = arith.addf %643, %645 : vector<16x128xf32>
    %647 = vector.broadcast %153 : f32 to vector<16x128xf32>
    %648 = arith.mulf %600, %647 : vector<16x128xf32>
    %649 = arith.addf %646, %648 : vector<16x128xf32>
    %650 = vector.broadcast %161 : f32 to vector<16x128xf32>
    %651 = arith.addf %649, %650 : vector<16x128xf32>
    %652 = math.tanh %651 : vector<16x128xf32>
    %653 = vector.broadcast %98 : f32 to vector<16x128xf32>
    %654 = arith.mulf %418, %653 : vector<16x128xf32>
    %655 = vector.broadcast %106 : f32 to vector<16x128xf32>
    %656 = arith.mulf %444, %655 : vector<16x128xf32>
    %657 = arith.addf %654, %656 : vector<16x128xf32>
    %658 = vector.broadcast %114 : f32 to vector<16x128xf32>
    %659 = arith.mulf %470, %658 : vector<16x128xf32>
    %660 = arith.addf %657, %659 : vector<16x128xf32>
    %661 = vector.broadcast %122 : f32 to vector<16x128xf32>
    %662 = arith.mulf %496, %661 : vector<16x128xf32>
    %663 = arith.addf %660, %662 : vector<16x128xf32>
    %664 = vector.broadcast %130 : f32 to vector<16x128xf32>
    %665 = arith.mulf %522, %664 : vector<16x128xf32>
    %666 = arith.addf %663, %665 : vector<16x128xf32>
    %667 = vector.broadcast %138 : f32 to vector<16x128xf32>
    %668 = arith.mulf %548, %667 : vector<16x128xf32>
    %669 = arith.addf %666, %668 : vector<16x128xf32>
    %670 = vector.broadcast %146 : f32 to vector<16x128xf32>
    %671 = arith.mulf %574, %670 : vector<16x128xf32>
    %672 = arith.addf %669, %671 : vector<16x128xf32>
    %673 = vector.broadcast %154 : f32 to vector<16x128xf32>
    %674 = arith.mulf %600, %673 : vector<16x128xf32>
    %675 = arith.addf %672, %674 : vector<16x128xf32>
    %676 = vector.broadcast %162 : f32 to vector<16x128xf32>
    %677 = arith.addf %675, %676 : vector<16x128xf32>
    %678 = math.tanh %677 : vector<16x128xf32>
    %679 = vector.broadcast %99 : f32 to vector<16x128xf32>
    %680 = arith.mulf %418, %679 : vector<16x128xf32>
    %681 = vector.broadcast %107 : f32 to vector<16x128xf32>
    %682 = arith.mulf %444, %681 : vector<16x128xf32>
    %683 = arith.addf %680, %682 : vector<16x128xf32>
    %684 = vector.broadcast %115 : f32 to vector<16x128xf32>
    %685 = arith.mulf %470, %684 : vector<16x128xf32>
    %686 = arith.addf %683, %685 : vector<16x128xf32>
    %687 = vector.broadcast %123 : f32 to vector<16x128xf32>
    %688 = arith.mulf %496, %687 : vector<16x128xf32>
    %689 = arith.addf %686, %688 : vector<16x128xf32>
    %690 = vector.broadcast %131 : f32 to vector<16x128xf32>
    %691 = arith.mulf %522, %690 : vector<16x128xf32>
    %692 = arith.addf %689, %691 : vector<16x128xf32>
    %693 = vector.broadcast %139 : f32 to vector<16x128xf32>
    %694 = arith.mulf %548, %693 : vector<16x128xf32>
    %695 = arith.addf %692, %694 : vector<16x128xf32>
    %696 = vector.broadcast %147 : f32 to vector<16x128xf32>
    %697 = arith.mulf %574, %696 : vector<16x128xf32>
    %698 = arith.addf %695, %697 : vector<16x128xf32>
    %699 = vector.broadcast %155 : f32 to vector<16x128xf32>
    %700 = arith.mulf %600, %699 : vector<16x128xf32>
    %701 = arith.addf %698, %700 : vector<16x128xf32>
    %702 = vector.broadcast %163 : f32 to vector<16x128xf32>
    %703 = arith.addf %701, %702 : vector<16x128xf32>
    %704 = math.tanh %703 : vector<16x128xf32>
    %705 = vector.broadcast %100 : f32 to vector<16x128xf32>
    %706 = arith.mulf %418, %705 : vector<16x128xf32>
    %707 = vector.broadcast %108 : f32 to vector<16x128xf32>
    %708 = arith.mulf %444, %707 : vector<16x128xf32>
    %709 = arith.addf %706, %708 : vector<16x128xf32>
    %710 = vector.broadcast %116 : f32 to vector<16x128xf32>
    %711 = arith.mulf %470, %710 : vector<16x128xf32>
    %712 = arith.addf %709, %711 : vector<16x128xf32>
    %713 = vector.broadcast %124 : f32 to vector<16x128xf32>
    %714 = arith.mulf %496, %713 : vector<16x128xf32>
    %715 = arith.addf %712, %714 : vector<16x128xf32>
    %716 = vector.broadcast %132 : f32 to vector<16x128xf32>
    %717 = arith.mulf %522, %716 : vector<16x128xf32>
    %718 = arith.addf %715, %717 : vector<16x128xf32>
    %719 = vector.broadcast %140 : f32 to vector<16x128xf32>
    %720 = arith.mulf %548, %719 : vector<16x128xf32>
    %721 = arith.addf %718, %720 : vector<16x128xf32>
    %722 = vector.broadcast %148 : f32 to vector<16x128xf32>
    %723 = arith.mulf %574, %722 : vector<16x128xf32>
    %724 = arith.addf %721, %723 : vector<16x128xf32>
    %725 = vector.broadcast %156 : f32 to vector<16x128xf32>
    %726 = arith.mulf %600, %725 : vector<16x128xf32>
    %727 = arith.addf %724, %726 : vector<16x128xf32>
    %728 = vector.broadcast %164 : f32 to vector<16x128xf32>
    %729 = arith.addf %727, %728 : vector<16x128xf32>
    %730 = math.tanh %729 : vector<16x128xf32>
    %731 = vector.broadcast %101 : f32 to vector<16x128xf32>
    %732 = arith.mulf %418, %731 : vector<16x128xf32>
    %733 = vector.broadcast %109 : f32 to vector<16x128xf32>
    %734 = arith.mulf %444, %733 : vector<16x128xf32>
    %735 = arith.addf %732, %734 : vector<16x128xf32>
    %736 = vector.broadcast %117 : f32 to vector<16x128xf32>
    %737 = arith.mulf %470, %736 : vector<16x128xf32>
    %738 = arith.addf %735, %737 : vector<16x128xf32>
    %739 = vector.broadcast %125 : f32 to vector<16x128xf32>
    %740 = arith.mulf %496, %739 : vector<16x128xf32>
    %741 = arith.addf %738, %740 : vector<16x128xf32>
    %742 = vector.broadcast %133 : f32 to vector<16x128xf32>
    %743 = arith.mulf %522, %742 : vector<16x128xf32>
    %744 = arith.addf %741, %743 : vector<16x128xf32>
    %745 = vector.broadcast %141 : f32 to vector<16x128xf32>
    %746 = arith.mulf %548, %745 : vector<16x128xf32>
    %747 = arith.addf %744, %746 : vector<16x128xf32>
    %748 = vector.broadcast %149 : f32 to vector<16x128xf32>
    %749 = arith.mulf %574, %748 : vector<16x128xf32>
    %750 = arith.addf %747, %749 : vector<16x128xf32>
    %751 = vector.broadcast %157 : f32 to vector<16x128xf32>
    %752 = arith.mulf %600, %751 : vector<16x128xf32>
    %753 = arith.addf %750, %752 : vector<16x128xf32>
    %754 = vector.broadcast %165 : f32 to vector<16x128xf32>
    %755 = arith.addf %753, %754 : vector<16x128xf32>
    %756 = math.tanh %755 : vector<16x128xf32>
    %757 = vector.broadcast %102 : f32 to vector<16x128xf32>
    %758 = arith.mulf %418, %757 : vector<16x128xf32>
    %759 = vector.broadcast %110 : f32 to vector<16x128xf32>
    %760 = arith.mulf %444, %759 : vector<16x128xf32>
    %761 = arith.addf %758, %760 : vector<16x128xf32>
    %762 = vector.broadcast %118 : f32 to vector<16x128xf32>
    %763 = arith.mulf %470, %762 : vector<16x128xf32>
    %764 = arith.addf %761, %763 : vector<16x128xf32>
    %765 = vector.broadcast %126 : f32 to vector<16x128xf32>
    %766 = arith.mulf %496, %765 : vector<16x128xf32>
    %767 = arith.addf %764, %766 : vector<16x128xf32>
    %768 = vector.broadcast %134 : f32 to vector<16x128xf32>
    %769 = arith.mulf %522, %768 : vector<16x128xf32>
    %770 = arith.addf %767, %769 : vector<16x128xf32>
    %771 = vector.broadcast %142 : f32 to vector<16x128xf32>
    %772 = arith.mulf %548, %771 : vector<16x128xf32>
    %773 = arith.addf %770, %772 : vector<16x128xf32>
    %774 = vector.broadcast %150 : f32 to vector<16x128xf32>
    %775 = arith.mulf %574, %774 : vector<16x128xf32>
    %776 = arith.addf %773, %775 : vector<16x128xf32>
    %777 = vector.broadcast %158 : f32 to vector<16x128xf32>
    %778 = arith.mulf %600, %777 : vector<16x128xf32>
    %779 = arith.addf %776, %778 : vector<16x128xf32>
    %780 = vector.broadcast %166 : f32 to vector<16x128xf32>
    %781 = arith.addf %779, %780 : vector<16x128xf32>
    %782 = math.tanh %781 : vector<16x128xf32>
    %783 = vector.broadcast %103 : f32 to vector<16x128xf32>
    %784 = arith.mulf %418, %783 : vector<16x128xf32>
    %785 = vector.broadcast %111 : f32 to vector<16x128xf32>
    %786 = arith.mulf %444, %785 : vector<16x128xf32>
    %787 = arith.addf %784, %786 : vector<16x128xf32>
    %788 = vector.broadcast %119 : f32 to vector<16x128xf32>
    %789 = arith.mulf %470, %788 : vector<16x128xf32>
    %790 = arith.addf %787, %789 : vector<16x128xf32>
    %791 = vector.broadcast %127 : f32 to vector<16x128xf32>
    %792 = arith.mulf %496, %791 : vector<16x128xf32>
    %793 = arith.addf %790, %792 : vector<16x128xf32>
    %794 = vector.broadcast %135 : f32 to vector<16x128xf32>
    %795 = arith.mulf %522, %794 : vector<16x128xf32>
    %796 = arith.addf %793, %795 : vector<16x128xf32>
    %797 = vector.broadcast %143 : f32 to vector<16x128xf32>
    %798 = arith.mulf %548, %797 : vector<16x128xf32>
    %799 = arith.addf %796, %798 : vector<16x128xf32>
    %800 = vector.broadcast %151 : f32 to vector<16x128xf32>
    %801 = arith.mulf %574, %800 : vector<16x128xf32>
    %802 = arith.addf %799, %801 : vector<16x128xf32>
    %803 = vector.broadcast %159 : f32 to vector<16x128xf32>
    %804 = arith.mulf %600, %803 : vector<16x128xf32>
    %805 = arith.addf %802, %804 : vector<16x128xf32>
    %806 = vector.broadcast %167 : f32 to vector<16x128xf32>
    %807 = arith.addf %805, %806 : vector<16x128xf32>
    %808 = math.tanh %807 : vector<16x128xf32>
    %809 = vector.broadcast %168 : f32 to vector<16x128xf32>
    %810 = arith.mulf %626, %809 : vector<16x128xf32>
    %811 = vector.broadcast %176 : f32 to vector<16x128xf32>
    %812 = arith.mulf %652, %811 : vector<16x128xf32>
    %813 = arith.addf %810, %812 : vector<16x128xf32>
    %814 = vector.broadcast %184 : f32 to vector<16x128xf32>
    %815 = arith.mulf %678, %814 : vector<16x128xf32>
    %816 = arith.addf %813, %815 : vector<16x128xf32>
    %817 = vector.broadcast %192 : f32 to vector<16x128xf32>
    %818 = arith.mulf %704, %817 : vector<16x128xf32>
    %819 = arith.addf %816, %818 : vector<16x128xf32>
    %820 = vector.broadcast %200 : f32 to vector<16x128xf32>
    %821 = arith.mulf %730, %820 : vector<16x128xf32>
    %822 = arith.addf %819, %821 : vector<16x128xf32>
    %823 = vector.broadcast %208 : f32 to vector<16x128xf32>
    %824 = arith.mulf %756, %823 : vector<16x128xf32>
    %825 = arith.addf %822, %824 : vector<16x128xf32>
    %826 = vector.broadcast %216 : f32 to vector<16x128xf32>
    %827 = arith.mulf %782, %826 : vector<16x128xf32>
    %828 = arith.addf %825, %827 : vector<16x128xf32>
    %829 = vector.broadcast %224 : f32 to vector<16x128xf32>
    %830 = arith.mulf %808, %829 : vector<16x128xf32>
    %831 = arith.addf %828, %830 : vector<16x128xf32>
    %832 = vector.broadcast %232 : f32 to vector<16x128xf32>
    %833 = arith.addf %831, %832 : vector<16x128xf32>
    %834 = math.tanh %833 : vector<16x128xf32>
    %835 = vector.broadcast %169 : f32 to vector<16x128xf32>
    %836 = arith.mulf %626, %835 : vector<16x128xf32>
    %837 = vector.broadcast %177 : f32 to vector<16x128xf32>
    %838 = arith.mulf %652, %837 : vector<16x128xf32>
    %839 = arith.addf %836, %838 : vector<16x128xf32>
    %840 = vector.broadcast %185 : f32 to vector<16x128xf32>
    %841 = arith.mulf %678, %840 : vector<16x128xf32>
    %842 = arith.addf %839, %841 : vector<16x128xf32>
    %843 = vector.broadcast %193 : f32 to vector<16x128xf32>
    %844 = arith.mulf %704, %843 : vector<16x128xf32>
    %845 = arith.addf %842, %844 : vector<16x128xf32>
    %846 = vector.broadcast %201 : f32 to vector<16x128xf32>
    %847 = arith.mulf %730, %846 : vector<16x128xf32>
    %848 = arith.addf %845, %847 : vector<16x128xf32>
    %849 = vector.broadcast %209 : f32 to vector<16x128xf32>
    %850 = arith.mulf %756, %849 : vector<16x128xf32>
    %851 = arith.addf %848, %850 : vector<16x128xf32>
    %852 = vector.broadcast %217 : f32 to vector<16x128xf32>
    %853 = arith.mulf %782, %852 : vector<16x128xf32>
    %854 = arith.addf %851, %853 : vector<16x128xf32>
    %855 = vector.broadcast %225 : f32 to vector<16x128xf32>
    %856 = arith.mulf %808, %855 : vector<16x128xf32>
    %857 = arith.addf %854, %856 : vector<16x128xf32>
    %858 = vector.broadcast %233 : f32 to vector<16x128xf32>
    %859 = arith.addf %857, %858 : vector<16x128xf32>
    %860 = math.tanh %859 : vector<16x128xf32>
    %861 = vector.broadcast %170 : f32 to vector<16x128xf32>
    %862 = arith.mulf %626, %861 : vector<16x128xf32>
    %863 = vector.broadcast %178 : f32 to vector<16x128xf32>
    %864 = arith.mulf %652, %863 : vector<16x128xf32>
    %865 = arith.addf %862, %864 : vector<16x128xf32>
    %866 = vector.broadcast %186 : f32 to vector<16x128xf32>
    %867 = arith.mulf %678, %866 : vector<16x128xf32>
    %868 = arith.addf %865, %867 : vector<16x128xf32>
    %869 = vector.broadcast %194 : f32 to vector<16x128xf32>
    %870 = arith.mulf %704, %869 : vector<16x128xf32>
    %871 = arith.addf %868, %870 : vector<16x128xf32>
    %872 = vector.broadcast %202 : f32 to vector<16x128xf32>
    %873 = arith.mulf %730, %872 : vector<16x128xf32>
    %874 = arith.addf %871, %873 : vector<16x128xf32>
    %875 = vector.broadcast %210 : f32 to vector<16x128xf32>
    %876 = arith.mulf %756, %875 : vector<16x128xf32>
    %877 = arith.addf %874, %876 : vector<16x128xf32>
    %878 = vector.broadcast %218 : f32 to vector<16x128xf32>
    %879 = arith.mulf %782, %878 : vector<16x128xf32>
    %880 = arith.addf %877, %879 : vector<16x128xf32>
    %881 = vector.broadcast %226 : f32 to vector<16x128xf32>
    %882 = arith.mulf %808, %881 : vector<16x128xf32>
    %883 = arith.addf %880, %882 : vector<16x128xf32>
    %884 = vector.broadcast %234 : f32 to vector<16x128xf32>
    %885 = arith.addf %883, %884 : vector<16x128xf32>
    %886 = math.tanh %885 : vector<16x128xf32>
    %887 = vector.broadcast %171 : f32 to vector<16x128xf32>
    %888 = arith.mulf %626, %887 : vector<16x128xf32>
    %889 = vector.broadcast %179 : f32 to vector<16x128xf32>
    %890 = arith.mulf %652, %889 : vector<16x128xf32>
    %891 = arith.addf %888, %890 : vector<16x128xf32>
    %892 = vector.broadcast %187 : f32 to vector<16x128xf32>
    %893 = arith.mulf %678, %892 : vector<16x128xf32>
    %894 = arith.addf %891, %893 : vector<16x128xf32>
    %895 = vector.broadcast %195 : f32 to vector<16x128xf32>
    %896 = arith.mulf %704, %895 : vector<16x128xf32>
    %897 = arith.addf %894, %896 : vector<16x128xf32>
    %898 = vector.broadcast %203 : f32 to vector<16x128xf32>
    %899 = arith.mulf %730, %898 : vector<16x128xf32>
    %900 = arith.addf %897, %899 : vector<16x128xf32>
    %901 = vector.broadcast %211 : f32 to vector<16x128xf32>
    %902 = arith.mulf %756, %901 : vector<16x128xf32>
    %903 = arith.addf %900, %902 : vector<16x128xf32>
    %904 = vector.broadcast %219 : f32 to vector<16x128xf32>
    %905 = arith.mulf %782, %904 : vector<16x128xf32>
    %906 = arith.addf %903, %905 : vector<16x128xf32>
    %907 = vector.broadcast %227 : f32 to vector<16x128xf32>
    %908 = arith.mulf %808, %907 : vector<16x128xf32>
    %909 = arith.addf %906, %908 : vector<16x128xf32>
    %910 = vector.broadcast %235 : f32 to vector<16x128xf32>
    %911 = arith.addf %909, %910 : vector<16x128xf32>
    %912 = math.tanh %911 : vector<16x128xf32>
    %913 = vector.broadcast %172 : f32 to vector<16x128xf32>
    %914 = arith.mulf %626, %913 : vector<16x128xf32>
    %915 = vector.broadcast %180 : f32 to vector<16x128xf32>
    %916 = arith.mulf %652, %915 : vector<16x128xf32>
    %917 = arith.addf %914, %916 : vector<16x128xf32>
    %918 = vector.broadcast %188 : f32 to vector<16x128xf32>
    %919 = arith.mulf %678, %918 : vector<16x128xf32>
    %920 = arith.addf %917, %919 : vector<16x128xf32>
    %921 = vector.broadcast %196 : f32 to vector<16x128xf32>
    %922 = arith.mulf %704, %921 : vector<16x128xf32>
    %923 = arith.addf %920, %922 : vector<16x128xf32>
    %924 = vector.broadcast %204 : f32 to vector<16x128xf32>
    %925 = arith.mulf %730, %924 : vector<16x128xf32>
    %926 = arith.addf %923, %925 : vector<16x128xf32>
    %927 = vector.broadcast %212 : f32 to vector<16x128xf32>
    %928 = arith.mulf %756, %927 : vector<16x128xf32>
    %929 = arith.addf %926, %928 : vector<16x128xf32>
    %930 = vector.broadcast %220 : f32 to vector<16x128xf32>
    %931 = arith.mulf %782, %930 : vector<16x128xf32>
    %932 = arith.addf %929, %931 : vector<16x128xf32>
    %933 = vector.broadcast %228 : f32 to vector<16x128xf32>
    %934 = arith.mulf %808, %933 : vector<16x128xf32>
    %935 = arith.addf %932, %934 : vector<16x128xf32>
    %936 = vector.broadcast %236 : f32 to vector<16x128xf32>
    %937 = arith.addf %935, %936 : vector<16x128xf32>
    %938 = math.tanh %937 : vector<16x128xf32>
    %939 = vector.broadcast %173 : f32 to vector<16x128xf32>
    %940 = arith.mulf %626, %939 : vector<16x128xf32>
    %941 = vector.broadcast %181 : f32 to vector<16x128xf32>
    %942 = arith.mulf %652, %941 : vector<16x128xf32>
    %943 = arith.addf %940, %942 : vector<16x128xf32>
    %944 = vector.broadcast %189 : f32 to vector<16x128xf32>
    %945 = arith.mulf %678, %944 : vector<16x128xf32>
    %946 = arith.addf %943, %945 : vector<16x128xf32>
    %947 = vector.broadcast %197 : f32 to vector<16x128xf32>
    %948 = arith.mulf %704, %947 : vector<16x128xf32>
    %949 = arith.addf %946, %948 : vector<16x128xf32>
    %950 = vector.broadcast %205 : f32 to vector<16x128xf32>
    %951 = arith.mulf %730, %950 : vector<16x128xf32>
    %952 = arith.addf %949, %951 : vector<16x128xf32>
    %953 = vector.broadcast %213 : f32 to vector<16x128xf32>
    %954 = arith.mulf %756, %953 : vector<16x128xf32>
    %955 = arith.addf %952, %954 : vector<16x128xf32>
    %956 = vector.broadcast %221 : f32 to vector<16x128xf32>
    %957 = arith.mulf %782, %956 : vector<16x128xf32>
    %958 = arith.addf %955, %957 : vector<16x128xf32>
    %959 = vector.broadcast %229 : f32 to vector<16x128xf32>
    %960 = arith.mulf %808, %959 : vector<16x128xf32>
    %961 = arith.addf %958, %960 : vector<16x128xf32>
    %962 = vector.broadcast %237 : f32 to vector<16x128xf32>
    %963 = arith.addf %961, %962 : vector<16x128xf32>
    %964 = math.tanh %963 : vector<16x128xf32>
    %965 = vector.broadcast %174 : f32 to vector<16x128xf32>
    %966 = arith.mulf %626, %965 : vector<16x128xf32>
    %967 = vector.broadcast %182 : f32 to vector<16x128xf32>
    %968 = arith.mulf %652, %967 : vector<16x128xf32>
    %969 = arith.addf %966, %968 : vector<16x128xf32>
    %970 = vector.broadcast %190 : f32 to vector<16x128xf32>
    %971 = arith.mulf %678, %970 : vector<16x128xf32>
    %972 = arith.addf %969, %971 : vector<16x128xf32>
    %973 = vector.broadcast %198 : f32 to vector<16x128xf32>
    %974 = arith.mulf %704, %973 : vector<16x128xf32>
    %975 = arith.addf %972, %974 : vector<16x128xf32>
    %976 = vector.broadcast %206 : f32 to vector<16x128xf32>
    %977 = arith.mulf %730, %976 : vector<16x128xf32>
    %978 = arith.addf %975, %977 : vector<16x128xf32>
    %979 = vector.broadcast %214 : f32 to vector<16x128xf32>
    %980 = arith.mulf %756, %979 : vector<16x128xf32>
    %981 = arith.addf %978, %980 : vector<16x128xf32>
    %982 = vector.broadcast %222 : f32 to vector<16x128xf32>
    %983 = arith.mulf %782, %982 : vector<16x128xf32>
    %984 = arith.addf %981, %983 : vector<16x128xf32>
    %985 = vector.broadcast %230 : f32 to vector<16x128xf32>
    %986 = arith.mulf %808, %985 : vector<16x128xf32>
    %987 = arith.addf %984, %986 : vector<16x128xf32>
    %988 = vector.broadcast %238 : f32 to vector<16x128xf32>
    %989 = arith.addf %987, %988 : vector<16x128xf32>
    %990 = math.tanh %989 : vector<16x128xf32>
    %991 = vector.broadcast %175 : f32 to vector<16x128xf32>
    %992 = arith.mulf %626, %991 : vector<16x128xf32>
    %993 = vector.broadcast %183 : f32 to vector<16x128xf32>
    %994 = arith.mulf %652, %993 : vector<16x128xf32>
    %995 = arith.addf %992, %994 : vector<16x128xf32>
    %996 = vector.broadcast %191 : f32 to vector<16x128xf32>
    %997 = arith.mulf %678, %996 : vector<16x128xf32>
    %998 = arith.addf %995, %997 : vector<16x128xf32>
    %999 = vector.broadcast %199 : f32 to vector<16x128xf32>
    %1000 = arith.mulf %704, %999 : vector<16x128xf32>
    %1001 = arith.addf %998, %1000 : vector<16x128xf32>
    %1002 = vector.broadcast %207 : f32 to vector<16x128xf32>
    %1003 = arith.mulf %730, %1002 : vector<16x128xf32>
    %1004 = arith.addf %1001, %1003 : vector<16x128xf32>
    %1005 = vector.broadcast %215 : f32 to vector<16x128xf32>
    %1006 = arith.mulf %756, %1005 : vector<16x128xf32>
    %1007 = arith.addf %1004, %1006 : vector<16x128xf32>
    %1008 = vector.broadcast %223 : f32 to vector<16x128xf32>
    %1009 = arith.mulf %782, %1008 : vector<16x128xf32>
    %1010 = arith.addf %1007, %1009 : vector<16x128xf32>
    %1011 = vector.broadcast %231 : f32 to vector<16x128xf32>
    %1012 = arith.mulf %808, %1011 : vector<16x128xf32>
    %1013 = arith.addf %1010, %1012 : vector<16x128xf32>
    %1014 = vector.broadcast %239 : f32 to vector<16x128xf32>
    %1015 = arith.addf %1013, %1014 : vector<16x128xf32>
    %1016 = math.tanh %1015 : vector<16x128xf32>
    %1017 = vector.broadcast %240 : f32 to vector<16x128xf32>
    %1018 = arith.mulf %834, %1017 : vector<16x128xf32>
    %1019 = vector.broadcast %248 : f32 to vector<16x128xf32>
    %1020 = arith.mulf %860, %1019 : vector<16x128xf32>
    %1021 = arith.addf %1018, %1020 : vector<16x128xf32>
    %1022 = vector.broadcast %256 : f32 to vector<16x128xf32>
    %1023 = arith.mulf %886, %1022 : vector<16x128xf32>
    %1024 = arith.addf %1021, %1023 : vector<16x128xf32>
    %1025 = vector.broadcast %264 : f32 to vector<16x128xf32>
    %1026 = arith.mulf %912, %1025 : vector<16x128xf32>
    %1027 = arith.addf %1024, %1026 : vector<16x128xf32>
    %1028 = vector.broadcast %272 : f32 to vector<16x128xf32>
    %1029 = arith.mulf %938, %1028 : vector<16x128xf32>
    %1030 = arith.addf %1027, %1029 : vector<16x128xf32>
    %1031 = vector.broadcast %280 : f32 to vector<16x128xf32>
    %1032 = arith.mulf %964, %1031 : vector<16x128xf32>
    %1033 = arith.addf %1030, %1032 : vector<16x128xf32>
    %1034 = vector.broadcast %288 : f32 to vector<16x128xf32>
    %1035 = arith.mulf %990, %1034 : vector<16x128xf32>
    %1036 = arith.addf %1033, %1035 : vector<16x128xf32>
    %1037 = vector.broadcast %296 : f32 to vector<16x128xf32>
    %1038 = arith.mulf %1016, %1037 : vector<16x128xf32>
    %1039 = arith.addf %1036, %1038 : vector<16x128xf32>
    %1040 = vector.broadcast %304 : f32 to vector<16x128xf32>
    %1041 = arith.addf %1039, %1040 : vector<16x128xf32>
    %1042 = math.tanh %1041 : vector<16x128xf32>
    %1043 = vector.broadcast %241 : f32 to vector<16x128xf32>
    %1044 = arith.mulf %834, %1043 : vector<16x128xf32>
    %1045 = vector.broadcast %249 : f32 to vector<16x128xf32>
    %1046 = arith.mulf %860, %1045 : vector<16x128xf32>
    %1047 = arith.addf %1044, %1046 : vector<16x128xf32>
    %1048 = vector.broadcast %257 : f32 to vector<16x128xf32>
    %1049 = arith.mulf %886, %1048 : vector<16x128xf32>
    %1050 = arith.addf %1047, %1049 : vector<16x128xf32>
    %1051 = vector.broadcast %265 : f32 to vector<16x128xf32>
    %1052 = arith.mulf %912, %1051 : vector<16x128xf32>
    %1053 = arith.addf %1050, %1052 : vector<16x128xf32>
    %1054 = vector.broadcast %273 : f32 to vector<16x128xf32>
    %1055 = arith.mulf %938, %1054 : vector<16x128xf32>
    %1056 = arith.addf %1053, %1055 : vector<16x128xf32>
    %1057 = vector.broadcast %281 : f32 to vector<16x128xf32>
    %1058 = arith.mulf %964, %1057 : vector<16x128xf32>
    %1059 = arith.addf %1056, %1058 : vector<16x128xf32>
    %1060 = vector.broadcast %289 : f32 to vector<16x128xf32>
    %1061 = arith.mulf %990, %1060 : vector<16x128xf32>
    %1062 = arith.addf %1059, %1061 : vector<16x128xf32>
    %1063 = vector.broadcast %297 : f32 to vector<16x128xf32>
    %1064 = arith.mulf %1016, %1063 : vector<16x128xf32>
    %1065 = arith.addf %1062, %1064 : vector<16x128xf32>
    %1066 = vector.broadcast %305 : f32 to vector<16x128xf32>
    %1067 = arith.addf %1065, %1066 : vector<16x128xf32>
    %1068 = math.tanh %1067 : vector<16x128xf32>
    %1069 = vector.broadcast %242 : f32 to vector<16x128xf32>
    %1070 = arith.mulf %834, %1069 : vector<16x128xf32>
    %1071 = vector.broadcast %250 : f32 to vector<16x128xf32>
    %1072 = arith.mulf %860, %1071 : vector<16x128xf32>
    %1073 = arith.addf %1070, %1072 : vector<16x128xf32>
    %1074 = vector.broadcast %258 : f32 to vector<16x128xf32>
    %1075 = arith.mulf %886, %1074 : vector<16x128xf32>
    %1076 = arith.addf %1073, %1075 : vector<16x128xf32>
    %1077 = vector.broadcast %266 : f32 to vector<16x128xf32>
    %1078 = arith.mulf %912, %1077 : vector<16x128xf32>
    %1079 = arith.addf %1076, %1078 : vector<16x128xf32>
    %1080 = vector.broadcast %274 : f32 to vector<16x128xf32>
    %1081 = arith.mulf %938, %1080 : vector<16x128xf32>
    %1082 = arith.addf %1079, %1081 : vector<16x128xf32>
    %1083 = vector.broadcast %282 : f32 to vector<16x128xf32>
    %1084 = arith.mulf %964, %1083 : vector<16x128xf32>
    %1085 = arith.addf %1082, %1084 : vector<16x128xf32>
    %1086 = vector.broadcast %290 : f32 to vector<16x128xf32>
    %1087 = arith.mulf %990, %1086 : vector<16x128xf32>
    %1088 = arith.addf %1085, %1087 : vector<16x128xf32>
    %1089 = vector.broadcast %298 : f32 to vector<16x128xf32>
    %1090 = arith.mulf %1016, %1089 : vector<16x128xf32>
    %1091 = arith.addf %1088, %1090 : vector<16x128xf32>
    %1092 = vector.broadcast %306 : f32 to vector<16x128xf32>
    %1093 = arith.addf %1091, %1092 : vector<16x128xf32>
    %1094 = math.tanh %1093 : vector<16x128xf32>
    %1095 = vector.broadcast %243 : f32 to vector<16x128xf32>
    %1096 = arith.mulf %834, %1095 : vector<16x128xf32>
    %1097 = vector.broadcast %251 : f32 to vector<16x128xf32>
    %1098 = arith.mulf %860, %1097 : vector<16x128xf32>
    %1099 = arith.addf %1096, %1098 : vector<16x128xf32>
    %1100 = vector.broadcast %259 : f32 to vector<16x128xf32>
    %1101 = arith.mulf %886, %1100 : vector<16x128xf32>
    %1102 = arith.addf %1099, %1101 : vector<16x128xf32>
    %1103 = vector.broadcast %267 : f32 to vector<16x128xf32>
    %1104 = arith.mulf %912, %1103 : vector<16x128xf32>
    %1105 = arith.addf %1102, %1104 : vector<16x128xf32>
    %1106 = vector.broadcast %275 : f32 to vector<16x128xf32>
    %1107 = arith.mulf %938, %1106 : vector<16x128xf32>
    %1108 = arith.addf %1105, %1107 : vector<16x128xf32>
    %1109 = vector.broadcast %283 : f32 to vector<16x128xf32>
    %1110 = arith.mulf %964, %1109 : vector<16x128xf32>
    %1111 = arith.addf %1108, %1110 : vector<16x128xf32>
    %1112 = vector.broadcast %291 : f32 to vector<16x128xf32>
    %1113 = arith.mulf %990, %1112 : vector<16x128xf32>
    %1114 = arith.addf %1111, %1113 : vector<16x128xf32>
    %1115 = vector.broadcast %299 : f32 to vector<16x128xf32>
    %1116 = arith.mulf %1016, %1115 : vector<16x128xf32>
    %1117 = arith.addf %1114, %1116 : vector<16x128xf32>
    %1118 = vector.broadcast %307 : f32 to vector<16x128xf32>
    %1119 = arith.addf %1117, %1118 : vector<16x128xf32>
    %1120 = math.tanh %1119 : vector<16x128xf32>
    %1121 = vector.broadcast %244 : f32 to vector<16x128xf32>
    %1122 = arith.mulf %834, %1121 : vector<16x128xf32>
    %1123 = vector.broadcast %252 : f32 to vector<16x128xf32>
    %1124 = arith.mulf %860, %1123 : vector<16x128xf32>
    %1125 = arith.addf %1122, %1124 : vector<16x128xf32>
    %1126 = vector.broadcast %260 : f32 to vector<16x128xf32>
    %1127 = arith.mulf %886, %1126 : vector<16x128xf32>
    %1128 = arith.addf %1125, %1127 : vector<16x128xf32>
    %1129 = vector.broadcast %268 : f32 to vector<16x128xf32>
    %1130 = arith.mulf %912, %1129 : vector<16x128xf32>
    %1131 = arith.addf %1128, %1130 : vector<16x128xf32>
    %1132 = vector.broadcast %276 : f32 to vector<16x128xf32>
    %1133 = arith.mulf %938, %1132 : vector<16x128xf32>
    %1134 = arith.addf %1131, %1133 : vector<16x128xf32>
    %1135 = vector.broadcast %284 : f32 to vector<16x128xf32>
    %1136 = arith.mulf %964, %1135 : vector<16x128xf32>
    %1137 = arith.addf %1134, %1136 : vector<16x128xf32>
    %1138 = vector.broadcast %292 : f32 to vector<16x128xf32>
    %1139 = arith.mulf %990, %1138 : vector<16x128xf32>
    %1140 = arith.addf %1137, %1139 : vector<16x128xf32>
    %1141 = vector.broadcast %300 : f32 to vector<16x128xf32>
    %1142 = arith.mulf %1016, %1141 : vector<16x128xf32>
    %1143 = arith.addf %1140, %1142 : vector<16x128xf32>
    %1144 = vector.broadcast %308 : f32 to vector<16x128xf32>
    %1145 = arith.addf %1143, %1144 : vector<16x128xf32>
    %1146 = math.tanh %1145 : vector<16x128xf32>
    %1147 = vector.broadcast %245 : f32 to vector<16x128xf32>
    %1148 = arith.mulf %834, %1147 : vector<16x128xf32>
    %1149 = vector.broadcast %253 : f32 to vector<16x128xf32>
    %1150 = arith.mulf %860, %1149 : vector<16x128xf32>
    %1151 = arith.addf %1148, %1150 : vector<16x128xf32>
    %1152 = vector.broadcast %261 : f32 to vector<16x128xf32>
    %1153 = arith.mulf %886, %1152 : vector<16x128xf32>
    %1154 = arith.addf %1151, %1153 : vector<16x128xf32>
    %1155 = vector.broadcast %269 : f32 to vector<16x128xf32>
    %1156 = arith.mulf %912, %1155 : vector<16x128xf32>
    %1157 = arith.addf %1154, %1156 : vector<16x128xf32>
    %1158 = vector.broadcast %277 : f32 to vector<16x128xf32>
    %1159 = arith.mulf %938, %1158 : vector<16x128xf32>
    %1160 = arith.addf %1157, %1159 : vector<16x128xf32>
    %1161 = vector.broadcast %285 : f32 to vector<16x128xf32>
    %1162 = arith.mulf %964, %1161 : vector<16x128xf32>
    %1163 = arith.addf %1160, %1162 : vector<16x128xf32>
    %1164 = vector.broadcast %293 : f32 to vector<16x128xf32>
    %1165 = arith.mulf %990, %1164 : vector<16x128xf32>
    %1166 = arith.addf %1163, %1165 : vector<16x128xf32>
    %1167 = vector.broadcast %301 : f32 to vector<16x128xf32>
    %1168 = arith.mulf %1016, %1167 : vector<16x128xf32>
    %1169 = arith.addf %1166, %1168 : vector<16x128xf32>
    %1170 = vector.broadcast %309 : f32 to vector<16x128xf32>
    %1171 = arith.addf %1169, %1170 : vector<16x128xf32>
    %1172 = math.tanh %1171 : vector<16x128xf32>
    %1173 = vector.broadcast %246 : f32 to vector<16x128xf32>
    %1174 = arith.mulf %834, %1173 : vector<16x128xf32>
    %1175 = vector.broadcast %254 : f32 to vector<16x128xf32>
    %1176 = arith.mulf %860, %1175 : vector<16x128xf32>
    %1177 = arith.addf %1174, %1176 : vector<16x128xf32>
    %1178 = vector.broadcast %262 : f32 to vector<16x128xf32>
    %1179 = arith.mulf %886, %1178 : vector<16x128xf32>
    %1180 = arith.addf %1177, %1179 : vector<16x128xf32>
    %1181 = vector.broadcast %270 : f32 to vector<16x128xf32>
    %1182 = arith.mulf %912, %1181 : vector<16x128xf32>
    %1183 = arith.addf %1180, %1182 : vector<16x128xf32>
    %1184 = vector.broadcast %278 : f32 to vector<16x128xf32>
    %1185 = arith.mulf %938, %1184 : vector<16x128xf32>
    %1186 = arith.addf %1183, %1185 : vector<16x128xf32>
    %1187 = vector.broadcast %286 : f32 to vector<16x128xf32>
    %1188 = arith.mulf %964, %1187 : vector<16x128xf32>
    %1189 = arith.addf %1186, %1188 : vector<16x128xf32>
    %1190 = vector.broadcast %294 : f32 to vector<16x128xf32>
    %1191 = arith.mulf %990, %1190 : vector<16x128xf32>
    %1192 = arith.addf %1189, %1191 : vector<16x128xf32>
    %1193 = vector.broadcast %302 : f32 to vector<16x128xf32>
    %1194 = arith.mulf %1016, %1193 : vector<16x128xf32>
    %1195 = arith.addf %1192, %1194 : vector<16x128xf32>
    %1196 = vector.broadcast %310 : f32 to vector<16x128xf32>
    %1197 = arith.addf %1195, %1196 : vector<16x128xf32>
    %1198 = math.tanh %1197 : vector<16x128xf32>
    %1199 = vector.broadcast %247 : f32 to vector<16x128xf32>
    %1200 = arith.mulf %834, %1199 : vector<16x128xf32>
    %1201 = vector.broadcast %255 : f32 to vector<16x128xf32>
    %1202 = arith.mulf %860, %1201 : vector<16x128xf32>
    %1203 = arith.addf %1200, %1202 : vector<16x128xf32>
    %1204 = vector.broadcast %263 : f32 to vector<16x128xf32>
    %1205 = arith.mulf %886, %1204 : vector<16x128xf32>
    %1206 = arith.addf %1203, %1205 : vector<16x128xf32>
    %1207 = vector.broadcast %271 : f32 to vector<16x128xf32>
    %1208 = arith.mulf %912, %1207 : vector<16x128xf32>
    %1209 = arith.addf %1206, %1208 : vector<16x128xf32>
    %1210 = vector.broadcast %279 : f32 to vector<16x128xf32>
    %1211 = arith.mulf %938, %1210 : vector<16x128xf32>
    %1212 = arith.addf %1209, %1211 : vector<16x128xf32>
    %1213 = vector.broadcast %287 : f32 to vector<16x128xf32>
    %1214 = arith.mulf %964, %1213 : vector<16x128xf32>
    %1215 = arith.addf %1212, %1214 : vector<16x128xf32>
    %1216 = vector.broadcast %295 : f32 to vector<16x128xf32>
    %1217 = arith.mulf %990, %1216 : vector<16x128xf32>
    %1218 = arith.addf %1215, %1217 : vector<16x128xf32>
    %1219 = vector.broadcast %303 : f32 to vector<16x128xf32>
    %1220 = arith.mulf %1016, %1219 : vector<16x128xf32>
    %1221 = arith.addf %1218, %1220 : vector<16x128xf32>
    %1222 = vector.broadcast %311 : f32 to vector<16x128xf32>
    %1223 = arith.addf %1221, %1222 : vector<16x128xf32>
    %1224 = math.tanh %1223 : vector<16x128xf32>
    %1225 = vector.broadcast %312 : f32 to vector<16x128xf32>
    %1226 = arith.mulf %1042, %1225 : vector<16x128xf32>
    %1227 = vector.broadcast %313 : f32 to vector<16x128xf32>
    %1228 = arith.mulf %1068, %1227 : vector<16x128xf32>
    %1229 = arith.addf %1226, %1228 : vector<16x128xf32>
    %1230 = vector.broadcast %314 : f32 to vector<16x128xf32>
    %1231 = arith.mulf %1094, %1230 : vector<16x128xf32>
    %1232 = arith.addf %1229, %1231 : vector<16x128xf32>
    %1233 = vector.broadcast %315 : f32 to vector<16x128xf32>
    %1234 = arith.mulf %1120, %1233 : vector<16x128xf32>
    %1235 = arith.addf %1232, %1234 : vector<16x128xf32>
    %1236 = vector.broadcast %316 : f32 to vector<16x128xf32>
    %1237 = arith.mulf %1146, %1236 : vector<16x128xf32>
    %1238 = arith.addf %1235, %1237 : vector<16x128xf32>
    %1239 = vector.broadcast %317 : f32 to vector<16x128xf32>
    %1240 = arith.mulf %1172, %1239 : vector<16x128xf32>
    %1241 = arith.addf %1238, %1240 : vector<16x128xf32>
    %1242 = vector.broadcast %318 : f32 to vector<16x128xf32>
    %1243 = arith.mulf %1198, %1242 : vector<16x128xf32>
    %1244 = arith.addf %1241, %1243 : vector<16x128xf32>
    %1245 = vector.broadcast %319 : f32 to vector<16x128xf32>
    %1246 = arith.mulf %1224, %1245 : vector<16x128xf32>
    %1247 = arith.addf %1244, %1246 : vector<16x128xf32>
    %1248 = vector.broadcast %320 : f32 to vector<16x128xf32>
    %1249 = arith.addf %1247, %1248 : vector<16x128xf32>
    %1250 = math.tanh %1249 : vector<16x128xf32>
    %1251 = arith.index_cast %324 : i32 to index
    %c0_3 = arith.constant 0 : index
    %1252 = vector.load %arg4[%1251, %c0_3] : memref<16x128xf32, #tpu.memory_space<vmem>>, vector<16x128xf32>
    tpu.vector_store %arg4[%1251, %c0_3], %1250 {strides = array<i32>} : memref<16x128xf32, #tpu.memory_space<vmem>>, vector<16x128xf32>,
    %c1_i32_4 = arith.constant 1 : i32
    return
  }
  func.func @transform_0(%arg0: i32) -> i32 {
    %c0_i32 = arith.constant 0 : i32
    %c0_i32_0 = arith.constant 0 : i32
    return %c0_i32 : i32
  }
  func.func @transform_1(%arg0: i32) -> (i32, i32) {
    %c0_i32 = arith.constant 0 : i32
    %c0_i32_0 = arith.constant 0 : i32
    return %arg0, %c0_i32 : i32, i32
  }
  func.func @transform_2(%arg0: i32) -> (i32, i32) {
    %c0_i32 = arith.constant 0 : i32
    %c0_i32_0 = arith.constant 0 : i32
    return %arg0, %c0_i32 : i32, i32
  }
  func.func @transform_3(%arg0: i32) -> (i32, i32) {
    %c0_i32 = arith.constant 0 : i32
    %c0_i32_0 = arith.constant 0 : i32
    return %arg0, %c0_i32 : i32, i32
  }
}

</mosaic_0001>

<llo_original>
// kernel: tpu_custom_call.1
$region0: #{tpu_custom_call.1}
  #allocation0 [shape = 'u32[]', space=smem, size = 0x4, offset = 0x4, fixed_abs, tag = 'smem constant byte address 0x4 - core index']
  #allocation1 [shape = 'u32[144,128]{1,0:T(1,128)}', space=vmem, size = 0x12000, scoped, tag = 'internal scratch']
  %s0 = inlined_call_operand.hbm [shape: f32[321], index: 0, kind: input, shape index: {}]
  %s1 = inlined_call_operand.hbm [shape: f32[32,128], index: 1, kind: input, shape index: {}]
  %s2 = inlined_call_operand.hbm [shape: f32[32,128], index: 2, kind: input, shape index: {}]
  %s3 = inlined_call_operand.hbm [shape: f32[32,128], index: 3, kind: output, shape index: {}]
  %s4 = sld [smem:[#allocation0]]
  $region57: #{tpu_custom_call.1} parent=0
    _
  %s6 = ssub.s32 1, %s4
  %s7 = scalar_select 0, %s6, %s4
  $region1: #{tpu_custom_call.1} parent=0
    #allocation2 [shape = 'u8[1536]{0}', space=smem, size = 0x600, scoped, tag = 'input window, operand 0, single buffered']
    #allocation3 [shape = 's32[2]{0}', space=sflag, size = 0x8, scoped, tag = 'scoped memory for tpu_custom_call.1']
    #allocation4 [shape = 's32[2]{0}', space=sflag, size = 0x8, scoped, tag = 'scoped memory for tpu_custom_call.1']
    #allocation5 [shape = 's32[2]{0}', space=sflag, size = 0x8, scoped, tag = 'scoped memory for tpu_custom_call.1']
    #allocation6 [shape = 'u8[16384]{0}', space=vmem, size = 0x4000, scoped, tag = 'input window, operand 1']
    #allocation7 [shape = 'u8[16384]{0}', space=vmem, size = 0x4000, scoped, tag = 'input window, operand 2']
    #allocation8 [shape = 's32[2]{0}', space=sflag, size = 0x8, scoped, tag = 'scoped memory for tpu_custom_call.1']
    #allocation9 [shape = 'u8[16384]{0}', space=vmem, size = 0x4000, scoped, tag = 'output window, operand 0']
    %8 = vsyncpa [#allocation5], 0
    %9 = vsyncpa [#allocation3], 0
    %s10 = scalar_lea.sflag [#allocation3], 1
    %11 = vsyncpa %s10, 0
    %12 = vsyncpa [#allocation8], 0
    %s13 = scalar_lea.sflag [#allocation8], 1
    %14 = vsyncpa %s13, 0
    %15 = vsyncpa [#allocation4], 0
    %s16 = scalar_lea.sflag [#allocation4], 1
    %17 = vsyncpa %s16, 0
    loop: start=0, step=1, limit=4
    $region2: #{tpu_custom_call.1} parent=1 // loop_pre_header
      _
    $region3: #{tpu_custom_call.1} parent=1 // loop_header
      %s19 = sphi 0, %s23
      %p20 = scmp.ge.s32.totalorder %s19, 4
      %s27 = sphi 0, %s27
      %s29 = sphi 0, %s27
      %s30 = sphi 0, %s29
      %s44 = sphi 0, %s30
      %s50 = sphi 0, %s52
      %s53 = sphi 0, %s50
      %s54 = sphi 0, %s53
      %s70 = sphi 0, %s54
      %s76 = sphi 0, %s78
      %s79 = sphi 0, %s76
      %s80 = sphi 0, %s79
      %s96 = sphi 0, %s80
      %s102 = sphi 0, %s104
      %s105 = sphi 0, %s102
      %s106 = sphi 0, %s105
      %s122 = sphi 0, %s106
    $region4: #{tpu_custom_call.1} parent=1 // loop_header_branch
      %22 = sbr.rel (%p20) target = $region8
    $region5: #{tpu_custom_call.1} parent=1 // loop_body
      %s24 = ssub.s32 %s19, 1
      %s25 = ssub.s32 %s19, 2
      %s26 = sadd.s32 %s19, 1
      %s28 = sadd.s32 %s27, 1
      %p31 = scmp.eq.s32.totalorder %s19, 1
      %p32 = scmp.ne.s32.totalorder %s27, %s29
      %p33 = scmp.eq.s32.totalorder %s19, 0
      %p34 = por %p32, %p33
      %p35 = scmp.ne.s32.totalorder %s27, %s29
      %p36 = scmp.eq.s32.totalorder %s24, 1
      %p37 = por %p35, %p36
      %p38 = scmp.ne.s32.totalorder %s29, %s30
      %p39 = scmp.eq.s32.totalorder %s24, 0
      %p40 = por %p38, %p39
      %p41 = scmp.ne.s32.totalorder %s29, %s30
      %p42 = scmp.eq.s32.totalorder %s25, 1
      %p43 = por %p41, %p42
      %p45 = scmp.ne.s32.totalorder %s30, %s44
      %p46 = scmp.eq.s32.totalorder %s25, 0
      %p47 = por %p45, %p46
      %s48 = ssub.s32 %s19, %s26
      %p49 = scmp.eq.s32.totalorder %s48, 0
      %s51 = sadd.s32 %s50, 1
      %s52 = scalar_select %p49, %s50, %s51
      %p55 = pneg %p49
      %p56 = scmp.eq.s32.totalorder %s19, 1
      %p57 = por %p55, %p56
      %p58 = scmp.ne.s32.totalorder %s50, %s53
      %p59 = scmp.eq.s32.totalorder %s19, 0
      %p60 = por %p58, %p59
      %p61 = scmp.ne.s32.totalorder %s50, %s53
      %p62 = scmp.eq.s32.totalorder %s24, 1
      %p63 = por %p61, %p62
      %p64 = scmp.ne.s32.totalorder %s53, %s54
      %p65 = scmp.eq.s32.totalorder %s24, 0
      %p66 = por %p64, %p65
      %p67 = scmp.ne.s32.totalorder %s53, %s54
      %p68 = scmp.eq.s32.totalorder %s25, 1
      %p69 = por %p67, %p68
      %p71 = scmp.ne.s32.totalorder %s54, %s70
      %p72 = scmp.eq.s32.totalorder %s25, 0
      %p73 = por %p71, %p72
      %s74 = ssub.s32 %s19, %s26
      %p75 = scmp.eq.s32.totalorder %s74, 0
      %s77 = sadd.s32 %s76, 1
      %s78 = scalar_select %p75, %s76, %s77
      %p81 = pneg %p75
      %p82 = scmp.eq.s32.totalorder %s19, 1
      %p83 = por %p81, %p82
      %p84 = scmp.ne.s32.totalorder %s76, %s79
      %p85 = scmp.eq.s32.totalorder %s19, 0
      %p86 = por %p84, %p85
      %p87 = scmp.ne.s32.totalorder %s76, %s79
      %p88 = scmp.eq.s32.totalorder %s24, 1
      %p89 = por %p87, %p88
      %p90 = scmp.ne.s32.totalorder %s79, %s80
      %p91 = scmp.eq.s32.totalorder %s24, 0
      %p92 = por %p90, %p91
      %p93 = scmp.ne.s32.totalorder %s79, %s80
      %p94 = scmp.eq.s32.totalorder %s25, 1
      %p95 = por %p93, %p94
      %p97 = scmp.ne.s32.totalorder %s80, %s96
      %p98 = scmp.eq.s32.totalorder %s25, 0
      %p99 = por %p97, %p98
      %s100 = ssub.s32 %s19, %s26
      %p101 = scmp.eq.s32.totalorder %s100, 0
      %s103 = sadd.s32 %s102, 1
      %s104 = scalar_select %p101, %s102, %s103
      %p107 = pneg %p101
      %p108 = scmp.eq.s32.totalorder %s19, 1
      %p109 = por %p107, %p108
      %p110 = scmp.ne.s32.totalorder %s102, %s105
      %p111 = scmp.eq.s32.totalorder %s19, 0
      %p112 = por %p110, %p111
      %p113 = scmp.ne.s32.totalorder %s102, %s105
      %p114 = scmp.eq.s32.totalorder %s24, 1
      %p115 = por %p113, %p114
      %p116 = scmp.ne.s32.totalorder %s105, %s106
      %p117 = scmp.eq.s32.totalorder %s24, 0
      %p118 = por %p116, %p117
      %p119 = scmp.ne.s32.totalorder %s105, %s106
      %p120 = scmp.eq.s32.totalorder %s25, 1
      %p121 = por %p119, %p120
      %p123 = scmp.ne.s32.totalorder %s106, %s122
      %p124 = scmp.eq.s32.totalorder %s25, 0
      %p125 = por %p123, %p124
      %p126 = scmp.le.s32.totalorder 1, %s19
      %p127 = scmp.lt.s32.totalorder %s19, 3
      %p128 = pnand %p126, %p127
      %p129 = pneg %p128
      // Predicated region
      $region9: #{tpu_custom_call.1} parent=5 // pred_check
        _
      $region10: #{tpu_custom_call.1} parent=5 // pred_check_branch
        %131 = sbr.rel (%p128) target = $region12
      $region11: #{tpu_custom_call.1} parent=5 // pred_region
        %s132 = ssub.s32 %s19, 1
        // Predicated region
        $region13: #{tpu_custom_call.1} parent=11 // pred_check
          %p133 = pneg %p40
        $region14: #{tpu_custom_call.1} parent=11 // pred_check_branch
          %135 = sbr.rel (%p133) target = $region16
        $region15: #{tpu_custom_call.1} parent=11 // pred_region
          %s137 = ssub.s32 48, 48
          %138 = vsyncadd [#allocation5], %s137
          %141 = dma.hbm_to_smem %s0, 48, [#allocation2], [#allocation5]
        $region16: #{tpu_custom_call.1} parent=11 // pred_fallthru
          _
      $region12: #{tpu_custom_call.1} parent=5 // pred_fallthru
        _
      %p142 = scmp.lt.s32.totalorder %s19, 2
      // Predicated region
      $region17: #{tpu_custom_call.1} parent=5 // pred_check
        %p143 = pneg %p142
      $region18: #{tpu_custom_call.1} parent=5 // pred_check_branch
        %145 = sbr.rel (%p143) target = $region20
      $region19: #{tpu_custom_call.1} parent=5 // pred_region
        // Predicated region
        $region21: #{tpu_custom_call.1} parent=19 // pred_check
          %p146 = pneg %p60
        $region22: #{tpu_custom_call.1} parent=19 // pred_check_branch
          %148 = sbr.rel (%p146) target = $region24
        $region23: #{tpu_custom_call.1} parent=19 // pred_region
          %s149 = sand.u32 %s50, 1
          %s150 = scalar_lea.sflag [#allocation3], %s149
          %s151 = sand.u32 %s50, 1
          %s152 = smul.addr %s151, 16
          %s153 = scalar_lea.vmem [#allocation6], %s152
          %s154 = smul.u32 2, %s19
          %s156 = ssub.s32 256, 256
          %157 = vsyncadd %s150, %s156
          %s158 = smul.addr %s154, 128
          %s159 = scalar_lea.hbm %s1, %s158
          %s160 = sshll.u32 %s153, 4
          %s161 = int_to_ptr.vmem [resolvable:$true] %s160
          %166 = dma.hbm_to_vmem [thread:$0]  %s159, 256, %s161, %s150, 128, 128, 8
        $region24: #{tpu_custom_call.1} parent=19 // pred_fallthru
          _
        // Predicated region
        $region25: #{tpu_custom_call.1} parent=19 // pred_check
          %p167 = pneg %p86
        $region26: #{tpu_custom_call.1} parent=19 // pred_check_branch
          %169 = sbr.rel (%p167) target = $region28
        $region27: #{tpu_custom_call.1} parent=19 // pred_region
          %s170 = sand.u32 %s76, 1
          %s171 = scalar_lea.sflag [#allocation8], %s170
          %s172 = sand.u32 %s76, 1
          %s173 = smul.addr %s172, 16
          %s174 = scalar_lea.vmem [#allocation7], %s173
          %s175 = smul.u32 2, %s19
          %s177 = ssub.s32 256, 256
          %178 = vsyncadd %s171, %s177
          %s179 = smul.addr %s175, 128
          %s180 = scalar_lea.hbm %s2, %s179
          %s181 = sshll.u32 %s174, 4
          %s182 = int_to_ptr.vmem [resolvable:$true] %s181
          %187 = dma.hbm_to_vmem [thread:$0]  %s180, 256, %s182, %s171, 128, 128, 8
        $region28: #{tpu_custom_call.1} parent=19 // pred_fallthru
          _
      $region20: #{tpu_custom_call.1} parent=5 // pred_fallthru
        _
      %p188 = scmp.le.s32.totalorder 1, %s19
      %p189 = scmp.lt.s32.totalorder %s19, 3
      %p190 = pnand %p188, %p189
      %p191 = pneg %p190
      // Predicated region
      $region29: #{tpu_custom_call.1} parent=5 // pred_check
        _
      $region30: #{tpu_custom_call.1} parent=5 // pred_check_branch
        %193 = sbr.rel (%p190) target = $region32
      $region31: #{tpu_custom_call.1} parent=5 // pred_region
        %s194 = ssub.s32 %s19, 1
        // Predicated region
        $region33: #{tpu_custom_call.1} parent=31 // pred_check
          %p195 = pneg %p40
        $region34: #{tpu_custom_call.1} parent=31 // pred_check_branch
          %197 = sbr.rel (%p195) target = $region36
        $region35: #{tpu_custom_call.1} parent=31 // pred_region
          %198 = dma.done [#allocation5], 48
        $region36: #{tpu_custom_call.1} parent=31 // pred_fallthru
          _
        %s199 = sand.u32 %s53, 1
        %s200 = scalar_lea.sflag [#allocation3], %s199
        %s201 = sand.u32 %s53, 1
        %s202 = smul.addr %s201, 16
        %s203 = scalar_lea.vmem [#allocation6], %s202
        // Predicated region
        $region37: #{tpu_custom_call.1} parent=31 // pred_check
          %p204 = pneg %p66
        $region38: #{tpu_custom_call.1} parent=31 // pred_check_branch
          %206 = sbr.rel (%p204) target = $region40
        $region39: #{tpu_custom_call.1} parent=31 // pred_region
          %207 = dma.done %s200, 256
        $region40: #{tpu_custom_call.1} parent=31 // pred_fallthru
          _
        %s208 = sand.u32 %s79, 1
        %s209 = scalar_lea.sflag [#allocation8], %s208
        %s210 = sand.u32 %s79, 1
        %s211 = smul.addr %s210, 16
        %s212 = scalar_lea.vmem [#allocation7], %s211
        // Predicated region
        $region41: #{tpu_custom_call.1} parent=31 // pred_check
          %p213 = pneg %p92
        $region42: #{tpu_custom_call.1} parent=31 // pred_check_branch
          %215 = sbr.rel (%p213) target = $region44
        $region43: #{tpu_custom_call.1} parent=31 // pred_region
          %216 = dma.done %s209, 256
        $region44: #{tpu_custom_call.1} parent=31 // pred_fallthru
          _
        %217 = sfence
        %p218 = pneg %p40
        %p219 = pneg %p37
        %s220 = sand.u32 %s53, 1
        %s221 = scalar_lea.sflag [#allocation3], %s220
        %s222 = sand.u32 %s53, 1
        %s223 = smul.addr %s222, 16
        %s224 = scalar_lea.vmem [#allocation6], %s223
        %p225 = pneg %p66
        %p226 = pneg %p63
        %s227 = sand.u32 %s79, 1
        %s228 = scalar_lea.sflag [#allocation8], %s227
        %s229 = sand.u32 %s79, 1
        %s230 = smul.addr %s229, 16
        %s231 = scalar_lea.vmem [#allocation7], %s230
        %p232 = pneg %p92
        %p233 = pneg %p89
        %p234 = pneg %p118
        %p235 = pneg %p115
        %s236 = sand.u32 %s105, 1
        %s237 = scalar_lea.sflag [#allocation4], %s236
        %s238 = sand.u32 %s105, 1
        %s239 = smul.addr %s238, 16
        %s240 = scalar_lea.vmem [#allocation9], %s239
        %s241 = smul.u32 2, %s24
        %s242 = smul.u32 2, %s24
        %s243 = smul.u32 2, %s24
        %s244 = sld [smem:[#allocation2]]
        %s245 = sld [smem:[#allocation2 + $0x1]]
        %s246 = sld [smem:[#allocation2 + $0x2]]
        %s247 = sld [smem:[#allocation2 + $0x3]]
        %s248 = sld [smem:[#allocation2 + $0x4]]
        %s249 = sld [smem:[#allocation2 + $0x5]]
        %s250 = sld [smem:[#allocation2 + $0x6]]
        %s251 = sld [smem:[#allocation2 + $0x7]]
        %s252 = sld [smem:[#allocation2 + $0x8]]
        %s253 = sld [smem:[#allocation2 + $0x9]]
        %s254 = sld [smem:[#allocation2 + $0xa]]
        %s255 = sld [smem:[#allocation2 + $0xb]]
        %s256 = sld [smem:[#allocation2 + $0xc]]
        %s257 = sld [smem:[#allocation2 + $0xd]]
        %s258 = sld [smem:[#allocation2 + $0xe]]
        %s259 = sld [smem:[#allocation2 + $0xf]]
        %s260 = sld [smem:[#allocation2 + $0x10]]
        %s261 = sld [smem:[#allocation2 + $0x11]]
        %s262 = sld [smem:[#allocation2 + $0x12]]
        %s263 = sld [smem:[#allocation2 + $0x13]]
        %s264 = sld [smem:[#allocation2 + $0x14]]
        %s265 = sld [smem:[#allocation2 + $0x15]]
        %s266 = sld [smem:[#allocation2 + $0x16]]
        %s267 = sld [smem:[#allocation2 + $0x17]]
        %s268 = sld [smem:[#allocation2 + $0x18]]
        %s269 = sld [smem:[#allocation2 + $0x19]]
        %s270 = sld [smem:[#allocation2 + $0x1a]]
        %s271 = sld [smem:[#allocation2 + $0x1b]]
        %s272 = sld [smem:[#allocation2 + $0x1c]]
        %s273 = sld [smem:[#allocation2 + $0x1d]]
        %s274 = sld [smem:[#allocation2 + $0x1e]]
        %s275 = sld [smem:[#allocation2 + $0x1f]]
        %s276 = sld [smem:[#allocation2 + $0x20]]
        %s277 = sld [smem:[#allocation2 + $0x21]]
        %s278 = sld [smem:[#allocation2 + $0x22]]
        %s279 = sld [smem:[#allocation2 + $0x23]]
        %s280 = sld [smem:[#allocation2 + $0x24]]
        %s281 = sld [smem:[#allocation2 + $0x25]]
        %s282 = sld [smem:[#allocation2 + $0x26]]
        %s283 = sld [smem:[#allocation2 + $0x27]]
        %s284 = sld [smem:[#allocation2 + $0x28]]
        %s285 = sld [smem:[#allocation2 + $0x29]]
        %s286 = sld [smem:[#allocation2 + $0x2a]]
        %s287 = sld [smem:[#allocation2 + $0x2b]]
        %s288 = sld [smem:[#allocation2 + $0x2c]]
        %s289 = sld [smem:[#allocation2 + $0x2d]]
        %s290 = sld [smem:[#allocation2 + $0x2e]]
        %s291 = sld [smem:[#allocation2 + $0x2f]]
        %s292 = sld [smem:[#allocation2 + $0x30]]
        %s293 = sld [smem:[#allocation2 + $0x31]]
        %s294 = sld [smem:[#allocation2 + $0x32]]
        %s295 = sld [smem:[#allocation2 + $0x33]]
        %s296 = sld [smem:[#allocation2 + $0x34]]
        %s297 = sld [smem:[#allocation2 + $0x35]]
        %s298 = sld [smem:[#allocation2 + $0x36]]
        %s299 = sld [smem:[#allocation2 + $0x37]]
        %s300 = sld [smem:[#allocation2 + $0x38]]
        %s301 = sld [smem:[#allocation2 + $0x39]]
        %s302 = sld [smem:[#allocation2 + $0x3a]]
        %s303 = sld [smem:[#allocation2 + $0x3b]]
        %s304 = sld [smem:[#allocation2 + $0x3c]]
        %s305 = sld [smem:[#allocation2 + $0x3d]]
        %s306 = sld [smem:[#allocation2 + $0x3e]]
        %s307 = sld [smem:[#allocation2 + $0x3f]]
        %s308 = sld [smem:[#allocation2 + $0x40]]
        %s309 = sld [smem:[#allocation2 + $0x41]]
        %s310 = sld [smem:[#allocation2 + $0x42]]
        %s311 = sld [smem:[#allocation2 + $0x43]]
        %s312 = sld [smem:[#allocation2 + $0x44]]
        %s313 = sld [smem:[#allocation2 + $0x45]]
        %s314 = sld [smem:[#allocation2 + $0x46]]
        %s315 = sld [smem:[#allocation2 + $0x47]]
        %s316 = sld [smem:[#allocation2 + $0x48]]
        %s317 = sld [smem:[#allocation2 + $0x49]]
        %s318 = sld [smem:[#allocation2 + $0x4a]]
        %s319 = sld [smem:[#allocation2 + $0x4b]]
        %s320 = sld [smem:[#allocation2 + $0x4c]]
        %s321 = sld [smem:[#allocation2 + $0x4d]]
        %s322 = sld [smem:[#allocation2 + $0x4e]]
        %s323 = sld [smem:[#allocation2 + $0x4f]]
        %s324 = sld [smem:[#allocation2 + $0x50]]
        %s325 = sld [smem:[#allocation2 + $0x51]]
        %s326 = sld [smem:[#allocation2 + $0x52]]
        %s327 = sld [smem:[#allocation2 + $0x53]]
        %s328 = sld [smem:[#allocation2 + $0x54]]
        %s329 = sld [smem:[#allocation2 + $0x55]]
        %s330 = sld [smem:[#allocation2 + $0x56]]
        %s331 = sld [smem:[#allocation2 + $0x57]]
        %s332 = sld [smem:[#allocation2 + $0x58]]
        %s333 = sld [smem:[#allocation2 + $0x59]]
        %s334 = sld [smem:[#allocation2 + $0x5a]]
        %s335 = sld [smem:[#allocation2 + $0x5b]]
        %s336 = sld [smem:[#allocation2 + $0x5c]]
        %s337 = sld [smem:[#allocation2 + $0x5d]]
        %s338 = sld [smem:[#allocation2 + $0x5e]]
        %s339 = sld [smem:[#allocation2 + $0x5f]]
        %s340 = sld [smem:[#allocation2 + $0x60]]
        %s341 = sld [smem:[#allocation2 + $0x61]]
        %s342 = sld [smem:[#allocation2 + $0x62]]
        %s343 = sld [smem:[#allocation2 + $0x63]]
        %s344 = sld [smem:[#allocation2 + $0x64]]
        %s345 = sld [smem:[#allocation2 + $0x65]]
        %s346 = sld [smem:[#allocation2 + $0x66]]
        %s347 = sld [smem:[#allocation2 + $0x67]]
        %s348 = sld [smem:[#allocation2 + $0x68]]
        %s349 = sld [smem:[#allocation2 + $0x69]]
        %s350 = sld [smem:[#allocation2 + $0x6a]]
        %s351 = sld [smem:[#allocation2 + $0x6b]]
        %s352 = sld [smem:[#allocation2 + $0x6c]]
        %s353 = sld [smem:[#allocation2 + $0x6d]]
        %s354 = sld [smem:[#allocation2 + $0x6e]]
        %s355 = sld [smem:[#allocation2 + $0x6f]]
        %s356 = sld [smem:[#allocation2 + $0x70]]
        %s357 = sld [smem:[#allocation2 + $0x71]]
        %s358 = sld [smem:[#allocation2 + $0x72]]
        %s359 = sld [smem:[#allocation2 + $0x73]]
        %s360 = sld [smem:[#allocation2 + $0x74]]
        %s361 = sld [smem:[#allocation2 + $0x75]]
        %s362 = sld [smem:[#allocation2 + $0x76]]
        %s363 = sld [smem:[#allocation2 + $0x77]]
        %s364 = sld [smem:[#allocation2 + $0x78]]
        %s365 = sld [smem:[#allocation2 + $0x79]]
        %s366 = sld [smem:[#allocation2 + $0x7a]]
        %s367 = sld [smem:[#allocation2 + $0x7b]]
        %s368 = sld [smem:[#allocation2 + $0x7c]]
        %s369 = sld [smem:[#allocation2 + $0x7d]]
        %s370 = sld [smem:[#allocation2 + $0x7e]]
        %s371 = sld [smem:[#allocation2 + $0x7f]]
        %s372 = sld [smem:[#allocation2 + $0x80]]
        %s373 = sld [smem:[#allocation2 + $0x81]]
        %s374 = sld [smem:[#allocation2 + $0x82]]
        %s375 = sld [smem:[#allocation2 + $0x83]]
        %s376 = sld [smem:[#allocation2 + $0x84]]
        %s377 = sld [smem:[#allocation2 + $0x85]]
        %s378 = sld [smem:[#allocation2 + $0x86]]
        %s379 = sld [smem:[#allocation2 + $0x87]]
        %s380 = sld [smem:[#allocation2 + $0x88]]
        %s381 = sld [smem:[#allocation2 + $0x89]]
        %s382 = sld [smem:[#allocation2 + $0x8a]]
        %s383 = sld [smem:[#allocation2 + $0x8b]]
        %s384 = sld [smem:[#allocation2 + $0x8c]]
        %s385 = sld [smem:[#allocation2 + $0x8d]]
        %s386 = sld [smem:[#allocation2 + $0x8e]]
        %s387 = sld [smem:[#allocation2 + $0x8f]]
        %s388 = sld [smem:[#allocation2 + $0x90]]
        %s389 = sld [smem:[#allocation2 + $0x91]]
        %s390 = sld [smem:[#allocation2 + $0x92]]
        %s391 = sld [smem:[#allocation2 + $0x93]]
        %s392 = sld [smem:[#allocation2 + $0x94]]
        %s393 = sld [smem:[#allocation2 + $0x95]]
        %s394 = sld [smem:[#allocation2 + $0x96]]
        %s395 = sld [smem:[#allocation2 + $0x97]]
        %s396 = sld [smem:[#allocation2 + $0x98]]
        %s397 = sld [smem:[#allocation2 + $0x99]]
        %s398 = sld [smem:[#allocation2 + $0x9a]]
        %s399 = sld [smem:[#allocation2 + $0x9b]]
        %s400 = sld [smem:[#allocation2 + $0x9c]]
        %s401 = sld [smem:[#allocation2 + $0x9d]]
        %s402 = sld [smem:[#allocation2 + $0x9e]]
        %s403 = sld [smem:[#allocation2 + $0x9f]]
        %s404 = sld [smem:[#allocation2 + $0xa0]]
        %s405 = sld [smem:[#allocation2 + $0xa1]]
        %s406 = sld [smem:[#allocation2 + $0xa2]]
        %s407 = sld [smem:[#allocation2 + $0xa3]]
        %s408 = sld [smem:[#allocation2 + $0xa4]]
        %s409 = sld [smem:[#allocation2 + $0xa5]]
        %s410 = sld [smem:[#allocation2 + $0xa6]]
        %s411 = sld [smem:[#allocation2 + $0xa7]]
        %s412 = sld [smem:[#allocation2 + $0xa8]]
        %s413 = sld [smem:[#allocation2 + $0xa9]]
        %s414 = sld [smem:[#allocation2 + $0xaa]]
        %s415 = sld [smem:[#allocation2 + $0xab]]
        %s416 = sld [smem:[#allocation2 + $0xac]]
        %s417 = sld [smem:[#allocation2 + $0xad]]
        %s418 = sld [smem:[#allocation2 + $0xae]]
        %s419 = sld [smem:[#allocation2 + $0xaf]]
        %s420 = sld [smem:[#allocation2 + $0xb0]]
        %s421 = sld [smem:[#allocation2 + $0xb1]]
        %s422 = sld [smem:[#allocation2 + $0xb2]]
        %s423 = sld [smem:[#allocation2 + $0xb3]]
        %s424 = sld [smem:[#allocation2 + $0xb4]]
        %s425 = sld [smem:[#allocation2 + $0xb5]]
        %s426 = sld [smem:[#allocation2 + $0xb6]]
        %s427 = sld [smem:[#allocation2 + $0xb7]]
        %s428 = sld [smem:[#allocation2 + $0xb8]]
        %s429 = sld [smem:[#allocation2 + $0xb9]]
        %s430 = sld [smem:[#allocation2 + $0xba]]
        %s431 = sld [smem:[#allocation2 + $0xbb]]
        %s432 = sld [smem:[#allocation2 + $0xbc]]
        %s433 = sld [smem:[#allocation2 + $0xbd]]
        %s434 = sld [smem:[#allocation2 + $0xbe]]
        %s435 = sld [smem:[#allocation2 + $0xbf]]
        %s436 = sld [smem:[#allocation2 + $0xc0]]
        %s437 = sld [smem:[#allocation2 + $0xc1]]
        %s438 = sld [smem:[#allocation2 + $0xc2]]
        %s439 = sld [smem:[#allocation2 + $0xc3]]
        %s440 = sld [smem:[#allocation2 + $0xc4]]
        %s441 = sld [smem:[#allocation2 + $0xc5]]
        %s442 = sld [smem:[#allocation2 + $0xc6]]
        %s443 = sld [smem:[#allocation2 + $0xc7]]
        %s444 = sld [smem:[#allocation2 + $0xc8]]
        %s445 = sld [smem:[#allocation2 + $0xc9]]
        %s446 = sld [smem:[#allocation2 + $0xca]]
        %s447 = sld [smem:[#allocation2 + $0xcb]]
        %s448 = sld [smem:[#allocation2 + $0xcc]]
        %s449 = sld [smem:[#allocation2 + $0xcd]]
        %s450 = sld [smem:[#allocation2 + $0xce]]
        %s451 = sld [smem:[#allocation2 + $0xcf]]
        %s452 = sld [smem:[#allocation2 + $0xd0]]
        %s453 = sld [smem:[#allocation2 + $0xd1]]
        %s454 = sld [smem:[#allocation2 + $0xd2]]
        %s455 = sld [smem:[#allocation2 + $0xd3]]
        %s456 = sld [smem:[#allocation2 + $0xd4]]
        %s457 = sld [smem:[#allocation2 + $0xd5]]
        %s458 = sld [smem:[#allocation2 + $0xd6]]
        %s459 = sld [smem:[#allocation2 + $0xd7]]
        %s460 = sld [smem:[#allocation2 + $0xd8]]
        %s461 = sld [smem:[#allocation2 + $0xd9]]
        %s462 = sld [smem:[#allocation2 + $0xda]]
        %s463 = sld [smem:[#allocation2 + $0xdb]]
        %s464 = sld [smem:[#allocation2 + $0xdc]]
        %s465 = sld [smem:[#allocation2 + $0xdd]]
        %s466 = sld [smem:[#allocation2 + $0xde]]
        %s467 = sld [smem:[#allocation2 + $0xdf]]
        %s468 = sld [smem:[#allocation2 + $0xe0]]
        %s469 = sld [smem:[#allocation2 + $0xe1]]
        %s470 = sld [smem:[#allocation2 + $0xe2]]
        %s471 = sld [smem:[#allocation2 + $0xe3]]
        %s472 = sld [smem:[#allocation2 + $0xe4]]
        %s473 = sld [smem:[#allocation2 + $0xe5]]
        %s474 = sld [smem:[#allocation2 + $0xe6]]
        %s475 = sld [smem:[#allocation2 + $0xe7]]
        %s476 = sld [smem:[#allocation2 + $0xe8]]
        %s477 = sld [smem:[#allocation2 + $0xe9]]
        %s478 = sld [smem:[#allocation2 + $0xea]]
        %s479 = sld [smem:[#allocation2 + $0xeb]]
        %s480 = sld [smem:[#allocation2 + $0xec]]
        %s481 = sld [smem:[#allocation2 + $0xed]]
        %s482 = sld [smem:[#allocation2 + $0xee]]
        %s483 = sld [smem:[#allocation2 + $0xef]]
        %s484 = sld [smem:[#allocation2 + $0xf0]]
        %s485 = sld [smem:[#allocation2 + $0xf1]]
        %s486 = sld [smem:[#allocation2 + $0xf2]]
        %s487 = sld [smem:[#allocation2 + $0xf3]]
        %s488 = sld [smem:[#allocation2 + $0xf4]]
        %s489 = sld [smem:[#allocation2 + $0xf5]]
        %s490 = sld [smem:[#allocation2 + $0xf6]]
        %s491 = sld [smem:[#allocation2 + $0xf7]]
        %s492 = sld [smem:[#allocation2 + $0xf8]]
        %s493 = sld [smem:[#allocation2 + $0xf9]]
        %s494 = sld [smem:[#allocation2 + $0xfa]]
        %s495 = sld [smem:[#allocation2 + $0xfb]]
        %s496 = sld [smem:[#allocation2 + $0xfc]]
        %s497 = sld [smem:[#allocation2 + $0xfd]]
        %s498 = sld [smem:[#allocation2 + $0xfe]]
        %s499 = sld [smem:[#allocation2 + $0xff]]
        %s500 = sld [smem:[#allocation2 + $0x100]]
        %s501 = sld [smem:[#allocation2 + $0x101]]
        %s502 = sld [smem:[#allocation2 + $0x102]]
        %s503 = sld [smem:[#allocation2 + $0x103]]
        %s504 = sld [smem:[#allocation2 + $0x104]]
        %s505 = sld [smem:[#allocation2 + $0x105]]
        %s506 = sld [smem:[#allocation2 + $0x106]]
        %s507 = sld [smem:[#allocation2 + $0x107]]
        %s508 = sld [smem:[#allocation2 + $0x108]]
        %s509 = sld [smem:[#allocation2 + $0x109]]
        %s510 = sld [smem:[#allocation2 + $0x10a]]
        %s511 = sld [smem:[#allocation2 + $0x10b]]
        %s512 = sld [smem:[#allocation2 + $0x10c]]
        %s513 = sld [smem:[#allocation2 + $0x10d]]
        %s514 = sld [smem:[#allocation2 + $0x10e]]
        %s515 = sld [smem:[#allocation2 + $0x10f]]
        %s516 = sld [smem:[#allocation2 + $0x110]]
        %s517 = sld [smem:[#allocation2 + $0x111]]
        %s518 = sld [smem:[#allocation2 + $0x112]]
        %s519 = sld [smem:[#allocation2 + $0x113]]
        %s520 = sld [smem:[#allocation2 + $0x114]]
        %s521 = sld [smem:[#allocation2 + $0x115]]
        %s522 = sld [smem:[#allocation2 + $0x116]]
        %s523 = sld [smem:[#allocation2 + $0x117]]
        %s524 = sld [smem:[#allocation2 + $0x118]]
        %s525 = sld [smem:[#allocation2 + $0x119]]
        %s526 = sld [smem:[#allocation2 + $0x11a]]
        %s527 = sld [smem:[#allocation2 + $0x11b]]
        %s528 = sld [smem:[#allocation2 + $0x11c]]
        %s529 = sld [smem:[#allocation2 + $0x11d]]
        %s530 = sld [smem:[#allocation2 + $0x11e]]
        %s531 = sld [smem:[#allocation2 + $0x11f]]
        %s532 = sld [smem:[#allocation2 + $0x120]]
        %s533 = sld [smem:[#allocation2 + $0x121]]
        %s534 = sld [smem:[#allocation2 + $0x122]]
        %s535 = sld [smem:[#allocation2 + $0x123]]
        %s536 = sld [smem:[#allocation2 + $0x124]]
        %s537 = sld [smem:[#allocation2 + $0x125]]
        %s538 = sld [smem:[#allocation2 + $0x126]]
        %s539 = sld [smem:[#allocation2 + $0x127]]
        %s540 = sld [smem:[#allocation2 + $0x128]]
        %s541 = sld [smem:[#allocation2 + $0x129]]
        %s542 = sld [smem:[#allocation2 + $0x12a]]
        %s543 = sld [smem:[#allocation2 + $0x12b]]
        %s544 = sld [smem:[#allocation2 + $0x12c]]
        %s545 = sld [smem:[#allocation2 + $0x12d]]
        %s546 = sld [smem:[#allocation2 + $0x12e]]
        %s547 = sld [smem:[#allocation2 + $0x12f]]
        %s548 = sld [smem:[#allocation2 + $0x130]]
        %s549 = sld [smem:[#allocation2 + $0x131]]
        %s550 = sld [smem:[#allocation2 + $0x132]]
        %s551 = sld [smem:[#allocation2 + $0x133]]
        %s552 = sld [smem:[#allocation2 + $0x134]]
        %s553 = sld [smem:[#allocation2 + $0x135]]
        %s554 = sld [smem:[#allocation2 + $0x136]]
        %s555 = sld [smem:[#allocation2 + $0x137]]
        %s556 = sld [smem:[#allocation2 + $0x138]]
        %s557 = sld [smem:[#allocation2 + $0x139]]
        %s558 = sld [smem:[#allocation2 + $0x13a]]
        %s559 = sld [smem:[#allocation2 + $0x13b]]
        %s560 = sld [smem:[#allocation2 + $0x13c]]
        %s561 = sld [smem:[#allocation2 + $0x13d]]
        %s562 = sld [smem:[#allocation2 + $0x13e]]
        %s563 = sld [smem:[#allocation2 + $0x13f]]
        %s564 = sld [smem:[#allocation2 + $0x140]]
        %v565 = vld [vmem:[%s203] sm:$0xff]
        %v566 = vld [vmem:[%s203 + $0x8] sm:$0xff]
        %v567 = vld [vmem:[%s212] sm:$0xff]
        %v568 = vld [vmem:[%s212 + $0x8] sm:$0xff]
        %v569 = vstv %s244
        %v570 = vmul.f32 %v565, %v569
        %v571 = vmul.f32 %v566, %v569
        %v572 = vstv %s252
        %v573 = vmul.f32 %v567, %v572
        %v574 = vmul.f32 %v568, %v572
        %v575 = vadd.f32 %v570, %v573
        %v576 = vadd.f32 %v571, %v574
        %v577 = vstv %s260
        %v578 = vadd.f32 %v575, %v577
        %v579 = vadd.f32 %v576, %v577
        %v580 = vtanh.pop %v578
        %v581 = vtanh.pop %v579
        %v582 = vstv %s245
        %v583 = vmul.f32 %v565, %v582
        %v584 = vmul.f32 %v566, %v582
        %v585 = vstv %s253
        %v586 = vmul.f32 %v567, %v585
        %v587 = vmul.f32 %v568, %v585
        %v588 = vadd.f32 %v583, %v586
        %v589 = vadd.f32 %v584, %v587
        %v590 = vstv %s261
        %v591 = vadd.f32 %v588, %v590
        %v592 = vadd.f32 %v589, %v590
        %v593 = vtanh.pop %v591
        %v594 = vtanh.pop %v592
        %v595 = vstv %s246
        %v596 = vmul.f32 %v565, %v595
        %v597 = vmul.f32 %v566, %v595
        %v598 = vstv %s254
        %v599 = vmul.f32 %v567, %v598
        %v600 = vmul.f32 %v568, %v598
        %v601 = vadd.f32 %v596, %v599
        %v602 = vadd.f32 %v597, %v600
        %v603 = vstv %s262
        %v604 = vadd.f32 %v601, %v603
        %v605 = vadd.f32 %v602, %v603
        %v606 = vtanh.pop %v604
        %v607 = vtanh.pop %v605
        %v608 = vstv %s247
        %v609 = vmul.f32 %v565, %v608
        %v610 = vmul.f32 %v566, %v608
        %v611 = vstv %s255
        %v612 = vmul.f32 %v567, %v611
        %v613 = vmul.f32 %v568, %v611
        %v614 = vadd.f32 %v609, %v612
        %v615 = vadd.f32 %v610, %v613
        %v616 = vstv %s263
        %v617 = vadd.f32 %v614, %v616
        %v618 = vadd.f32 %v615, %v616
        %v619 = vtanh.pop %v617
        %v620 = vtanh.pop %v618
        %v621 = vstv %s248
        %v622 = vmul.f32 %v565, %v621
        %v623 = vmul.f32 %v566, %v621
        %v624 = vstv %s256
        %v625 = vmul.f32 %v567, %v624
        %v626 = vmul.f32 %v568, %v624
        %v627 = vadd.f32 %v622, %v625
        %v628 = vadd.f32 %v623, %v626
        %v629 = vstv %s264
        %v630 = vadd.f32 %v627, %v629
        %v631 = vadd.f32 %v628, %v629
        %v632 = vtanh.pop %v630
        %v633 = vtanh.pop %v631
        %v634 = vstv %s249
        %v635 = vmul.f32 %v565, %v634
        %v636 = vmul.f32 %v566, %v634
        %v637 = vstv %s257
        %v638 = vmul.f32 %v567, %v637
        %v639 = vmul.f32 %v568, %v637
        %v640 = vadd.f32 %v635, %v638
        %v641 = vadd.f32 %v636, %v639
        %v642 = vstv %s265
        %v643 = vadd.f32 %v640, %v642
        %v644 = vadd.f32 %v641, %v642
        %v645 = vtanh.pop %v643
        %v646 = vtanh.pop %v644
        %v647 = vstv %s250
        %v648 = vmul.f32 %v565, %v647
        %v649 = vmul.f32 %v566, %v647
        %v650 = vstv %s258
        %v651 = vmul.f32 %v567, %v650
        %v652 = vmul.f32 %v568, %v650
        %v653 = vadd.f32 %v648, %v651
        %v654 = vadd.f32 %v649, %v652
        %v655 = vstv %s266
        %v656 = vadd.f32 %v653, %v655
        %v657 = vadd.f32 %v654, %v655
        %v658 = vtanh.pop %v656
        %v659 = vtanh.pop %v657
        %v660 = vstv %s251
        %v661 = vmul.f32 %v565, %v660
        %v662 = vmul.f32 %v566, %v660
        %v663 = vstv %s259
        %v664 = vmul.f32 %v567, %v663
        %v665 = vmul.f32 %v568, %v663
        %v666 = vadd.f32 %v661, %v664
        %v667 = vadd.f32 %v662, %v665
        %v668 = vstv %s267
        %v669 = vadd.f32 %v666, %v668
        %v670 = vadd.f32 %v667, %v668
        %v671 = vtanh.pop %v669
        %v672 = vtanh.pop %v670
        %v673 = vstv %s268
        %v674 = vmul.f32 %v580, %v673
        %v675 = vmul.f32 %v581, %v673
        %v676 = vstv %s276
        %v677 = vmul.f32 %v593, %v676
        %v678 = vmul.f32 %v594, %v676
        %v679 = vadd.f32 %v674, %v677
        %v680 = vadd.f32 %v675, %v678
        %v681 = vstv %s284
        %v682 = vmul.f32 %v606, %v681
        %v683 = vmul.f32 %v607, %v681
        %v684 = vadd.f32 %v679, %v682
        %v685 = vadd.f32 %v680, %v683
        %v686 = vstv %s292
        %v687 = vmul.f32 %v619, %v686
        %v688 = vmul.f32 %v620, %v686
        %v689 = vadd.f32 %v684, %v687
        %v690 = vadd.f32 %v685, %v688
        %v691 = vstv %s300
        %v692 = vmul.f32 %v632, %v691
        %v693 = vmul.f32 %v633, %v691
        %v694 = vadd.f32 %v689, %v692
        %v695 = vadd.f32 %v690, %v693
        %v696 = vstv %s308
        %v697 = vmul.f32 %v645, %v696
        %v698 = vmul.f32 %v646, %v696
        %v699 = vadd.f32 %v694, %v697
        %v700 = vadd.f32 %v695, %v698
        %v701 = vstv %s316
        %v702 = vmul.f32 %v658, %v701
        %v703 = vmul.f32 %v659, %v701
        %v704 = vadd.f32 %v699, %v702
        %v705 = vadd.f32 %v700, %v703
        %v706 = vstv %s324
        %v707 = vmul.f32 %v671, %v706
        %v708 = vmul.f32 %v672, %v706
        %v709 = vadd.f32 %v704, %v707
        %v710 = vadd.f32 %v705, %v708
        %v711 = vstv %s332
        %v712 = vadd.f32 %v709, %v711
        %v713 = vadd.f32 %v710, %v711
        %v714 = vtanh.pop %v712
        %v715 = vtanh.pop %v713
        %v716 = vstv %s269
        %v717 = vmul.f32 %v580, %v716
        %v718 = vmul.f32 %v581, %v716
        %v719 = vstv %s277
        %v720 = vmul.f32 %v593, %v719
        %v721 = vmul.f32 %v594, %v719
        %v722 = vadd.f32 %v717, %v720
        %v723 = vadd.f32 %v718, %v721
        %v724 = vstv %s285
        %v725 = vmul.f32 %v606, %v724
        %v726 = vmul.f32 %v607, %v724
        %v727 = vadd.f32 %v722, %v725
        %v728 = vadd.f32 %v723, %v726
        %v729 = vstv %s293
        %v730 = vmul.f32 %v619, %v729
        %v731 = vmul.f32 %v620, %v729
        %v732 = vadd.f32 %v727, %v730
        %v733 = vadd.f32 %v728, %v731
        %v734 = vstv %s301
        %v735 = vmul.f32 %v632, %v734
        %v736 = vmul.f32 %v633, %v734
        %v737 = vadd.f32 %v732, %v735
        %v738 = vadd.f32 %v733, %v736
        %v739 = vstv %s309
        %v740 = vmul.f32 %v645, %v739
        %v741 = vmul.f32 %v646, %v739
        %v742 = vadd.f32 %v737, %v740
        %v743 = vadd.f32 %v738, %v741
        %v744 = vstv %s317
        %v745 = vmul.f32 %v658, %v744
        %v746 = vmul.f32 %v659, %v744
        %v747 = vadd.f32 %v742, %v745
        %v748 = vadd.f32 %v743, %v746
        %v749 = vstv %s325
        %v750 = vmul.f32 %v671, %v749
        %v751 = vmul.f32 %v672, %v749
        %v752 = vadd.f32 %v747, %v750
        %v753 = vadd.f32 %v748, %v751
        %v754 = vstv %s333
        %v755 = vadd.f32 %v752, %v754
        %v756 = vadd.f32 %v753, %v754
        %v757 = vtanh.pop %v755
        %v758 = vtanh.pop %v756
        %v759 = vstv %s270
        %v760 = vmul.f32 %v580, %v759
        %v761 = vmul.f32 %v581, %v759
        %v762 = vstv %s278
        %v763 = vmul.f32 %v593, %v762
        %v764 = vmul.f32 %v594, %v762
        %v765 = vadd.f32 %v760, %v763
        %v766 = vadd.f32 %v761, %v764
        %v767 = vstv %s286
        %v768 = vmul.f32 %v606, %v767
        %v769 = vmul.f32 %v607, %v767
        %v770 = vadd.f32 %v765, %v768
        %v771 = vadd.f32 %v766, %v769
        %v772 = vstv %s294
        %v773 = vmul.f32 %v619, %v772
        %v774 = vmul.f32 %v620, %v772
        %v775 = vadd.f32 %v770, %v773
        %v776 = vadd.f32 %v771, %v774
        %v777 = vstv %s302
        %v778 = vmul.f32 %v632, %v777
        %v779 = vmul.f32 %v633, %v777
        %v780 = vadd.f32 %v775, %v778
        %v781 = vadd.f32 %v776, %v779
        %v782 = vstv %s310
        %v783 = vmul.f32 %v645, %v782
        %v784 = vmul.f32 %v646, %v782
        %v785 = vadd.f32 %v780, %v783
        %v786 = vadd.f32 %v781, %v784
        %v787 = vstv %s318
        %v788 = vmul.f32 %v658, %v787
        %v789 = vmul.f32 %v659, %v787
        %v790 = vadd.f32 %v785, %v788
        %v791 = vadd.f32 %v786, %v789
        %v792 = vstv %s326
        %v793 = vmul.f32 %v671, %v792
        %v794 = vmul.f32 %v672, %v792
        %v795 = vadd.f32 %v790, %v793
        %v796 = vadd.f32 %v791, %v794
        %v797 = vstv %s334
        %v798 = vadd.f32 %v795, %v797
        %v799 = vadd.f32 %v796, %v797
        %v800 = vtanh.pop %v798
        %v801 = vtanh.pop %v799
        %v802 = vstv %s271
        %v803 = vmul.f32 %v580, %v802
        %v804 = vmul.f32 %v581, %v802
        %v805 = vstv %s279
        %v806 = vmul.f32 %v593, %v805
        %v807 = vmul.f32 %v594, %v805
        %v808 = vadd.f32 %v803, %v806
        %v809 = vadd.f32 %v804, %v807
        %v810 = vstv %s287
        %v811 = vmul.f32 %v606, %v810
        %v812 = vmul.f32 %v607, %v810
        %v813 = vadd.f32 %v808, %v811
        %v814 = vadd.f32 %v809, %v812
        %v815 = vstv %s295
        %v816 = vmul.f32 %v619, %v815
        %v817 = vmul.f32 %v620, %v815
        %v818 = vadd.f32 %v813, %v816
        %v819 = vadd.f32 %v814, %v817
        %v820 = vstv %s303
        %v821 = vmul.f32 %v632, %v820
        %v822 = vmul.f32 %v633, %v820
        %v823 = vadd.f32 %v818, %v821
        %v824 = vadd.f32 %v819, %v822
        %v825 = vstv %s311
        %v826 = vmul.f32 %v645, %v825
        %v827 = vmul.f32 %v646, %v825
        %v828 = vadd.f32 %v823, %v826
        %v829 = vadd.f32 %v824, %v827
        %v830 = vstv %s319
        %v831 = vmul.f32 %v658, %v830
        %v832 = vmul.f32 %v659, %v830
        %v833 = vadd.f32 %v828, %v831
        %v834 = vadd.f32 %v829, %v832
        %v835 = vstv %s327
        %v836 = vmul.f32 %v671, %v835
        %v837 = vmul.f32 %v672, %v835
        %v838 = vadd.f32 %v833, %v836
        %v839 = vadd.f32 %v834, %v837
        %v840 = vstv %s335
        %v841 = vadd.f32 %v838, %v840
        %v842 = vadd.f32 %v839, %v840
        %v843 = vtanh.pop %v841
        %v844 = vtanh.pop %v842
        %v845 = vstv %s272
        %v846 = vmul.f32 %v580, %v845
        %v847 = vmul.f32 %v581, %v845
        %v848 = vstv %s280
        %v849 = vmul.f32 %v593, %v848
        %v850 = vmul.f32 %v594, %v848
        %v851 = vadd.f32 %v846, %v849
        %v852 = vadd.f32 %v847, %v850
        %v853 = vstv %s288
        %v854 = vmul.f32 %v606, %v853
        %v855 = vmul.f32 %v607, %v853
        %v856 = vadd.f32 %v851, %v854
        %v857 = vadd.f32 %v852, %v855
        %v858 = vstv %s296
        %v859 = vmul.f32 %v619, %v858
        %v860 = vmul.f32 %v620, %v858
        %v861 = vadd.f32 %v856, %v859
        %v862 = vadd.f32 %v857, %v860
        %v863 = vstv %s304
        %v864 = vmul.f32 %v632, %v863
        %v865 = vmul.f32 %v633, %v863
        %v866 = vadd.f32 %v861, %v864
        %v867 = vadd.f32 %v862, %v865
        %v868 = vstv %s312
        %v869 = vmul.f32 %v645, %v868
        %v870 = vmul.f32 %v646, %v868
        %v871 = vadd.f32 %v866, %v869
        %v872 = vadd.f32 %v867, %v870
        %v873 = vstv %s320
        %v874 = vmul.f32 %v658, %v873
        %v875 = vmul.f32 %v659, %v873
        %v876 = vadd.f32 %v871, %v874
        %v877 = vadd.f32 %v872, %v875
        %v878 = vstv %s328
        %v879 = vmul.f32 %v671, %v878
        %v880 = vmul.f32 %v672, %v878
        %v881 = vadd.f32 %v876, %v879
        %v882 = vadd.f32 %v877, %v880
        %v883 = vstv %s336
        %v884 = vadd.f32 %v881, %v883
        %v885 = vadd.f32 %v882, %v883
        %v886 = vtanh.pop %v884
        %v887 = vtanh.pop %v885
        %v888 = vstv %s273
        %v889 = vmul.f32 %v580, %v888
        %v890 = vmul.f32 %v581, %v888
        %v891 = vstv %s281
        %v892 = vmul.f32 %v593, %v891
        %v893 = vmul.f32 %v594, %v891
        %v894 = vadd.f32 %v889, %v892
        %v895 = vadd.f32 %v890, %v893
        %v896 = vstv %s289
        %v897 = vmul.f32 %v606, %v896
        %v898 = vmul.f32 %v607, %v896
        %v899 = vadd.f32 %v894, %v897
        %v900 = vadd.f32 %v895, %v898
        %v901 = vstv %s297
        %v902 = vmul.f32 %v619, %v901
        %v903 = vmul.f32 %v620, %v901
        %v904 = vadd.f32 %v899, %v902
        %v905 = vadd.f32 %v900, %v903
        %v906 = vstv %s305
        %v907 = vmul.f32 %v632, %v906
        %v908 = vmul.f32 %v633, %v906
        %v909 = vadd.f32 %v904, %v907
        %v910 = vadd.f32 %v905, %v908
        %v911 = vstv %s313
        %v912 = vmul.f32 %v645, %v911
        %v913 = vmul.f32 %v646, %v911
        %v914 = vadd.f32 %v909, %v912
        %v915 = vadd.f32 %v910, %v913
        %v916 = vstv %s321
        %v917 = vmul.f32 %v658, %v916
        %v918 = vmul.f32 %v659, %v916
        %v919 = vadd.f32 %v914, %v917
        %v920 = vadd.f32 %v915, %v918
        %v921 = vstv %s329
        %v922 = vmul.f32 %v671, %v921
        %v923 = vmul.f32 %v672, %v921
        %v924 = vadd.f32 %v919, %v922
        %v925 = vadd.f32 %v920, %v923
        %v926 = vstv %s337
        %v927 = vadd.f32 %v924, %v926
        %v928 = vadd.f32 %v925, %v926
        %v929 = vtanh.pop %v927
        %v930 = vtanh.pop %v928
        %v931 = vstv %s274
        %v932 = vmul.f32 %v580, %v931
        %v933 = vmul.f32 %v581, %v931
        %v934 = vstv %s282
        %v935 = vmul.f32 %v593, %v934
        %v936 = vmul.f32 %v594, %v934
        %v937 = vadd.f32 %v932, %v935
        %v938 = vadd.f32 %v933, %v936
        %v939 = vstv %s290
        %v940 = vmul.f32 %v606, %v939
        %v941 = vmul.f32 %v607, %v939
        %v942 = vadd.f32 %v937, %v940
        %v943 = vadd.f32 %v938, %v941
        %v944 = vstv %s298
        %v945 = vmul.f32 %v619, %v944
        %v946 = vmul.f32 %v620, %v944
        %v947 = vadd.f32 %v942, %v945
        %v948 = vadd.f32 %v943, %v946
        %v949 = vstv %s306
        %v950 = vmul.f32 %v632, %v949
        %v951 = vmul.f32 %v633, %v949
        %v952 = vadd.f32 %v947, %v950
        %v953 = vadd.f32 %v948, %v951
        %v954 = vstv %s314
        %v955 = vmul.f32 %v645, %v954
        %v956 = vmul.f32 %v646, %v954
        %v957 = vadd.f32 %v952, %v955
        %v958 = vadd.f32 %v953, %v956
        %v959 = vstv %s322
        %v960 = vmul.f32 %v658, %v959
        %v961 = vmul.f32 %v659, %v959
        %v962 = vadd.f32 %v957, %v960
        %v963 = vadd.f32 %v958, %v961
        %v964 = vstv %s330
        %v965 = vmul.f32 %v671, %v964
        %v966 = vmul.f32 %v672, %v964
        %v967 = vadd.f32 %v962, %v965
        %v968 = vadd.f32 %v963, %v966
        %v969 = vstv %s338
        %v970 = vadd.f32 %v967, %v969
        %v971 = vadd.f32 %v968, %v969
        %v972 = vtanh.pop %v970
        %v973 = vtanh.pop %v971
        %v974 = vstv %s275
        %v975 = vmul.f32 %v580, %v974
        %v976 = vmul.f32 %v581, %v974
        %v977 = vstv %s283
        %v978 = vmul.f32 %v593, %v977
        %v979 = vmul.f32 %v594, %v977
        %v980 = vadd.f32 %v975, %v978
        %v981 = vadd.f32 %v976, %v979
        %v982 = vstv %s291
        %v983 = vmul.f32 %v606, %v982
        %v984 = vmul.f32 %v607, %v982
        %v985 = vadd.f32 %v980, %v983
        %v986 = vadd.f32 %v981, %v984
        %v987 = vstv %s299
        %v988 = vmul.f32 %v619, %v987
        %v989 = vmul.f32 %v620, %v987
        %v990 = vadd.f32 %v985, %v988
        %v991 = vadd.f32 %v986, %v989
        %v992 = vstv %s307
        %v993 = vmul.f32 %v632, %v992
        %v994 = vmul.f32 %v633, %v992
        %v995 = vadd.f32 %v990, %v993
        %v996 = vadd.f32 %v991, %v994
        %v997 = vstv %s315
        %v998 = vmul.f32 %v645, %v997
        %v999 = vmul.f32 %v646, %v997
        %v1000 = vadd.f32 %v995, %v998
        %v1001 = vadd.f32 %v996, %v999
        %v1002 = vstv %s323
        %v1003 = vmul.f32 %v658, %v1002
        %v1004 = vmul.f32 %v659, %v1002
        %v1005 = vadd.f32 %v1000, %v1003
        %v1006 = vadd.f32 %v1001, %v1004
        %v1007 = vstv %s331
        %v1008 = vmul.f32 %v671, %v1007
        %v1009 = vmul.f32 %v672, %v1007
        %v1010 = vadd.f32 %v1005, %v1008
        %v1011 = vadd.f32 %v1006, %v1009
        %v1012 = vstv %s339
        %v1013 = vadd.f32 %v1010, %v1012
        %v1014 = vadd.f32 %v1011, %v1012
        %v1015 = vtanh.pop %v1013
        %v1016 = vtanh.pop %v1014
        %v1017 = vstv %s340
        %v1018 = vmul.f32 %v714, %v1017
        %v1019 = vmul.f32 %v715, %v1017
        %v1020 = vstv %s348
        %v1021 = vmul.f32 %v757, %v1020
        %v1022 = vmul.f32 %v758, %v1020
        %v1023 = vadd.f32 %v1018, %v1021
        %v1024 = vadd.f32 %v1019, %v1022
        %v1025 = vstv %s356
        %v1026 = vmul.f32 %v800, %v1025
        %v1027 = vmul.f32 %v801, %v1025
        %v1028 = vadd.f32 %v1023, %v1026
        %v1029 = vadd.f32 %v1024, %v1027
        %v1030 = vstv %s364
        %v1031 = vmul.f32 %v843, %v1030
        %v1032 = vmul.f32 %v844, %v1030
        %v1033 = vadd.f32 %v1028, %v1031
        %v1034 = vadd.f32 %v1029, %v1032
        %v1035 = vstv %s372
        %v1036 = vmul.f32 %v886, %v1035
        %v1037 = vmul.f32 %v887, %v1035
        %v1038 = vadd.f32 %v1033, %v1036
        %v1039 = vadd.f32 %v1034, %v1037
        %v1040 = vstv %s380
        %v1041 = vmul.f32 %v929, %v1040
        %v1042 = vmul.f32 %v930, %v1040
        %v1043 = vadd.f32 %v1038, %v1041
        %v1044 = vadd.f32 %v1039, %v1042
        %v1045 = vstv %s388
        %v1046 = vmul.f32 %v972, %v1045
        %v1047 = vmul.f32 %v973, %v1045
        %v1048 = vadd.f32 %v1043, %v1046
        %v1049 = vadd.f32 %v1044, %v1047
        %v1050 = vstv %s396
        %v1051 = vmul.f32 %v1015, %v1050
        %v1052 = vmul.f32 %v1016, %v1050
        %v1053 = vadd.f32 %v1048, %v1051
        %v1054 = vadd.f32 %v1049, %v1052
        %v1055 = vstv %s404
        %v1056 = vadd.f32 %v1053, %v1055
        %v1057 = vadd.f32 %v1054, %v1055
        %v1058 = vtanh.pop %v1056
        %v1059 = vtanh.pop %v1057
        %v1060 = vstv %s341
        %v1061 = vmul.f32 %v714, %v1060
        %v1062 = vmul.f32 %v715, %v1060
        %v1063 = vstv %s349
        %v1064 = vmul.f32 %v757, %v1063
        %v1065 = vmul.f32 %v758, %v1063
        %v1066 = vadd.f32 %v1061, %v1064
        %v1067 = vadd.f32 %v1062, %v1065
        %v1068 = vstv %s357
        %v1069 = vmul.f32 %v800, %v1068
        %v1070 = vmul.f32 %v801, %v1068
        %v1071 = vadd.f32 %v1066, %v1069
        %v1072 = vadd.f32 %v1067, %v1070
        %v1073 = vstv %s365
        %v1074 = vmul.f32 %v843, %v1073
        %v1075 = vmul.f32 %v844, %v1073
        %v1076 = vadd.f32 %v1071, %v1074
        %v1077 = vadd.f32 %v1072, %v1075
        %v1078 = vstv %s373
        %v1079 = vmul.f32 %v886, %v1078
        %v1080 = vmul.f32 %v887, %v1078
        %v1081 = vadd.f32 %v1076, %v1079
        %v1082 = vadd.f32 %v1077, %v1080
        %v1083 = vstv %s381
        %v1084 = vmul.f32 %v929, %v1083
        %v1085 = vmul.f32 %v930, %v1083
        %v1086 = vadd.f32 %v1081, %v1084
        %v1087 = vadd.f32 %v1082, %v1085
        %v1088 = vstv %s389
        %v1089 = vmul.f32 %v972, %v1088
        %v1090 = vmul.f32 %v973, %v1088
        %v1091 = vadd.f32 %v1086, %v1089
        %v1092 = vadd.f32 %v1087, %v1090
        %v1093 = vstv %s397
        %v1094 = vmul.f32 %v1015, %v1093
        %v1095 = vmul.f32 %v1016, %v1093
        %v1096 = vadd.f32 %v1091, %v1094
        %v1097 = vadd.f32 %v1092, %v1095
        %v1098 = vstv %s405
        %v1099 = vadd.f32 %v1096, %v1098
        %v1100 = vadd.f32 %v1097, %v1098
        %v1101 = vtanh.pop %v1099
        %v1102 = vtanh.pop %v1100
        %v1103 = vstv %s342
        %v1104 = vmul.f32 %v714, %v1103
        %v1105 = vmul.f32 %v715, %v1103
        %v1106 = vstv %s350
        %v1107 = vmul.f32 %v757, %v1106
        %v1108 = vmul.f32 %v758, %v1106
        %v1109 = vadd.f32 %v1104, %v1107
        %v1110 = vadd.f32 %v1105, %v1108
        %v1111 = vstv %s358
        %v1112 = vmul.f32 %v800, %v1111
        %v1113 = vmul.f32 %v801, %v1111
        %v1114 = vadd.f32 %v1109, %v1112
        %v1115 = vadd.f32 %v1110, %v1113
        %v1116 = vstv %s366
        %v1117 = vmul.f32 %v843, %v1116
        %v1118 = vmul.f32 %v844, %v1116
        %v1119 = vadd.f32 %v1114, %v1117
        %v1120 = vadd.f32 %v1115, %v1118
        %v1121 = vstv %s374
        %v1122 = vmul.f32 %v886, %v1121
        %v1123 = vmul.f32 %v887, %v1121
        %v1124 = vadd.f32 %v1119, %v1122
        %v1125 = vadd.f32 %v1120, %v1123
        %v1126 = vstv %s382
        %v1127 = vmul.f32 %v929, %v1126
        %v1128 = vmul.f32 %v930, %v1126
        %v1129 = vadd.f32 %v1124, %v1127
        %v1130 = vadd.f32 %v1125, %v1128
        %v1131 = vstv %s390
        %v1132 = vmul.f32 %v972, %v1131
        %v1133 = vmul.f32 %v973, %v1131
        %v1134 = vadd.f32 %v1129, %v1132
        %v1135 = vadd.f32 %v1130, %v1133
        %v1136 = vstv %s398
        %v1137 = vmul.f32 %v1015, %v1136
        %v1138 = vmul.f32 %v1016, %v1136
        %v1139 = vadd.f32 %v1134, %v1137
        %v1140 = vadd.f32 %v1135, %v1138
        %v1141 = vstv %s406
        %v1142 = vadd.f32 %v1139, %v1141
        %v1143 = vadd.f32 %v1140, %v1141
        %v1144 = vtanh.pop %v1142
        %v1145 = vtanh.pop %v1143
        %v1146 = vstv %s343
        %v1147 = vmul.f32 %v714, %v1146
        %v1148 = vmul.f32 %v715, %v1146
        %v1149 = vstv %s351
        %v1150 = vmul.f32 %v757, %v1149
        %v1151 = vmul.f32 %v758, %v1149
        %v1152 = vadd.f32 %v1147, %v1150
        %v1153 = vadd.f32 %v1148, %v1151
        %v1154 = vstv %s359
        %v1155 = vmul.f32 %v800, %v1154
        %v1156 = vmul.f32 %v801, %v1154
        %v1157 = vadd.f32 %v1152, %v1155
        %v1158 = vadd.f32 %v1153, %v1156
        %v1159 = vstv %s367
        %v1160 = vmul.f32 %v843, %v1159
        %v1161 = vmul.f32 %v844, %v1159
        %v1162 = vadd.f32 %v1157, %v1160
        %v1163 = vadd.f32 %v1158, %v1161
        %v1164 = vstv %s375
        %v1165 = vmul.f32 %v886, %v1164
        %v1166 = vmul.f32 %v887, %v1164
        %v1167 = vadd.f32 %v1162, %v1165
        %v1168 = vadd.f32 %v1163, %v1166
        %v1169 = vstv %s383
        %v1170 = vmul.f32 %v929, %v1169
        %v1171 = vmul.f32 %v930, %v1169
        %v1172 = vadd.f32 %v1167, %v1170
        %v1173 = vadd.f32 %v1168, %v1171
        %v1174 = vstv %s391
        %v1175 = vmul.f32 %v972, %v1174
        %v1176 = vmul.f32 %v973, %v1174
        %v1177 = vadd.f32 %v1172, %v1175
        %v1178 = vadd.f32 %v1173, %v1176
        %v1179 = vstv %s399
        %v1180 = vmul.f32 %v1015, %v1179
        %v1181 = vmul.f32 %v1016, %v1179
        %v1182 = vadd.f32 %v1177, %v1180
        %v1183 = vadd.f32 %v1178, %v1181
        %v1184 = vstv %s407
        %v1185 = vadd.f32 %v1182, %v1184
        %v1186 = vadd.f32 %v1183, %v1184
        %v1187 = vtanh.pop %v1185
        %v1188 = vtanh.pop %v1186
        %v1189 = vstv %s344
        %v1190 = vmul.f32 %v714, %v1189
        %v1191 = vmul.f32 %v715, %v1189
        %v1192 = vstv %s352
        %v1193 = vmul.f32 %v757, %v1192
        %v1194 = vmul.f32 %v758, %v1192
        %v1195 = vadd.f32 %v1190, %v1193
        %v1196 = vadd.f32 %v1191, %v1194
        %v1197 = vstv %s360
        %v1198 = vmul.f32 %v800, %v1197
        %v1199 = vmul.f32 %v801, %v1197
        %v1200 = vadd.f32 %v1195, %v1198
        %v1201 = vadd.f32 %v1196, %v1199
        %v1202 = vstv %s368
        %v1203 = vmul.f32 %v843, %v1202
        %v1204 = vmul.f32 %v844, %v1202
        %v1205 = vadd.f32 %v1200, %v1203
        %v1206 = vadd.f32 %v1201, %v1204
        %v1207 = vstv %s376
        %v1208 = vmul.f32 %v886, %v1207
        %v1209 = vmul.f32 %v887, %v1207
        %v1210 = vadd.f32 %v1205, %v1208
        %v1211 = vadd.f32 %v1206, %v1209
        %v1212 = vstv %s384
        %v1213 = vmul.f32 %v929, %v1212
        %v1214 = vmul.f32 %v930, %v1212
        %v1215 = vadd.f32 %v1210, %v1213
        %v1216 = vadd.f32 %v1211, %v1214
        %v1217 = vstv %s392
        %v1218 = vmul.f32 %v972, %v1217
        %v1219 = vmul.f32 %v973, %v1217
        %v1220 = vadd.f32 %v1215, %v1218
        %v1221 = vadd.f32 %v1216, %v1219
        %v1222 = vstv %s400
        %v1223 = vmul.f32 %v1015, %v1222
        %v1224 = vmul.f32 %v1016, %v1222
        %v1225 = vadd.f32 %v1220, %v1223
        %v1226 = vadd.f32 %v1221, %v1224
        %v1227 = vstv %s408
        %v1228 = vadd.f32 %v1225, %v1227
        %v1229 = vadd.f32 %v1226, %v1227
        %v1230 = vtanh.pop %v1228
        %v1231 = vtanh.pop %v1229
        %v1232 = vstv %s345
        %v1233 = vmul.f32 %v714, %v1232
        %v1234 = vmul.f32 %v715, %v1232
        %v1235 = vstv %s353
        %v1236 = vmul.f32 %v757, %v1235
        %v1237 = vmul.f32 %v758, %v1235
        %v1238 = vadd.f32 %v1233, %v1236
        %v1239 = vadd.f32 %v1234, %v1237
        %v1240 = vstv %s361
        %v1241 = vmul.f32 %v800, %v1240
        %v1242 = vmul.f32 %v801, %v1240
        %v1243 = vadd.f32 %v1238, %v1241
        %v1244 = vadd.f32 %v1239, %v1242
        %v1245 = vstv %s369
        %v1246 = vmul.f32 %v843, %v1245
        %v1247 = vmul.f32 %v844, %v1245
        %v1248 = vadd.f32 %v1243, %v1246
        %v1249 = vadd.f32 %v1244, %v1247
        %v1250 = vstv %s377
        %v1251 = vmul.f32 %v886, %v1250
        %v1252 = vmul.f32 %v887, %v1250
        %v1253 = vadd.f32 %v1248, %v1251
        %v1254 = vadd.f32 %v1249, %v1252
        %v1255 = vstv %s385
        %v1256 = vmul.f32 %v929, %v1255
        %v1257 = vmul.f32 %v930, %v1255
        %v1258 = vadd.f32 %v1253, %v1256
        %v1259 = vadd.f32 %v1254, %v1257
        %v1260 = vstv %s393
        %v1261 = vmul.f32 %v972, %v1260
        %v1262 = vmul.f32 %v973, %v1260
        %v1263 = vadd.f32 %v1258, %v1261
        %v1264 = vadd.f32 %v1259, %v1262
        %v1265 = vstv %s401
        %v1266 = vmul.f32 %v1015, %v1265
        %v1267 = vmul.f32 %v1016, %v1265
        %v1268 = vadd.f32 %v1263, %v1266
        %v1269 = vadd.f32 %v1264, %v1267
        %v1270 = vstv %s409
        %v1271 = vadd.f32 %v1268, %v1270
        %v1272 = vadd.f32 %v1269, %v1270
        %v1273 = vtanh.pop %v1271
        %v1274 = vtanh.pop %v1272
        %v1275 = vstv %s346
        %v1276 = vmul.f32 %v714, %v1275
        %v1277 = vmul.f32 %v715, %v1275
        %v1278 = vstv %s354
        %v1279 = vmul.f32 %v757, %v1278
        %v1280 = vmul.f32 %v758, %v1278
        %v1281 = vadd.f32 %v1276, %v1279
        %v1282 = vadd.f32 %v1277, %v1280
        %v1283 = vstv %s362
        %v1284 = vmul.f32 %v800, %v1283
        %v1285 = vmul.f32 %v801, %v1283
        %v1286 = vadd.f32 %v1281, %v1284
        %v1287 = vadd.f32 %v1282, %v1285
        %v1288 = vstv %s370
        %v1289 = vmul.f32 %v843, %v1288
        %v1290 = vmul.f32 %v844, %v1288
        %v1291 = vadd.f32 %v1286, %v1289
        %v1292 = vadd.f32 %v1287, %v1290
        %v1293 = vstv %s378
        %v1294 = vmul.f32 %v886, %v1293
        %v1295 = vmul.f32 %v887, %v1293
        %v1296 = vadd.f32 %v1291, %v1294
        %v1297 = vadd.f32 %v1292, %v1295
        %v1298 = vstv %s386
        %v1299 = vmul.f32 %v929, %v1298
        %v1300 = vmul.f32 %v930, %v1298
        %v1301 = vadd.f32 %v1296, %v1299
        %v1302 = vadd.f32 %v1297, %v1300
        %v1303 = vstv %s394
        %v1304 = vmul.f32 %v972, %v1303
        %v1305 = vmul.f32 %v973, %v1303
        %v1306 = vadd.f32 %v1301, %v1304
        %v1307 = vadd.f32 %v1302, %v1305
        %v1308 = vstv %s402
        %v1309 = vmul.f32 %v1015, %v1308
        %v1310 = vmul.f32 %v1016, %v1308
        %v1311 = vadd.f32 %v1306, %v1309
        %v1312 = vadd.f32 %v1307, %v1310
        %v1313 = vstv %s410
        %v1314 = vadd.f32 %v1311, %v1313
        %v1315 = vadd.f32 %v1312, %v1313
        %v1316 = vtanh.pop %v1314
        %v1317 = vtanh.pop %v1315
        %v1318 = vstv %s347
        %v1319 = vmul.f32 %v714, %v1318
        %v1320 = vmul.f32 %v715, %v1318
        %v1321 = vstv %s355
        %v1322 = vmul.f32 %v757, %v1321
        %v1323 = vmul.f32 %v758, %v1321
        %v1324 = vadd.f32 %v1319, %v1322
        %v1325 = vadd.f32 %v1320, %v1323
        %v1326 = vstv %s363
        %v1327 = vmul.f32 %v800, %v1326
        %v1328 = vmul.f32 %v801, %v1326
        %v1329 = vadd.f32 %v1324, %v1327
        %v1330 = vadd.f32 %v1325, %v1328
        %v1331 = vstv %s371
        %v1332 = vmul.f32 %v843, %v1331
        %v1333 = vmul.f32 %v844, %v1331
        %v1334 = vadd.f32 %v1329, %v1332
        %v1335 = vadd.f32 %v1330, %v1333
        %v1336 = vstv %s379
        %v1337 = vmul.f32 %v886, %v1336
        %v1338 = vmul.f32 %v887, %v1336
        %v1339 = vadd.f32 %v1334, %v1337
        %v1340 = vadd.f32 %v1335, %v1338
        %v1341 = vstv %s387
        %v1342 = vmul.f32 %v929, %v1341
        %v1343 = vmul.f32 %v930, %v1341
        %v1344 = vadd.f32 %v1339, %v1342
        %v1345 = vadd.f32 %v1340, %v1343
        %v1346 = vstv %s395
        %v1347 = vmul.f32 %v972, %v1346
        %v1348 = vmul.f32 %v973, %v1346
        %v1349 = vadd.f32 %v1344, %v1347
        %v1350 = vadd.f32 %v1345, %v1348
        %v1351 = vstv %s403
        %v1352 = vmul.f32 %v1015, %v1351
        %v1353 = vmul.f32 %v1016, %v1351
        %v1354 = vadd.f32 %v1349, %v1352
        %v1355 = vadd.f32 %v1350, %v1353
        %v1356 = vstv %s411
        %v1357 = vadd.f32 %v1354, %v1356
        %v1358 = vadd.f32 %v1355, %v1356
        %v1359 = vtanh.pop %v1357
        %v1360 = vtanh.pop %v1358
        %v1361 = vstv %s412
        %v1362 = vmul.f32 %v1058, %v1361
        %v1363 = vmul.f32 %v1059, %v1361
        %v1364 = vstv %s420
        %v1365 = vmul.f32 %v1101, %v1364
        %v1366 = vmul.f32 %v1102, %v1364
        %v1367 = vadd.f32 %v1362, %v1365
        %v1368 = vadd.f32 %v1363, %v1366
        %v1369 = vstv %s428
        %v1370 = vmul.f32 %v1144, %v1369
        %v1371 = vmul.f32 %v1145, %v1369
        %v1372 = vadd.f32 %v1367, %v1370
        %v1373 = vadd.f32 %v1368, %v1371
        %v1374 = vstv %s436
        %v1375 = vmul.f32 %v1187, %v1374
        %v1376 = vmul.f32 %v1188, %v1374
        %v1377 = vadd.f32 %v1372, %v1375
        %v1378 = vadd.f32 %v1373, %v1376
        %v1379 = vstv %s444
        %v1380 = vmul.f32 %v1230, %v1379
        %v1381 = vmul.f32 %v1231, %v1379
        %v1382 = vadd.f32 %v1377, %v1380
        %v1383 = vadd.f32 %v1378, %v1381
        %v1384 = vstv %s452
        %v1385 = vmul.f32 %v1273, %v1384
        %v1386 = vmul.f32 %v1274, %v1384
        %v1387 = vadd.f32 %v1382, %v1385
        %v1388 = vadd.f32 %v1383, %v1386
        %v1389 = vstv %s460
        %v1390 = vmul.f32 %v1316, %v1389
        %v1391 = vmul.f32 %v1317, %v1389
        %v1392 = vadd.f32 %v1387, %v1390
        %v1393 = vadd.f32 %v1388, %v1391
        %v1394 = vstv %s468
        %v1395 = vmul.f32 %v1359, %v1394
        %v1396 = vmul.f32 %v1360, %v1394
        %v1397 = vadd.f32 %v1392, %v1395
        %v1398 = vadd.f32 %v1393, %v1396
        %v1399 = vstv %s476
        %v1400 = vadd.f32 %v1397, %v1399
        %v1401 = vadd.f32 %v1398, %v1399
        %v1402 = vtanh.pop %v1400
        %v1403 = vtanh.pop %v1401
        %v1404 = vstv %s413
        %v1405 = vmul.f32 %v1058, %v1404
        %v1406 = vmul.f32 %v1059, %v1404
        %v1407 = vstv %s421
        %v1408 = vmul.f32 %v1101, %v1407
        %v1409 = vmul.f32 %v1102, %v1407
        %v1410 = vadd.f32 %v1405, %v1408
        %v1411 = vadd.f32 %v1406, %v1409
        %v1412 = vstv %s429
        %v1413 = vmul.f32 %v1144, %v1412
        %v1414 = vmul.f32 %v1145, %v1412
        %v1415 = vadd.f32 %v1410, %v1413
        %v1416 = vadd.f32 %v1411, %v1414
        %v1417 = vstv %s437
        %v1418 = vmul.f32 %v1187, %v1417
        %v1419 = vmul.f32 %v1188, %v1417
        %v1420 = vadd.f32 %v1415, %v1418
        %v1421 = vadd.f32 %v1416, %v1419
        %v1422 = vstv %s445
        %v1423 = vmul.f32 %v1230, %v1422
        %v1424 = vmul.f32 %v1231, %v1422
        %v1425 = vadd.f32 %v1420, %v1423
        %v1426 = vadd.f32 %v1421, %v1424
        %v1427 = vstv %s453
        %v1428 = vmul.f32 %v1273, %v1427
        %v1429 = vmul.f32 %v1274, %v1427
        %v1430 = vadd.f32 %v1425, %v1428
        %v1431 = vadd.f32 %v1426, %v1429
        %v1432 = vstv %s461
        %v1433 = vmul.f32 %v1316, %v1432
        %v1434 = vmul.f32 %v1317, %v1432
        %v1435 = vadd.f32 %v1430, %v1433
        %v1436 = vadd.f32 %v1431, %v1434
        %v1437 = vstv %s469
        %v1438 = vmul.f32 %v1359, %v1437
        %v1439 = vmul.f32 %v1360, %v1437
        %v1440 = vadd.f32 %v1435, %v1438
        %v1441 = vadd.f32 %v1436, %v1439
        %v1442 = vstv %s477
        %v1443 = vadd.f32 %v1440, %v1442
        %v1444 = vadd.f32 %v1441, %v1442
        %v1445 = vtanh.pop %v1443
        %v1446 = vtanh.pop %v1444
        %v1447 = vstv %s414
        %v1448 = vmul.f32 %v1058, %v1447
        %v1449 = vmul.f32 %v1059, %v1447
        %v1450 = vstv %s422
        %v1451 = vmul.f32 %v1101, %v1450
        %v1452 = vmul.f32 %v1102, %v1450
        %v1453 = vadd.f32 %v1448, %v1451
        %v1454 = vadd.f32 %v1449, %v1452
        %v1455 = vstv %s430
        %v1456 = vmul.f32 %v1144, %v1455
        %v1457 = vmul.f32 %v1145, %v1455
        %v1458 = vadd.f32 %v1453, %v1456
        %v1459 = vadd.f32 %v1454, %v1457
        %v1460 = vstv %s438
        %v1461 = vmul.f32 %v1187, %v1460
        %v1462 = vmul.f32 %v1188, %v1460
        %v1463 = vadd.f32 %v1458, %v1461
        %v1464 = vadd.f32 %v1459, %v1462
        %v1465 = vstv %s446
        %v1466 = vmul.f32 %v1230, %v1465
        %v1467 = vmul.f32 %v1231, %v1465
        %v1468 = vadd.f32 %v1463, %v1466
        %v1469 = vadd.f32 %v1464, %v1467
        %v1470 = vstv %s454
        %v1471 = vmul.f32 %v1273, %v1470
        %v1472 = vmul.f32 %v1274, %v1470
        %v1473 = vadd.f32 %v1468, %v1471
        %v1474 = vadd.f32 %v1469, %v1472
        %v1475 = vstv %s462
        %v1476 = vmul.f32 %v1316, %v1475
        %v1477 = vmul.f32 %v1317, %v1475
        %v1478 = vadd.f32 %v1473, %v1476
        %v1479 = vadd.f32 %v1474, %v1477
        %v1480 = vstv %s470
        %v1481 = vmul.f32 %v1359, %v1480
        %v1482 = vmul.f32 %v1360, %v1480
        %v1483 = vadd.f32 %v1478, %v1481
        %v1484 = vadd.f32 %v1479, %v1482
        %v1485 = vstv %s478
        %v1486 = vadd.f32 %v1483, %v1485
        %v1487 = vadd.f32 %v1484, %v1485
        %v1488 = vtanh.pop %v1486
        %v1489 = vtanh.pop %v1487
        %v1490 = vstv %s415
        %v1491 = vmul.f32 %v1058, %v1490
        %v1492 = vmul.f32 %v1059, %v1490
        %v1493 = vstv %s423
        %v1494 = vmul.f32 %v1101, %v1493
        %v1495 = vmul.f32 %v1102, %v1493
        %v1496 = vadd.f32 %v1491, %v1494
        %v1497 = vadd.f32 %v1492, %v1495
        %v1498 = vstv %s431
        %v1499 = vmul.f32 %v1144, %v1498
        %v1500 = vmul.f32 %v1145, %v1498
        %v1501 = vadd.f32 %v1496, %v1499
        %v1502 = vadd.f32 %v1497, %v1500
        %v1503 = vstv %s439
        %v1504 = vmul.f32 %v1187, %v1503
        %v1505 = vmul.f32 %v1188, %v1503
        %v1506 = vadd.f32 %v1501, %v1504
        %v1507 = vadd.f32 %v1502, %v1505
        %v1508 = vstv %s447
        %v1509 = vmul.f32 %v1230, %v1508
        %v1510 = vmul.f32 %v1231, %v1508
        %v1511 = vadd.f32 %v1506, %v1509
        %v1512 = vadd.f32 %v1507, %v1510
        %v1513 = vstv %s455
        %v1514 = vmul.f32 %v1273, %v1513
        %v1515 = vmul.f32 %v1274, %v1513
        %v1516 = vadd.f32 %v1511, %v1514
        %v1517 = vadd.f32 %v1512, %v1515
        %v1518 = vstv %s463
        %v1519 = vmul.f32 %v1316, %v1518
        %v1520 = vmul.f32 %v1317, %v1518
        %v1521 = vadd.f32 %v1516, %v1519
        %v1522 = vadd.f32 %v1517, %v1520
        %v1523 = vstv %s471
        %v1524 = vmul.f32 %v1359, %v1523
        %v1525 = vmul.f32 %v1360, %v1523
        %v1526 = vadd.f32 %v1521, %v1524
        %v1527 = vadd.f32 %v1522, %v1525
        %v1528 = vstv %s479
        %v1529 = vadd.f32 %v1526, %v1528
        %v1530 = vadd.f32 %v1527, %v1528
        %v1531 = vtanh.pop %v1529
        %v1532 = vtanh.pop %v1530
        %v1533 = vstv %s416
        %v1534 = vmul.f32 %v1058, %v1533
        %v1535 = vmul.f32 %v1059, %v1533
        %v1536 = vstv %s424
        %v1537 = vmul.f32 %v1101, %v1536
        %v1538 = vmul.f32 %v1102, %v1536
        %v1539 = vadd.f32 %v1534, %v1537
        %v1540 = vadd.f32 %v1535, %v1538
        %v1541 = vstv %s432
        %v1542 = vmul.f32 %v1144, %v1541
        %v1543 = vmul.f32 %v1145, %v1541
        %v1544 = vadd.f32 %v1539, %v1542
        %v1545 = vadd.f32 %v1540, %v1543
        %v1546 = vstv %s440
        %v1547 = vmul.f32 %v1187, %v1546
        %v1548 = vmul.f32 %v1188, %v1546
        %v1549 = vadd.f32 %v1544, %v1547
        %v1550 = vadd.f32 %v1545, %v1548
        %v1551 = vstv %s448
        %v1552 = vmul.f32 %v1230, %v1551
        %v1553 = vmul.f32 %v1231, %v1551
        %v1554 = vadd.f32 %v1549, %v1552
        %v1555 = vadd.f32 %v1550, %v1553
        %v1556 = vstv %s456
        %v1557 = vmul.f32 %v1273, %v1556
        %v1558 = vmul.f32 %v1274, %v1556
        %v1559 = vadd.f32 %v1554, %v1557
        %v1560 = vadd.f32 %v1555, %v1558
        %v1561 = vstv %s464
        %v1562 = vmul.f32 %v1316, %v1561
        %v1563 = vmul.f32 %v1317, %v1561
        %v1564 = vadd.f32 %v1559, %v1562
        %v1565 = vadd.f32 %v1560, %v1563
        %v1566 = vstv %s472
        %v1567 = vmul.f32 %v1359, %v1566
        %v1568 = vmul.f32 %v1360, %v1566
        %v1569 = vadd.f32 %v1564, %v1567
        %v1570 = vadd.f32 %v1565, %v1568
        %v1571 = vstv %s480
        %v1572 = vadd.f32 %v1569, %v1571
        %v1573 = vadd.f32 %v1570, %v1571
        %v1574 = vtanh.pop %v1572
        %v1575 = vtanh.pop %v1573
        %v1576 = vstv %s417
        %v1577 = vmul.f32 %v1058, %v1576
        %v1578 = vmul.f32 %v1059, %v1576
        %v1579 = vstv %s425
        %v1580 = vmul.f32 %v1101, %v1579
        %v1581 = vmul.f32 %v1102, %v1579
        %v1582 = vadd.f32 %v1577, %v1580
        %v1583 = vadd.f32 %v1578, %v1581
        %v1584 = vstv %s433
        %v1585 = vmul.f32 %v1144, %v1584
        %v1586 = vmul.f32 %v1145, %v1584
        %v1587 = vadd.f32 %v1582, %v1585
        %v1588 = vadd.f32 %v1583, %v1586
        %v1589 = vstv %s441
        %v1590 = vmul.f32 %v1187, %v1589
        %v1591 = vmul.f32 %v1188, %v1589
        %v1592 = vadd.f32 %v1587, %v1590
        %v1593 = vadd.f32 %v1588, %v1591
        %v1594 = vstv %s449
        %v1595 = vmul.f32 %v1230, %v1594
        %v1596 = vmul.f32 %v1231, %v1594
        %v1597 = vadd.f32 %v1592, %v1595
        %v1598 = vadd.f32 %v1593, %v1596
        %v1599 = vstv %s457
        %v1600 = vmul.f32 %v1273, %v1599
        %v1601 = vmul.f32 %v1274, %v1599
        %v1602 = vadd.f32 %v1597, %v1600
        %v1603 = vadd.f32 %v1598, %v1601
        %v1604 = vstv %s465
        %v1605 = vmul.f32 %v1316, %v1604
        %v1606 = vmul.f32 %v1317, %v1604
        %v1607 = vadd.f32 %v1602, %v1605
        %v1608 = vadd.f32 %v1603, %v1606
        %v1609 = vstv %s473
        %v1610 = vmul.f32 %v1359, %v1609
        %v1611 = vmul.f32 %v1360, %v1609
        %v1612 = vadd.f32 %v1607, %v1610
        %v1613 = vadd.f32 %v1608, %v1611
        %v1614 = vstv %s481
        %v1615 = vadd.f32 %v1612, %v1614
        %v1616 = vadd.f32 %v1613, %v1614
        %v1617 = vtanh.pop %v1615
        %v1618 = vtanh.pop %v1616
        %v1619 = vstv %s418
        %v1620 = vmul.f32 %v1058, %v1619
        %v1621 = vmul.f32 %v1059, %v1619
        %v1622 = vstv %s426
        %v1623 = vmul.f32 %v1101, %v1622
        %v1624 = vmul.f32 %v1102, %v1622
        %v1625 = vadd.f32 %v1620, %v1623
        %v1626 = vadd.f32 %v1621, %v1624
        %v1627 = vstv %s434
        %v1628 = vmul.f32 %v1144, %v1627
        %v1629 = vmul.f32 %v1145, %v1627
        %v1630 = vadd.f32 %v1625, %v1628
        %v1631 = vadd.f32 %v1626, %v1629
        %v1632 = vstv %s442
        %v1633 = vmul.f32 %v1187, %v1632
        %v1634 = vmul.f32 %v1188, %v1632
        %v1635 = vadd.f32 %v1630, %v1633
        %v1636 = vadd.f32 %v1631, %v1634
        %v1637 = vstv %s450
        %v1638 = vmul.f32 %v1230, %v1637
        %v1639 = vmul.f32 %v1231, %v1637
        %v1640 = vadd.f32 %v1635, %v1638
        %v1641 = vadd.f32 %v1636, %v1639
        %v1642 = vstv %s458
        %v1643 = vmul.f32 %v1273, %v1642
        %v1644 = vmul.f32 %v1274, %v1642
        %v1645 = vadd.f32 %v1640, %v1643
        %v1646 = vadd.f32 %v1641, %v1644
        %v1647 = vstv %s466
        %v1648 = vmul.f32 %v1316, %v1647
        %v1649 = vmul.f32 %v1317, %v1647
        %v1650 = vadd.f32 %v1645, %v1648
        %v1651 = vadd.f32 %v1646, %v1649
        %v1652 = vstv %s474
        %v1653 = vmul.f32 %v1359, %v1652
        %v1654 = vmul.f32 %v1360, %v1652
        %v1655 = vadd.f32 %v1650, %v1653
        %v1656 = vadd.f32 %v1651, %v1654
        %v1657 = vstv %s482
        %v1658 = vadd.f32 %v1655, %v1657
        %v1659 = vadd.f32 %v1656, %v1657
        %v1660 = vtanh.pop %v1658
        %v1661 = vtanh.pop %v1659
        %v1662 = vstv %s419
        %v1663 = vmul.f32 %v1058, %v1662
        %v1664 = vmul.f32 %v1059, %v1662
        %v1665 = vstv %s427
        %v1666 = vmul.f32 %v1101, %v1665
        %v1667 = vmul.f32 %v1102, %v1665
        %v1668 = vadd.f32 %v1663, %v1666
        %v1669 = vadd.f32 %v1664, %v1667
        %v1670 = vstv %s435
        %v1671 = vmul.f32 %v1144, %v1670
        %v1672 = vmul.f32 %v1145, %v1670
        %v1673 = vadd.f32 %v1668, %v1671
        %v1674 = vadd.f32 %v1669, %v1672
        %v1675 = vstv %s443
        %v1676 = vmul.f32 %v1187, %v1675
        %v1677 = vmul.f32 %v1188, %v1675
        %v1678 = vadd.f32 %v1673, %v1676
        %v1679 = vadd.f32 %v1674, %v1677
        %v1680 = vstv %s451
        %v1681 = vmul.f32 %v1230, %v1680
        %v1682 = vmul.f32 %v1231, %v1680
        %v1683 = vadd.f32 %v1678, %v1681
        %v1684 = vadd.f32 %v1679, %v1682
        %v1685 = vstv %s459
        %v1686 = vmul.f32 %v1273, %v1685
        %v1687 = vmul.f32 %v1274, %v1685
        %v1688 = vadd.f32 %v1683, %v1686
        %v1689 = vadd.f32 %v1684, %v1687
        %v1690 = vstv %s467
        %v1691 = vmul.f32 %v1316, %v1690
        %v1692 = vmul.f32 %v1317, %v1690
        %v1693 = vadd.f32 %v1688, %v1691
        %v1694 = vadd.f32 %v1689, %v1692
        %v1695 = vstv %s475
        %v1696 = vmul.f32 %v1359, %v1695
        %v1697 = vmul.f32 %v1360, %v1695
        %v1698 = vadd.f32 %v1693, %v1696
        %v1699 = vadd.f32 %v1694, %v1697
        %v1700 = vstv %s483
        %v1701 = vadd.f32 %v1698, %v1700
        %v1702 = vadd.f32 %v1699, %v1700
        %v1703 = vtanh.pop %v1701
        %v1704 = vtanh.pop %v1702
        %v1705 = vstv %s484
        %v1706 = vmul.f32 %v1402, %v1705
        %v1707 = vmul.f32 %v1403, %v1705
        %v1708 = vstv %s492
        %v1709 = vmul.f32 %v1445, %v1708
        %v1710 = vmul.f32 %v1446, %v1708
        %v1711 = vadd.f32 %v1706, %v1709
        %v1712 = vadd.f32 %v1707, %v1710
        %v1713 = vstv %s500
        %v1714 = vmul.f32 %v1488, %v1713
        %v1715 = vmul.f32 %v1489, %v1713
        %v1716 = vadd.f32 %v1711, %v1714
        %v1717 = vadd.f32 %v1712, %v1715
        %v1718 = vstv %s508
        %v1719 = vmul.f32 %v1531, %v1718
        %v1720 = vmul.f32 %v1532, %v1718
        %v1721 = vadd.f32 %v1716, %v1719
        %v1722 = vadd.f32 %v1717, %v1720
        %v1723 = vstv %s516
        %v1724 = vmul.f32 %v1574, %v1723
        %v1725 = vmul.f32 %v1575, %v1723
        %v1726 = vadd.f32 %v1721, %v1724
        %v1727 = vadd.f32 %v1722, %v1725
        %v1728 = vstv %s524
        %v1729 = vmul.f32 %v1617, %v1728
        %v1730 = vmul.f32 %v1618, %v1728
        %v1731 = vadd.f32 %v1726, %v1729
        %v1732 = vadd.f32 %v1727, %v1730
        %v1733 = vstv %s532
        %v1734 = vmul.f32 %v1660, %v1733
        %v1735 = vmul.f32 %v1661, %v1733
        %v1736 = vadd.f32 %v1731, %v1734
        %v1737 = vadd.f32 %v1732, %v1735
        %v1738 = vstv %s540
        %v1739 = vmul.f32 %v1703, %v1738
        %v1740 = vmul.f32 %v1704, %v1738
        %v1741 = vadd.f32 %v1736, %v1739
        %v1742 = vadd.f32 %v1737, %v1740
        %v1743 = vstv %s548
        %v1744 = vadd.f32 %v1741, %v1743
        %v1745 = vadd.f32 %v1742, %v1743
        %v1746 = vtanh.pop %v1744
        %v1747 = vtanh.pop %v1745
        %v1748 = vstv %s485
        %v1749 = vmul.f32 %v1402, %v1748
        %v1750 = vmul.f32 %v1403, %v1748
        %v1751 = vstv %s493
        %v1752 = vmul.f32 %v1445, %v1751
        %v1753 = vmul.f32 %v1446, %v1751
        %v1754 = vadd.f32 %v1749, %v1752
        %v1755 = vadd.f32 %v1750, %v1753
        %v1756 = vstv %s501
        %v1757 = vmul.f32 %v1488, %v1756
        %v1758 = vmul.f32 %v1489, %v1756
        %v1759 = vadd.f32 %v1754, %v1757
        %v1760 = vadd.f32 %v1755, %v1758
        %v1761 = vstv %s509
        %v1762 = vmul.f32 %v1531, %v1761
        %v1763 = vmul.f32 %v1532, %v1761
        %v1764 = vadd.f32 %v1759, %v1762
        %v1765 = vadd.f32 %v1760, %v1763
        %v1766 = vstv %s517
        %v1767 = vmul.f32 %v1574, %v1766
        %v1768 = vmul.f32 %v1575, %v1766
        %v1769 = vadd.f32 %v1764, %v1767
        %v1770 = vadd.f32 %v1765, %v1768
        %v1771 = vstv %s525
        %v1772 = vmul.f32 %v1617, %v1771
        %v1773 = vmul.f32 %v1618, %v1771
        %v1774 = vadd.f32 %v1769, %v1772
        %v1775 = vadd.f32 %v1770, %v1773
        %v1776 = vstv %s533
        %v1777 = vmul.f32 %v1660, %v1776
        %v1778 = vmul.f32 %v1661, %v1776
        %v1779 = vadd.f32 %v1774, %v1777
        %v1780 = vadd.f32 %v1775, %v1778
        %v1781 = vstv %s541
        %v1782 = vmul.f32 %v1703, %v1781
        %v1783 = vmul.f32 %v1704, %v1781
        %v1784 = vadd.f32 %v1779, %v1782
        %v1785 = vadd.f32 %v1780, %v1783
        %v1786 = vstv %s549
        %v1787 = vadd.f32 %v1784, %v1786
        %v1788 = vadd.f32 %v1785, %v1786
        %v1789 = vtanh.pop %v1787
        %v1790 = vtanh.pop %v1788
        %v1791 = vstv %s486
        %v1792 = vmul.f32 %v1402, %v1791
        %v1793 = vmul.f32 %v1403, %v1791
        %v1794 = vstv %s494
        %v1795 = vmul.f32 %v1445, %v1794
        %v1796 = vmul.f32 %v1446, %v1794
        %v1797 = vadd.f32 %v1792, %v1795
        %v1798 = vadd.f32 %v1793, %v1796
        %v1799 = vstv %s502
        %v1800 = vmul.f32 %v1488, %v1799
        %v1801 = vmul.f32 %v1489, %v1799
        %v1802 = vadd.f32 %v1797, %v1800
        %v1803 = vadd.f32 %v1798, %v1801
        %v1804 = vstv %s510
        %v1805 = vmul.f32 %v1531, %v1804
        %v1806 = vmul.f32 %v1532, %v1804
        %v1807 = vadd.f32 %v1802, %v1805
        %v1808 = vadd.f32 %v1803, %v1806
        %v1809 = vstv %s518
        %v1810 = vmul.f32 %v1574, %v1809
        %v1811 = vmul.f32 %v1575, %v1809
        %v1812 = vadd.f32 %v1807, %v1810
        %v1813 = vadd.f32 %v1808, %v1811
        %v1814 = vstv %s526
        %v1815 = vmul.f32 %v1617, %v1814
        %v1816 = vmul.f32 %v1618, %v1814
        %v1817 = vadd.f32 %v1812, %v1815
        %v1818 = vadd.f32 %v1813, %v1816
        %v1819 = vstv %s534
        %v1820 = vmul.f32 %v1660, %v1819
        %v1821 = vmul.f32 %v1661, %v1819
        %v1822 = vadd.f32 %v1817, %v1820
        %v1823 = vadd.f32 %v1818, %v1821
        %v1824 = vstv %s542
        %v1825 = vmul.f32 %v1703, %v1824
        %v1826 = vmul.f32 %v1704, %v1824
        %v1827 = vadd.f32 %v1822, %v1825
        %v1828 = vadd.f32 %v1823, %v1826
        %v1829 = vstv %s550
        %v1830 = vadd.f32 %v1827, %v1829
        %v1831 = vadd.f32 %v1828, %v1829
        %v1832 = vtanh.pop %v1830
        %v1833 = vtanh.pop %v1831
        %v1834 = vstv %s487
        %v1835 = vmul.f32 %v1402, %v1834
        %v1836 = vmul.f32 %v1403, %v1834
        %v1837 = vstv %s495
        %v1838 = vmul.f32 %v1445, %v1837
        %v1839 = vmul.f32 %v1446, %v1837
        %v1840 = vadd.f32 %v1835, %v1838
        %v1841 = vadd.f32 %v1836, %v1839
        %v1842 = vstv %s503
        %v1843 = vmul.f32 %v1488, %v1842
        %v1844 = vmul.f32 %v1489, %v1842
        %v1845 = vadd.f32 %v1840, %v1843
        %v1846 = vadd.f32 %v1841, %v1844
        %v1847 = vstv %s511
        %v1848 = vmul.f32 %v1531, %v1847
        %v1849 = vmul.f32 %v1532, %v1847
        %v1850 = vadd.f32 %v1845, %v1848
        %v1851 = vadd.f32 %v1846, %v1849
        %v1852 = vstv %s519
        %v1853 = vmul.f32 %v1574, %v1852
        %v1854 = vmul.f32 %v1575, %v1852
        %v1855 = vadd.f32 %v1850, %v1853
        %v1856 = vadd.f32 %v1851, %v1854
        %v1857 = vstv %s527
        %v1858 = vmul.f32 %v1617, %v1857
        %v1859 = vmul.f32 %v1618, %v1857
        %v1860 = vadd.f32 %v1855, %v1858
        %v1861 = vadd.f32 %v1856, %v1859
        %v1862 = vstv %s535
        %v1863 = vmul.f32 %v1660, %v1862
        %v1864 = vmul.f32 %v1661, %v1862
        %v1865 = vadd.f32 %v1860, %v1863
        %v1866 = vadd.f32 %v1861, %v1864
        %v1867 = vstv %s543
        %v1868 = vmul.f32 %v1703, %v1867
        %v1869 = vmul.f32 %v1704, %v1867
        %v1870 = vadd.f32 %v1865, %v1868
        %v1871 = vadd.f32 %v1866, %v1869
        %v1872 = vstv %s551
        %v1873 = vadd.f32 %v1870, %v1872
        %v1874 = vadd.f32 %v1871, %v1872
        %v1875 = vtanh.pop %v1873
        %v1876 = vtanh.pop %v1874
        %v1877 = vstv %s488
        %v1878 = vmul.f32 %v1402, %v1877
        %v1879 = vmul.f32 %v1403, %v1877
        %v1880 = vstv %s496
        %v1881 = vmul.f32 %v1445, %v1880
        %v1882 = vmul.f32 %v1446, %v1880
        %v1883 = vadd.f32 %v1878, %v1881
        %v1884 = vadd.f32 %v1879, %v1882
        %v1885 = vstv %s504
        %v1886 = vmul.f32 %v1488, %v1885
        %v1887 = vmul.f32 %v1489, %v1885
        %v1888 = vadd.f32 %v1883, %v1886
        %v1889 = vadd.f32 %v1884, %v1887
        %v1890 = vstv %s512
        %v1891 = vmul.f32 %v1531, %v1890
        %v1892 = vmul.f32 %v1532, %v1890
        %v1893 = vadd.f32 %v1888, %v1891
        %v1894 = vadd.f32 %v1889, %v1892
        %v1895 = vstv %s520
        %v1896 = vmul.f32 %v1574, %v1895
        %v1897 = vmul.f32 %v1575, %v1895
        %v1898 = vadd.f32 %v1893, %v1896
        %v1899 = vadd.f32 %v1894, %v1897
        %v1900 = vstv %s528
        %v1901 = vmul.f32 %v1617, %v1900
        %v1902 = vmul.f32 %v1618, %v1900
        %v1903 = vadd.f32 %v1898, %v1901
        %v1904 = vadd.f32 %v1899, %v1902
        %v1905 = vstv %s536
        %v1906 = vmul.f32 %v1660, %v1905
        %v1907 = vmul.f32 %v1661, %v1905
        %v1908 = vadd.f32 %v1903, %v1906
        %v1909 = vadd.f32 %v1904, %v1907
        %v1910 = vstv %s544
        %v1911 = vmul.f32 %v1703, %v1910
        %v1912 = vmul.f32 %v1704, %v1910
        %v1913 = vadd.f32 %v1908, %v1911
        %v1914 = vadd.f32 %v1909, %v1912
        %v1915 = vstv %s552
        %v1916 = vadd.f32 %v1913, %v1915
        %v1917 = vadd.f32 %v1914, %v1915
        %v1918 = vtanh.pop %v1916
        %v1919 = vtanh.pop %v1917
        %v1920 = vstv %s489
        %v1921 = vmul.f32 %v1402, %v1920
        %v1922 = vmul.f32 %v1403, %v1920
        %v1923 = vstv %s497
        %v1924 = vmul.f32 %v1445, %v1923
        %v1925 = vmul.f32 %v1446, %v1923
        %v1926 = vadd.f32 %v1921, %v1924
        %v1927 = vadd.f32 %v1922, %v1925
        %v1928 = vstv %s505
        %v1929 = vmul.f32 %v1488, %v1928
        %v1930 = vmul.f32 %v1489, %v1928
        %v1931 = vadd.f32 %v1926, %v1929
        %v1932 = vadd.f32 %v1927, %v1930
        %v1933 = vstv %s513
        %v1934 = vmul.f32 %v1531, %v1933
        %v1935 = vmul.f32 %v1532, %v1933
        %v1936 = vadd.f32 %v1931, %v1934
        %v1937 = vadd.f32 %v1932, %v1935
        %v1938 = vstv %s521
        %v1939 = vmul.f32 %v1574, %v1938
        %v1940 = vmul.f32 %v1575, %v1938
        %v1941 = vadd.f32 %v1936, %v1939
        %v1942 = vadd.f32 %v1937, %v1940
        %v1943 = vstv %s529
        %v1944 = vmul.f32 %v1617, %v1943
        %v1945 = vmul.f32 %v1618, %v1943
        %v1946 = vadd.f32 %v1941, %v1944
        %v1947 = vadd.f32 %v1942, %v1945
        %v1948 = vstv %s537
        %v1949 = vmul.f32 %v1660, %v1948
        %v1950 = vmul.f32 %v1661, %v1948
        %v1951 = vadd.f32 %v1946, %v1949
        %v1952 = vadd.f32 %v1947, %v1950
        %v1953 = vstv %s545
        %v1954 = vmul.f32 %v1703, %v1953
        %v1955 = vmul.f32 %v1704, %v1953
        %v1956 = vadd.f32 %v1951, %v1954
        %v1957 = vadd.f32 %v1952, %v1955
        %v1958 = vstv %s553
        %v1959 = vadd.f32 %v1956, %v1958
        %v1960 = vadd.f32 %v1957, %v1958
        %v1961 = vtanh.pop %v1959
        %v1962 = vtanh.pop %v1960
        %v1963 = vstv %s490
        %v1964 = vmul.f32 %v1402, %v1963
        %v1965 = vmul.f32 %v1403, %v1963
        %v1966 = vstv %s498
        %v1967 = vmul.f32 %v1445, %v1966
        %v1968 = vmul.f32 %v1446, %v1966
        %v1969 = vadd.f32 %v1964, %v1967
        %v1970 = vadd.f32 %v1965, %v1968
        %v1971 = vstv %s506
        %v1972 = vmul.f32 %v1488, %v1971
        %v1973 = vmul.f32 %v1489, %v1971
        %v1974 = vadd.f32 %v1969, %v1972
        %v1975 = vadd.f32 %v1970, %v1973
        %v1976 = vstv %s514
        %v1977 = vmul.f32 %v1531, %v1976
        %v1978 = vmul.f32 %v1532, %v1976
        %v1979 = vadd.f32 %v1974, %v1977
        %v1980 = vadd.f32 %v1975, %v1978
        %v1981 = vstv %s522
        %v1982 = vmul.f32 %v1574, %v1981
        %v1983 = vmul.f32 %v1575, %v1981
        %v1984 = vadd.f32 %v1979, %v1982
        %v1985 = vadd.f32 %v1980, %v1983
        %v1986 = vstv %s530
        %v1987 = vmul.f32 %v1617, %v1986
        %v1988 = vmul.f32 %v1618, %v1986
        %v1989 = vadd.f32 %v1984, %v1987
        %v1990 = vadd.f32 %v1985, %v1988
        %v1991 = vstv %s538
        %v1992 = vmul.f32 %v1660, %v1991
        %v1993 = vmul.f32 %v1661, %v1991
        %v1994 = vadd.f32 %v1989, %v1992
        %v1995 = vadd.f32 %v1990, %v1993
        %v1996 = vstv %s546
        %v1997 = vmul.f32 %v1703, %v1996
        %v1998 = vmul.f32 %v1704, %v1996
        %v1999 = vadd.f32 %v1994, %v1997
        %v2000 = vadd.f32 %v1995, %v1998
        %v2001 = vstv %s554
        %v2002 = vadd.f32 %v1999, %v2001
        %v2003 = vadd.f32 %v2000, %v2001
        %v2004 = vtanh.pop %v2002
        %v2005 = vtanh.pop %v2003
        %v2006 = vstv %s491
        %v2007 = vmul.f32 %v1402, %v2006
        %v2008 = vmul.f32 %v1403, %v2006
        %v2009 = vstv %s499
        %v2010 = vmul.f32 %v1445, %v2009
        %v2011 = vmul.f32 %v1446, %v2009
        %v2012 = vadd.f32 %v2007, %v2010
        %v2013 = vadd.f32 %v2008, %v2011
        %v2014 = vstv %s507
        %v2015 = vmul.f32 %v1488, %v2014
        %v2016 = vmul.f32 %v1489, %v2014
        %v2017 = vadd.f32 %v2012, %v2015
        %v2018 = vadd.f32 %v2013, %v2016
        %v2019 = vstv %s515
        %v2020 = vmul.f32 %v1531, %v2019
        %v2021 = vmul.f32 %v1532, %v2019
        %v2022 = vadd.f32 %v2017, %v2020
        %v2023 = vadd.f32 %v2018, %v2021
        %v2024 = vstv %s523
        %v2025 = vmul.f32 %v1574, %v2024
        %v2026 = vmul.f32 %v1575, %v2024
        %v2027 = vadd.f32 %v2022, %v2025
        %v2028 = vadd.f32 %v2023, %v2026
        %v2029 = vstv %s531
        %v2030 = vmul.f32 %v1617, %v2029
        %v2031 = vmul.f32 %v1618, %v2029
        %v2032 = vadd.f32 %v2027, %v2030
        %v2033 = vadd.f32 %v2028, %v2031
        %v2034 = vstv %s539
        %v2035 = vmul.f32 %v1660, %v2034
        %v2036 = vmul.f32 %v1661, %v2034
        %v2037 = vadd.f32 %v2032, %v2035
        %v2038 = vadd.f32 %v2033, %v2036
        %v2039 = vstv %s547
        %v2040 = vmul.f32 %v1703, %v2039
        %v2041 = vmul.f32 %v1704, %v2039
        %v2042 = vadd.f32 %v2037, %v2040
        %v2043 = vadd.f32 %v2038, %v2041
        %v2044 = vstv %s555
        %v2045 = vadd.f32 %v2042, %v2044
        %v2046 = vadd.f32 %v2043, %v2044
        %v2047 = vtanh.pop %v2045
        %v2048 = vtanh.pop %v2046
        %v2049 = vstv %s556
        %v2050 = vmul.f32 %v1746, %v2049
        %v2051 = vmul.f32 %v1747, %v2049
        %v2052 = vstv %s557
        %v2053 = vmul.f32 %v1789, %v2052
        %v2054 = vmul.f32 %v1790, %v2052
        %v2055 = vadd.f32 %v2050, %v2053
        %v2056 = vadd.f32 %v2051, %v2054
        %v2057 = vstv %s558
        %v2058 = vmul.f32 %v1832, %v2057
        %v2059 = vmul.f32 %v1833, %v2057
        %v2060 = vadd.f32 %v2055, %v2058
        %v2061 = vadd.f32 %v2056, %v2059
        %v2062 = vstv %s559
        %v2063 = vmul.f32 %v1875, %v2062
        %v2064 = vmul.f32 %v1876, %v2062
        %v2065 = vadd.f32 %v2060, %v2063
        %v2066 = vadd.f32 %v2061, %v2064
        %v2067 = vstv %s560
        %v2068 = vmul.f32 %v1918, %v2067
        %v2069 = vmul.f32 %v1919, %v2067
        %v2070 = vadd.f32 %v2065, %v2068
        %v2071 = vadd.f32 %v2066, %v2069
        %v2072 = vstv %s561
        %v2073 = vmul.f32 %v1961, %v2072
        %v2074 = vmul.f32 %v1962, %v2072
        %v2075 = vadd.f32 %v2070, %v2073
        %v2076 = vadd.f32 %v2071, %v2074
        %v2077 = vstv %s562
        %v2078 = vmul.f32 %v2004, %v2077
        %v2079 = vmul.f32 %v2005, %v2077
        %v2080 = vadd.f32 %v2075, %v2078
        %v2081 = vadd.f32 %v2076, %v2079
        %v2082 = vstv %s563
        %v2083 = vmul.f32 %v2047, %v2082
        %v2084 = vmul.f32 %v2048, %v2082
        %v2085 = vadd.f32 %v2080, %v2083
        %v2086 = vadd.f32 %v2081, %v2084
        %v2087 = vstv %s564
        %v2088 = vadd.f32 %v2085, %v2087
        %v2089 = vadd.f32 %v2086, %v2087
        %v2090 = vtanh.pop %v2088
        %v2091 = vtanh.pop %v2089
        %2092 = vst [vmem:[%s240] sm:$0xff] %v2090
        %2093 = vst [vmem:[%s240 + $0x8] sm:$0xff] %v2091
        %s2094 = sand.u32 %s105, 1
        %s2095 = scalar_lea.sflag [#allocation4], %s2094
        %s2096 = sand.u32 %s105, 1
        %s2097 = smul.addr %s2096, 16
        %s2098 = scalar_lea.vmem [#allocation9], %s2097
        // Predicated region
        $region45: #{tpu_custom_call.1} parent=31 // pred_check
          %p2099 = pneg %p115
        $region46: #{tpu_custom_call.1} parent=31 // pred_check_branch
          %2101 = sbr.rel (%p2099) target = $region48
        $region47: #{tpu_custom_call.1} parent=31 // pred_region
          %s2102 = smul.u32 2, %s24
          %s2104 = ssub.s32 256, 256
          %2105 = vsyncadd %s2095, %s2104
          %s2106 = smul.addr %s2102, 128
          %s2107 = scalar_lea.hbm %s3, %s2106
          %s2108 = sshll.u32 %s2098, 4
          %s2109 = int_to_ptr.vmem [resolvable:$true] %s2108
          %2114 = dma.vmem_to_hbm [thread:$0]  %s2109, 256, %s2107, %s2095, 128, 128, 8
        $region48: #{tpu_custom_call.1} parent=31 // pred_fallthru
          _
      $region32: #{tpu_custom_call.1} parent=5 // pred_fallthru
        _
      %p2115 = scmp.le.s32.totalorder 2, %s19
      // Predicated region
      $region49: #{tpu_custom_call.1} parent=5 // pred_check
        %p2116 = pneg %p2115
      $region50: #{tpu_custom_call.1} parent=5 // pred_check_branch
        %2118 = sbr.rel (%p2116) target = $region52
      $region51: #{tpu_custom_call.1} parent=5 // pred_region
        %s2119 = ssub.s32 %s19, 2
        // Predicated region
        $region53: #{tpu_custom_call.1} parent=51 // pred_check
          %p2120 = pneg %p121
        $region54: #{tpu_custom_call.1} parent=51 // pred_check_branch
          %2122 = sbr.rel (%p2120) target = $region56
        $region55: #{tpu_custom_call.1} parent=51 // pred_region
          %s2123 = sand.u32 %s106, 1
          %s2124 = scalar_lea.sflag [#allocation4], %s2123
          %s2125 = sand.u32 %s106, 1
          %s2126 = smul.addr %s2125, 16
          %s2127 = scalar_lea.vmem [#allocation9], %s2126
          %2128 = dma.done %s2124, 256
        $region56: #{tpu_custom_call.1} parent=51 // pred_fallthru
          _
      $region52: #{tpu_custom_call.1} parent=5 // pred_fallthru
        _
    $region6: #{tpu_custom_call.1} parent=1 // loop_footer
      %s23 = sadd.s32 1, %s19
    $region7: #{tpu_custom_call.1} parent=1 // loop_footer_branch
      %18 = sbr.rel target = $region3
    $region8: #{tpu_custom_call.1} parent=1 // loop_exit
      _
    %2129 = vsyncpa [#allocation3], 1
    %s2130 = scalar_lea.sflag [#allocation3], 1
    %2131 = vsyncpa %s2130, 1
    %2132 = vsyncpa [#allocation8], 1
    %s2133 = scalar_lea.sflag [#allocation8], 1
    %2134 = vsyncpa %s2133, 1
    %2135 = vsyncpa [#allocation4], 1
    %s2136 = scalar_lea.sflag [#allocation4], 1
    %2137 = vsyncpa %s2136, 1
    %2138 = vsyncpa [#allocation5], 1
    %s2139 = scalar_lea.sflag [#allocation5], 1
    %2140 = vsyncpa %s2139, 1

</llo_original>
